<compile_context>
chip_gen: v5e
topology: v5e:2x2
jax: 0.10.0
libtpu: 0.0.40
codegen_flags: <defaults>
</compile_context>

<pallas_src>
import numpy as np
import jax
import jax.numpy as jnp
from jax import lax
from jax.experimental import pallas as pl
from jax.experimental.pallas import tpu as pltpu


# ----------------------------------------------------------------------------
# Deterministic parameter construction (host-side, numpy) -- synthetic weights
# ----------------------------------------------------------------------------

class LFSR:
    # TODO(synk): the reference LFSR class is not provided; this is a
    # deterministic 16-bit Fibonacci-LFSR surrogate producing signed
    # power-of-two "fixed point shift" values for gen_fxp_shift(n_bits).
    def __init__(self, seed=69):
        self.state = (seed & 0xFFFF) or 1

    def _next_bit(self):
        b = ((self.state >> 0) ^ (self.state >> 2) ^
             (self.state >> 3) ^ (self.state >> 5)) & 1
        self.state = ((self.state >> 1) | (b << 15)) & 0xFFFF
        return b

    def _bits(self, n):
        v = 0
        for _ in range(n):
            v = (v << 1) | self._next_bit()
        return v

    def gen_fxp_shift(self, n_bits):
        sign = 1.0 if self._next_bit() else -1.0
        shift = self._bits(max(n_bits - 1, 1)) % n_bits
        return sign * (2.0 ** (-shift))


def make_pqmf_filters(n_bands, taps_per_band=8, attenuation=100.0):
    # TODO(synk): PQMF class is not provided in the reference; this is a
    # standard cosine-modulated Kaiser-prototype pseudo-QMF analysis bank
    # (attenuation ~100 dB), applied as a stride-n_bands correlation.
    L = taps_per_band * n_bands
    n = np.arange(L, dtype=np.float64)
    center = (L - 1) / 2.0
    proto = np.sinc((n - center) / (2.0 * n_bands)) / (2.0 * n_bands)
    beta = 0.1102 * (attenuation - 8.7)
    proto = proto * np.kaiser(L, beta)
    k = np.arange(n_bands, dtype=np.float64)[:, None]
    phase = ((2.0 * k + 1.0) * np.pi / (2.0 * n_bands) * (n[None, :] - center)
             + ((-1.0) ** k) * np.pi / 4.0)
    Hk = 2.0 * proto[None, :] * np.cos(phase)          # (n_bands, L)
    return Hk.astype(np.float32)


def build_mixin(n_bits, degree, f_in, f_out, seed=69):
    # LowBitMixIn.__init__
    lfsr = LFSR(seed)
    if degree > 1:
        mask = np.zeros((f_out, f_in), dtype=bool)
        for i in range(1, degree):
            mask |= np.roll(np.eye(f_out, f_in), i, axis=0).astype(bool)
        mixer = np.zeros((f_out, f_in), dtype=np.float32)
        mixer[mask] = [lfsr.gen_fxp_shift(n_bits) for _ in range(int(mask.sum()))]
    else:
        mixer = np.array([lfsr.gen_fxp_shift(n_bits) for _ in range(f_out * f_in)],
                         dtype=np.float32)[:, None]
    return mixer                                        # (f_out, f_in)


def build_rc_pushforward(n_feats, degree, spec_rad, n_bits, seed=69):
    # LowBit_RC._gen_weights (eigenvalue normalization done host-side in numpy)
    mask = np.zeros((n_feats, n_feats), dtype=bool)
    for i in range(1, degree):
        mask |= np.roll(np.eye(n_feats), i, axis=0).astype(bool)
    lfsr = LFSR(seed)
    A = np.zeros((n_feats, n_feats), dtype=np.float32)
    A[mask] = [lfsr.gen_fxp_shift(n_bits) for _ in range(int(mask.sum()))]
    if spec_rad > 0:
        ev0 = np.linalg.eigvals(A.astype(np.float64))[0]
        A = spec_rad * A / max(abs(ev0), 1e-12)
    return A.astype(np.float32)                         # (n_feats, n_feats)


def extract_cyclic_diags(Wrc, degree):
    # Wrc[j, k] != 0 only for j == (k + s) % F, s in 1..degree-1.
    F = Wrc.shape[0]
    idx = np.arange(F)
    return np.stack([Wrc[(idx + s) % F, idx] for s in range(1, degree)],
                    axis=0).astype(np.float32)          # (degree-1, F)


def init_linear(key, fan_in, fan_out):
    kw, kb = jax.random.split(key)
    bound = 1.0 / np.sqrt(fan_in)
    w = jax.random.uniform(kw, (fan_out, fan_in), jnp.float32, -bound, bound)
    b = jax.random.uniform(kb, (fan_out,), jnp.float32, -bound, bound)
    return w, b


# ----------------------------------------------------------------------------
# Glue: frame the audio for the strided PQMF conv (im2col)
# ----------------------------------------------------------------------------

def frame_signal(x, n_bands, L):
    # x: (B, T) audio.  frames[b, t, :] = x_pad[b, t*n_bands : t*n_bands + L]
    B, T = x.shape
    Tp = T // n_bands
    pad_total = L - n_bands
    pad_left = pad_total // 2
    pad_right = pad_total - pad_left
    xp = jnp.pad(x, ((0, 0), (pad_left, pad_right)))
    idx = jnp.arange(Tp)[:, None] * n_bands + jnp.arange(L)[None, :]
    return xp[:, idx]                                   # (B, Tp, L)


# ----------------------------------------------------------------------------
# Pallas kernel: whole pipeline for one batch-block, fully fused
# ----------------------------------------------------------------------------

def fsdd_kernel(frames_ref, w_ref, diag_ref,
                lout_wT_ref, lout_b_ref,
                ff1_wT_ref, ff1_b_ref,
                ff2_wT_ref, ff2_b_ref,
                mean_ref,
                out_ref, resbuf_scr):
    # Static shapes (Python ints at trace time)
    R = frames_ref.shape[1]                 # R = Tp * bb rows, time-major
    F_ = w_ref.shape[1]
    bb = out_ref.shape[1]
    Tp = R // bb
    ndiag = diag_ref.shape[0]

    # --- PQMF analysis + LowBitMixIn folded into one MXU matmul -------------
    X = frames_ref[0]                                                    # (R, L)
    mixed = jnp.dot(X, w_ref[...], preferred_element_type=jnp.float32)   # (R, F)

    diags = diag_ref[...]                                                # (ndiag, F)

    # Chunk the time loop so resbuf stores are aligned 8-row (full-vreg) vst.
    if bb <= 8 and 8 % bb == 0 and Tp % (8 // bb) == 0:
        spc = 8 // bb                        # timesteps per store chunk
    else:
        spc = 1

    def rot_up(v, s):
        # result[:, k] = v[:, (k + s) % F]  -- cyclic lane rotation (XLU work)
        return jnp.concatenate([v[:, s:], v[:, :s]], axis=-1)

    def leaky(v):
        return jnp.where(v >= 0, v, v * (1.0 / 16.0))

    # --- LowBit_RC recurrence: feats <- tanh(2*(feats @ Wrc + mixed[t])) ----
    # Wrc is cyclic-banded (rc degree-1 off-diagonals), so feats @ Wrc is done
    # with `ndiag` lane rotations + elementwise FMAs (no MXU on the serial
    # critical path).  Fully unrolled: one basic block, full LLO visibility.
    feats = jnp.zeros((bb, F_), jnp.float32)
    for c in range(Tp // spc):
        rows = []
        for i in range(spc):
            t = c * spc + i
            drive = mixed[t * bb:(t + 1) * bb, :]        # static in-register slice
            acc = drive
            for s in range(1, ndiag + 1):
                acc = acc + rot_up(feats, s) * diags[s - 1:s, :]
            feats = jnp.tanh(2.0 * acc)
            rows.append(feats)
        chunk = rows[0] if spc == 1 else jnp.concatenate(rows, axis=0)   # (spc*bb, F)
        r0 = c * spc * bb
        resbuf_scr[r0:r0 + spc * bb, :] = chunk

    # --- Readout heads (batched over all R = Tp*bb rows) --------------------
    resbuf = resbuf_scr[...]                                             # (R, F)
    res = leaky(jnp.dot(resbuf, lout_wT_ref[...],
                        preferred_element_type=jnp.float32) + lout_b_ref[...])   # (R, 10)
    h1 = leaky(jnp.dot(mixed, ff1_wT_ref[...],
                       preferred_element_type=jnp.float32) + ff1_b_ref[...])     # (R, F/8)
    ff = leaky(jnp.dot(h1, ff2_wT_ref[...],
                       preferred_element_type=jnp.float32) + ff2_b_ref[...])     # (R, 10)

    y = jnp.maximum(res + ff, 0.0)                                       # (R, 10)
    # Per-batch time-mean as one small matmul (avoids in-kernel reshapes).
    out_ref[0] = jnp.dot(mean_ref[...], y,
                         preferred_element_type=jnp.float32)             # (bb, 10)


def fsdd_pipeline(x, params, n_bands, batch_block=None):
    Hk = params["Hk"]                                   # (NB, L)
    NB, L = Hk.shape
    mixer = params["mixer"]                             # (F, NB)
    F_ = mixer.shape[0]
    diag = params["Wrc_diags"]                          # (ndiag, F)
    ndiag = diag.shape[0]
    F8 = params["ff1_w"].shape[0]

    frames = frame_signal(x, n_bands, L)                # (B, Tp, L)
    B, Tp, _ = frames.shape

    # batch_block lets v7x keep both TensorCores busy (e.g. batch_block=B//2);
    # default is the whole batch in one invocation (best on v5e/v6e).
    bb = B if batch_block is None else batch_block
    assert B % bb == 0
    nb = B // bb
    R = Tp * bb

    # Fold PQMF analysis + LowBitMixIn host-side: W = Hk.T @ mixer.T  (L, F)
    W = jnp.dot(Hk.T, mixer.T, precision=lax.Precision.HIGHEST).astype(jnp.float32)

    # Time-major / batch-fastest row layout per batch block: row = t*bb + b
    frames_tb = frames.reshape(nb, bb, Tp, L).transpose(0, 2, 1, 3).reshape(nb, R, L)

    # Averaging matrix: out[b] = (1/Tp) * sum_t y[t*bb + b]
    mean_mat = jnp.asarray(np.kron(np.ones((1, Tp)), np.eye(bb)) / Tp,
                           dtype=jnp.float32)           # (bb, R)

    args = (frames_tb, W, diag,
            params["lin_w"].T, params["lin_b"][None, :],
            params["ff1_w"].T, params["ff1_b"][None, :],
            params["ff2_w"].T, params["ff2_b"][None, :],
            mean_mat)

    def full(shape):
        z = (0,) * len(shape)
        return pl.BlockSpec(shape, lambda i, _z=z: _z)

    in_specs = [
        pl.BlockSpec((1, R, L), lambda i: (i, 0, 0)),   # frames (per batch block)
        full((L, F_)),                                  # folded PQMF+mixin
        full((ndiag, F_)),                              # Wrc band diagonals
        full((F_, 10)), full((1, 10)),                  # lin_out
        full((F_, F8)), full((1, F8)),                  # ff1
        full((F8, 10)), full((1, 10)),                  # ff2
        full((bb, R)),                                  # time-mean matrix
    ]

    out = pl.pallas_call(
        fsdd_kernel,
        out_shape=jax.ShapeDtypeStruct((nb, bb, 10), jnp.float32),
        grid=(nb,),
        in_specs=in_specs,
        out_specs=pl.BlockSpec((1, bb, 10), lambda i: (i, 0, 0)),
        scratch_shapes=[pltpu.VMEM((R, F_), jnp.float32)],   # resbuf
        compiler_params=pltpu.CompilerParams(dimension_semantics=("parallel",)),
    )(*args)
    return out.reshape(B, 10)                           # (B, 10)


# ----------------------------------------------------------------------------
# Pure-JAX reference (same math, torch layout, un-folded / full-matrix RC)
# ----------------------------------------------------------------------------

def reference_forward(x, params, n_bands):
    HI = lax.Precision.HIGHEST
    Hk = params["Hk"]
    L = Hk.shape[1]
    frames = frame_signal(x, n_bands, L)                                 # (B, Tp, L)
    bands = jnp.einsum("btl,nl->bnt", frames, Hk, precision=HI)          # (B, NB, Tp)
    mixed = jnp.einsum("fn,bnt->bft", params["mixer"], bands, precision=HI)  # (B, F, Tp)
    B, F_, Tp = mixed.shape

    def leaky(v):
        return jnp.where(v >= 0, v, v * (1.0 / 16.0))

    feats = jnp.zeros((B, F_), jnp.float32)
    outs = []
    for t in range(Tp):
        feats = jnp.tanh(2.0 * (jnp.dot(feats, params["Wrc"], precision=HI)
                                + mixed[..., t]))
        outs.append(feats)
    resbuf = jnp.stack(outs, axis=-1)                                    # (B, F, Tp)

    res = jnp.einsum("of,bft->bot", params["lin_w"], resbuf, precision=HI) \
        + params["lin_b"][:, None]
    res = leaky(res)
    h1 = leaky(jnp.einsum("hf,bft->bht", params["ff1_w"], mixed, precision=HI)
               + params["ff1_b"][:, None])
    ff = leaky(jnp.einsum("oh,bht->bot", params["ff2_w"], h1, precision=HI)
               + params["ff2_b"][:, None])
    return jnp.maximum(res + ff, 0.0).mean(axis=-1)                      # (B, 10)


# ----------------------------------------------------------------------------

if __name__ == "__main__":
    # FSDDPipeline(n_bands=4, n_feats=32, n_bits=4, spec_rad=0.1,
    #              mix_degree=2, rc_multiplex_degree=3, seed=69)
    n_bands, n_feats = 4, 32
    n_bits, spec_rad = 4, 0.1
    mix_degree, rc_degree = 2, 3
    seed = 69
    B, T = 2, 256

    Hk = make_pqmf_filters(n_bands)                                  # (4, 32)
    mixer = build_mixin(n_bits, mix_degree, n_bands, n_feats, seed)  # (32, 4)
    Wrc = build_rc_pushforward(n_feats, rc_degree, spec_rad, n_bits, seed)  # (32, 32)

    # Verify the cyclic-band assumption used by the kernel's VPU/XLU recurrence.
    diags = extract_cyclic_diags(Wrc, rc_degree)                     # (2, 32)
    idx = np.arange(n_feats)
    recon = np.zeros_like(Wrc)
    for s in range(1, rc_degree):
        recon[(idx + s) % n_feats, idx] = diags[s - 1]
    assert np.allclose(recon, Wrc), "Wrc is not cyclic-banded as expected"

    key = jax.random.PRNGKey(0)
    k1, k2, k3, kx = jax.random.split(key, 4)
    lin_w, lin_b = init_linear(k1, n_feats, 10)            # rc.lin_out
    ff1_w, ff1_b = init_linear(k2, n_feats, n_feats // 8)  # ff1
    ff2_w, ff2_b = init_linear(k3, n_feats // 8, 10)       # ff2

    params = dict(Hk=jnp.asarray(Hk), mixer=jnp.asarray(mixer),
                  Wrc=jnp.asarray(Wrc), Wrc_diags=jnp.asarray(diags),
                  lin_w=lin_w, lin_b=lin_b,
                  ff1_w=ff1_w, ff1_b=ff1_b,
                  ff2_w=ff2_w, ff2_b=ff2_b)

    x = jax.random.normal(kx, (B, T), dtype=jnp.float32)   # raw audio, (B, T)

    out = jax.block_until_ready(fsdd_pipeline(x, params, n_bands))
    ref = jax.block_until_ready(reference_forward(x, params, n_bands))

    assert out.shape == (B, 10)
    np.testing.assert_allclose(np.asarray(out), np.asarray(ref), rtol=2e-3, atol=2e-3)
    print("KERNEL_OK")
</pallas_src>

<mosaic_0001>
module attributes {stable_mosaic.version = 11 : i64} {
  func.func @fsdd_kernel(%arg0: i32, %arg1: memref<1x128x32xf32, #tpu.memory_space<vmem>>, %arg2: memref<32x32xf32, #tpu.memory_space<vmem>>, %arg3: memref<2x32xf32, #tpu.memory_space<vmem>>, %arg4: memref<32x10xf32, #tpu.memory_space<vmem>>, %arg5: memref<1x10xf32, #tpu.memory_space<vmem>>, %arg6: memref<32x4xf32, #tpu.memory_space<vmem>>, %arg7: memref<1x4xf32, #tpu.memory_space<vmem>>, %arg8: memref<4x10xf32, #tpu.memory_space<vmem>>, %arg9: memref<1x10xf32, #tpu.memory_space<vmem>>, %arg10: memref<2x128xf32, #tpu.memory_space<vmem>>, %arg11: memref<1x2x10xf32, #tpu.memory_space<vmem>>, %arg12: memref<128x32xf32, #tpu.memory_space<vmem>>) attributes {dimension_semantics = [#tpu.dimension_semantics<parallel>], iteration_bounds = array<i64: 1>, scalar_prefetch = 0 : i64, scratch_operands = 1 : i64, tpu.core_type = #tpu.core_type<tc>, window_params = [{transform_indices = @transform_0, window_bounds = array<i64: 1, 128, 32>}, {pipeline_mode = #tpu.pipeline_mode<synchronous>, transform_indices = @transform_1, window_bounds = array<i64: 32, 32>}, {pipeline_mode = #tpu.pipeline_mode<synchronous>, transform_indices = @transform_2, window_bounds = array<i64: 2, 32>}, {pipeline_mode = #tpu.pipeline_mode<synchronous>, transform_indices = @transform_3, window_bounds = array<i64: 32, 10>}, {pipeline_mode = #tpu.pipeline_mode<synchronous>, transform_indices = @transform_4, window_bounds = array<i64: 1, 10>}, {pipeline_mode = #tpu.pipeline_mode<synchronous>, transform_indices = @transform_5, window_bounds = array<i64: 32, 4>}, {pipeline_mode = #tpu.pipeline_mode<synchronous>, transform_indices = @transform_6, window_bounds = array<i64: 1, 4>}, {pipeline_mode = #tpu.pipeline_mode<synchronous>, transform_indices = @transform_7, window_bounds = array<i64: 4, 10>}, {pipeline_mode = #tpu.pipeline_mode<synchronous>, transform_indices = @transform_8, window_bounds = array<i64: 1, 10>}, {pipeline_mode = #tpu.pipeline_mode<synchronous>, transform_indices = @transform_9, window_bounds = array<i64: 2, 128>}, {transform_indices = @transform_10, window_bounds = array<i64: 1, 2, 10>}]} {
    %c0 = arith.constant 0 : index
    %c0_0 = arith.constant 0 : index
    %c0_1 = arith.constant 0 : index
    %0 = vector.load %arg1[%c0, %c0_0, %c0_1] : memref<1x128x32xf32, #tpu.memory_space<vmem>>, vector<1x128x32xf32>
    %1 = vector.shape_cast %0 : vector<1x128x32xf32> to vector<128x32xf32>
    %c0_2 = arith.constant 0 : index
    %c0_3 = arith.constant 0 : index
    %2 = vector.load %arg2[%c0_2, %c0_3] : memref<32x32xf32, #tpu.memory_space<vmem>>, vector<32x32xf32>
    %cst = arith.constant dense<0.000000e+00> : vector<128x32xf32>
    %3 = tpu.matmul %1, %2, %cst {dimension_numbers = #tpu.dot_dimension_numbers<[1], [0], [0], [1], [0, 0, 1, 1], [], []>} : vector<128x32xf32>, vector<32x32xf32>, vector<128x32xf32> -> vector<128x32xf32>
    %c0_4 = arith.constant 0 : index
    %c0_5 = arith.constant 0 : index
    %4 = vector.load %arg3[%c0_4, %c0_5] : memref<2x32xf32, #tpu.memory_space<vmem>>, vector<2x32xf32>
    %cst_6 = arith.constant 0.000000e+00 : f32
    %5 = vector.broadcast %cst_6 : f32 to vector<2x32xf32>
    %6 = vector.extract_strided_slice %3 {offsets = [0, 0], sizes = [2, 32], strides = [1, 1]} : vector<128x32xf32> to vector<2x32xf32>
    %7 = vector.extract_strided_slice %5 {offsets = [0, 1], sizes = [2, 31], strides = [1, 1]} : vector<2x32xf32> to vector<2x31xf32>
    %8 = vector.extract_strided_slice %5 {offsets = [0, 0], sizes = [2, 1], strides = [1, 1]} : vector<2x32xf32> to vector<2x1xf32>
    %9 = tpu.concatenate %7, %8 in 1 : vector<2x31xf32>, vector<2x1xf32> -> vector<2x32xf32>
    %10 = vector.extract_strided_slice %4 {offsets = [0, 0], sizes = [1, 32], strides = [1, 1]} : vector<2x32xf32> to vector<1x32xf32>
    %11 = vector.broadcast %10 : vector<1x32xf32> to vector<2x32xf32>
    %12 = arith.mulf %9, %11 : vector<2x32xf32>
    %13 = arith.addf %6, %12 : vector<2x32xf32>
    %14 = vector.extract_strided_slice %5 {offsets = [0, 2], sizes = [2, 30], strides = [1, 1]} : vector<2x32xf32> to vector<2x30xf32>
    %15 = vector.extract_strided_slice %5 {offsets = [0, 0], sizes = [2, 2], strides = [1, 1]} : vector<2x32xf32> to vector<2x2xf32>
    %16 = tpu.concatenate %14, %15 in 1 : vector<2x30xf32>, vector<2x2xf32> -> vector<2x32xf32>
    %17 = vector.extract_strided_slice %4 {offsets = [1, 0], sizes = [1, 32], strides = [1, 1]} : vector<2x32xf32> to vector<1x32xf32>
    %18 = vector.broadcast %17 : vector<1x32xf32> to vector<2x32xf32>
    %19 = arith.mulf %16, %18 : vector<2x32xf32>
    %20 = arith.addf %13, %19 : vector<2x32xf32>
    %cst_7 = arith.constant 2.000000e+00 : f32
    %21 = vector.broadcast %cst_7 : f32 to vector<2x32xf32>
    %22 = arith.mulf %21, %20 : vector<2x32xf32>
    %23 = math.tanh %22 : vector<2x32xf32>
    %24 = vector.extract_strided_slice %3 {offsets = [2, 0], sizes = [2, 32], strides = [1, 1]} : vector<128x32xf32> to vector<2x32xf32>
    %25 = vector.extract_strided_slice %23 {offsets = [0, 1], sizes = [2, 31], strides = [1, 1]} : vector<2x32xf32> to vector<2x31xf32>
    %26 = vector.extract_strided_slice %23 {offsets = [0, 0], sizes = [2, 1], strides = [1, 1]} : vector<2x32xf32> to vector<2x1xf32>
    %27 = tpu.concatenate %25, %26 in 1 : vector<2x31xf32>, vector<2x1xf32> -> vector<2x32xf32>
    %28 = vector.extract_strided_slice %4 {offsets = [0, 0], sizes = [1, 32], strides = [1, 1]} : vector<2x32xf32> to vector<1x32xf32>
    %29 = vector.broadcast %28 : vector<1x32xf32> to vector<2x32xf32>
    %30 = arith.mulf %27, %29 : vector<2x32xf32>
    %31 = arith.addf %24, %30 : vector<2x32xf32>
    %32 = vector.extract_strided_slice %23 {offsets = [0, 2], sizes = [2, 30], strides = [1, 1]} : vector<2x32xf32> to vector<2x30xf32>
    %33 = vector.extract_strided_slice %23 {offsets = [0, 0], sizes = [2, 2], strides = [1, 1]} : vector<2x32xf32> to vector<2x2xf32>
    %34 = tpu.concatenate %32, %33 in 1 : vector<2x30xf32>, vector<2x2xf32> -> vector<2x32xf32>
    %35 = vector.extract_strided_slice %4 {offsets = [1, 0], sizes = [1, 32], strides = [1, 1]} : vector<2x32xf32> to vector<1x32xf32>
    %36 = vector.broadcast %35 : vector<1x32xf32> to vector<2x32xf32>
    %37 = arith.mulf %34, %36 : vector<2x32xf32>
    %38 = arith.addf %31, %37 : vector<2x32xf32>
    %cst_8 = arith.constant 2.000000e+00 : f32
    %39 = vector.broadcast %cst_8 : f32 to vector<2x32xf32>
    %40 = arith.mulf %39, %38 : vector<2x32xf32>
    %41 = math.tanh %40 : vector<2x32xf32>
    %42 = vector.extract_strided_slice %3 {offsets = [4, 0], sizes = [2, 32], strides = [1, 1]} : vector<128x32xf32> to vector<2x32xf32>
    %43 = vector.extract_strided_slice %41 {offsets = [0, 1], sizes = [2, 31], strides = [1, 1]} : vector<2x32xf32> to vector<2x31xf32>
    %44 = vector.extract_strided_slice %41 {offsets = [0, 0], sizes = [2, 1], strides = [1, 1]} : vector<2x32xf32> to vector<2x1xf32>
    %45 = tpu.concatenate %43, %44 in 1 : vector<2x31xf32>, vector<2x1xf32> -> vector<2x32xf32>
    %46 = vector.extract_strided_slice %4 {offsets = [0, 0], sizes = [1, 32], strides = [1, 1]} : vector<2x32xf32> to vector<1x32xf32>
    %47 = vector.broadcast %46 : vector<1x32xf32> to vector<2x32xf32>
    %48 = arith.mulf %45, %47 : vector<2x32xf32>
    %49 = arith.addf %42, %48 : vector<2x32xf32>
    %50 = vector.extract_strided_slice %41 {offsets = [0, 2], sizes = [2, 30], strides = [1, 1]} : vector<2x32xf32> to vector<2x30xf32>
    %51 = vector.extract_strided_slice %41 {offsets = [0, 0], sizes = [2, 2], strides = [1, 1]} : vector<2x32xf32> to vector<2x2xf32>
    %52 = tpu.concatenate %50, %51 in 1 : vector<2x30xf32>, vector<2x2xf32> -> vector<2x32xf32>
    %53 = vector.extract_strided_slice %4 {offsets = [1, 0], sizes = [1, 32], strides = [1, 1]} : vector<2x32xf32> to vector<1x32xf32>
    %54 = vector.broadcast %53 : vector<1x32xf32> to vector<2x32xf32>
    %55 = arith.mulf %52, %54 : vector<2x32xf32>
    %56 = arith.addf %49, %55 : vector<2x32xf32>
    %cst_9 = arith.constant 2.000000e+00 : f32
    %57 = vector.broadcast %cst_9 : f32 to vector<2x32xf32>
    %58 = arith.mulf %57, %56 : vector<2x32xf32>
    %59 = math.tanh %58 : vector<2x32xf32>
    %60 = vector.extract_strided_slice %3 {offsets = [6, 0], sizes = [2, 32], strides = [1, 1]} : vector<128x32xf32> to vector<2x32xf32>
    %61 = vector.extract_strided_slice %59 {offsets = [0, 1], sizes = [2, 31], strides = [1, 1]} : vector<2x32xf32> to vector<2x31xf32>
    %62 = vector.extract_strided_slice %59 {offsets = [0, 0], sizes = [2, 1], strides = [1, 1]} : vector<2x32xf32> to vector<2x1xf32>
    %63 = tpu.concatenate %61, %62 in 1 : vector<2x31xf32>, vector<2x1xf32> -> vector<2x32xf32>
    %64 = vector.extract_strided_slice %4 {offsets = [0, 0], sizes = [1, 32], strides = [1, 1]} : vector<2x32xf32> to vector<1x32xf32>
    %65 = vector.broadcast %64 : vector<1x32xf32> to vector<2x32xf32>
    %66 = arith.mulf %63, %65 : vector<2x32xf32>
    %67 = arith.addf %60, %66 : vector<2x32xf32>
    %68 = vector.extract_strided_slice %59 {offsets = [0, 2], sizes = [2, 30], strides = [1, 1]} : vector<2x32xf32> to vector<2x30xf32>
    %69 = vector.extract_strided_slice %59 {offsets = [0, 0], sizes = [2, 2], strides = [1, 1]} : vector<2x32xf32> to vector<2x2xf32>
    %70 = tpu.concatenate %68, %69 in 1 : vector<2x30xf32>, vector<2x2xf32> -> vector<2x32xf32>
    %71 = vector.extract_strided_slice %4 {offsets = [1, 0], sizes = [1, 32], strides = [1, 1]} : vector<2x32xf32> to vector<1x32xf32>
    %72 = vector.broadcast %71 : vector<1x32xf32> to vector<2x32xf32>
    %73 = arith.mulf %70, %72 : vector<2x32xf32>
    %74 = arith.addf %67, %73 : vector<2x32xf32>
    %cst_10 = arith.constant 2.000000e+00 : f32
    %75 = vector.broadcast %cst_10 : f32 to vector<2x32xf32>
    %76 = arith.mulf %75, %74 : vector<2x32xf32>
    %77 = math.tanh %76 : vector<2x32xf32>
    %78 = tpu.concatenate %23, %41, %59, %77 in 0 : vector<2x32xf32>, vector<2x32xf32>, vector<2x32xf32>, vector<2x32xf32> -> vector<8x32xf32>
    %c0_11 = arith.constant 0 : index
    %c0_12 = arith.constant 0 : index
    %79 = vector.load %arg12[%c0_11, %c0_12] : memref<128x32xf32, #tpu.memory_space<vmem>>, vector<8x32xf32>
    tpu.vector_store %arg12[%c0_11, %c0_12], %78 {strides = array<i32>} : memref<128x32xf32, #tpu.memory_space<vmem>>, vector<8x32xf32>,
    %80 = vector.extract_strided_slice %3 {offsets = [8, 0], sizes = [2, 32], strides = [1, 1]} : vector<128x32xf32> to vector<2x32xf32>
    %81 = vector.extract_strided_slice %77 {offsets = [0, 1], sizes = [2, 31], strides = [1, 1]} : vector<2x32xf32> to vector<2x31xf32>
    %82 = vector.extract_strided_slice %77 {offsets = [0, 0], sizes = [2, 1], strides = [1, 1]} : vector<2x32xf32> to vector<2x1xf32>
    %83 = tpu.concatenate %81, %82 in 1 : vector<2x31xf32>, vector<2x1xf32> -> vector<2x32xf32>
    %84 = vector.extract_strided_slice %4 {offsets = [0, 0], sizes = [1, 32], strides = [1, 1]} : vector<2x32xf32> to vector<1x32xf32>
    %85 = vector.broadcast %84 : vector<1x32xf32> to vector<2x32xf32>
    %86 = arith.mulf %83, %85 : vector<2x32xf32>
    %87 = arith.addf %80, %86 : vector<2x32xf32>
    %88 = vector.extract_strided_slice %77 {offsets = [0, 2], sizes = [2, 30], strides = [1, 1]} : vector<2x32xf32> to vector<2x30xf32>
    %89 = vector.extract_strided_slice %77 {offsets = [0, 0], sizes = [2, 2], strides = [1, 1]} : vector<2x32xf32> to vector<2x2xf32>
    %90 = tpu.concatenate %88, %89 in 1 : vector<2x30xf32>, vector<2x2xf32> -> vector<2x32xf32>
    %91 = vector.extract_strided_slice %4 {offsets = [1, 0], sizes = [1, 32], strides = [1, 1]} : vector<2x32xf32> to vector<1x32xf32>
    %92 = vector.broadcast %91 : vector<1x32xf32> to vector<2x32xf32>
    %93 = arith.mulf %90, %92 : vector<2x32xf32>
    %94 = arith.addf %87, %93 : vector<2x32xf32>
    %cst_13 = arith.constant 2.000000e+00 : f32
    %95 = vector.broadcast %cst_13 : f32 to vector<2x32xf32>
    %96 = arith.mulf %95, %94 : vector<2x32xf32>
    %97 = math.tanh %96 : vector<2x32xf32>
    %98 = vector.extract_strided_slice %3 {offsets = [10, 0], sizes = [2, 32], strides = [1, 1]} : vector<128x32xf32> to vector<2x32xf32>
    %99 = vector.extract_strided_slice %97 {offsets = [0, 1], sizes = [2, 31], strides = [1, 1]} : vector<2x32xf32> to vector<2x31xf32>
    %100 = vector.extract_strided_slice %97 {offsets = [0, 0], sizes = [2, 1], strides = [1, 1]} : vector<2x32xf32> to vector<2x1xf32>
    %101 = tpu.concatenate %99, %100 in 1 : vector<2x31xf32>, vector<2x1xf32> -> vector<2x32xf32>
    %102 = vector.extract_strided_slice %4 {offsets = [0, 0], sizes = [1, 32], strides = [1, 1]} : vector<2x32xf32> to vector<1x32xf32>
    %103 = vector.broadcast %102 : vector<1x32xf32> to vector<2x32xf32>
    %104 = arith.mulf %101, %103 : vector<2x32xf32>
    %105 = arith.addf %98, %104 : vector<2x32xf32>
    %106 = vector.extract_strided_slice %97 {offsets = [0, 2], sizes = [2, 30], strides = [1, 1]} : vector<2x32xf32> to vector<2x30xf32>
    %107 = vector.extract_strided_slice %97 {offsets = [0, 0], sizes = [2, 2], strides = [1, 1]} : vector<2x32xf32> to vector<2x2xf32>
    %108 = tpu.concatenate %106, %107 in 1 : vector<2x30xf32>, vector<2x2xf32> -> vector<2x32xf32>
    %109 = vector.extract_strided_slice %4 {offsets = [1, 0], sizes = [1, 32], strides = [1, 1]} : vector<2x32xf32> to vector<1x32xf32>
    %110 = vector.broadcast %109 : vector<1x32xf32> to vector<2x32xf32>
    %111 = arith.mulf %108, %110 : vector<2x32xf32>
    %112 = arith.addf %105, %111 : vector<2x32xf32>
    %cst_14 = arith.constant 2.000000e+00 : f32
    %113 = vector.broadcast %cst_14 : f32 to vector<2x32xf32>
    %114 = arith.mulf %113, %112 : vector<2x32xf32>
    %115 = math.tanh %114 : vector<2x32xf32>
    %116 = vector.extract_strided_slice %3 {offsets = [12, 0], sizes = [2, 32], strides = [1, 1]} : vector<128x32xf32> to vector<2x32xf32>
    %117 = vector.extract_strided_slice %115 {offsets = [0, 1], sizes = [2, 31], strides = [1, 1]} : vector<2x32xf32> to vector<2x31xf32>
    %118 = vector.extract_strided_slice %115 {offsets = [0, 0], sizes = [2, 1], strides = [1, 1]} : vector<2x32xf32> to vector<2x1xf32>
    %119 = tpu.concatenate %117, %118 in 1 : vector<2x31xf32>, vector<2x1xf32> -> vector<2x32xf32>
    %120 = vector.extract_strided_slice %4 {offsets = [0, 0], sizes = [1, 32], strides = [1, 1]} : vector<2x32xf32> to vector<1x32xf32>
    %121 = vector.broadcast %120 : vector<1x32xf32> to vector<2x32xf32>
    %122 = arith.mulf %119, %121 : vector<2x32xf32>
    %123 = arith.addf %116, %122 : vector<2x32xf32>
    %124 = vector.extract_strided_slice %115 {offsets = [0, 2], sizes = [2, 30], strides = [1, 1]} : vector<2x32xf32> to vector<2x30xf32>
    %125 = vector.extract_strided_slice %115 {offsets = [0, 0], sizes = [2, 2], strides = [1, 1]} : vector<2x32xf32> to vector<2x2xf32>
    %126 = tpu.concatenate %124, %125 in 1 : vector<2x30xf32>, vector<2x2xf32> -> vector<2x32xf32>
    %127 = vector.extract_strided_slice %4 {offsets = [1, 0], sizes = [1, 32], strides = [1, 1]} : vector<2x32xf32> to vector<1x32xf32>
    %128 = vector.broadcast %127 : vector<1x32xf32> to vector<2x32xf32>
    %129 = arith.mulf %126, %128 : vector<2x32xf32>
    %130 = arith.addf %123, %129 : vector<2x32xf32>
    %cst_15 = arith.constant 2.000000e+00 : f32
    %131 = vector.broadcast %cst_15 : f32 to vector<2x32xf32>
    %132 = arith.mulf %131, %130 : vector<2x32xf32>
    %133 = math.tanh %132 : vector<2x32xf32>
    %134 = vector.extract_strided_slice %3 {offsets = [14, 0], sizes = [2, 32], strides = [1, 1]} : vector<128x32xf32> to vector<2x32xf32>
    %135 = vector.extract_strided_slice %133 {offsets = [0, 1], sizes = [2, 31], strides = [1, 1]} : vector<2x32xf32> to vector<2x31xf32>
    %136 = vector.extract_strided_slice %133 {offsets = [0, 0], sizes = [2, 1], strides = [1, 1]} : vector<2x32xf32> to vector<2x1xf32>
    %137 = tpu.concatenate %135, %136 in 1 : vector<2x31xf32>, vector<2x1xf32> -> vector<2x32xf32>
    %138 = vector.extract_strided_slice %4 {offsets = [0, 0], sizes = [1, 32], strides = [1, 1]} : vector<2x32xf32> to vector<1x32xf32>
    %139 = vector.broadcast %138 : vector<1x32xf32> to vector<2x32xf32>
    %140 = arith.mulf %137, %139 : vector<2x32xf32>
    %141 = arith.addf %134, %140 : vector<2x32xf32>
    %142 = vector.extract_strided_slice %133 {offsets = [0, 2], sizes = [2, 30], strides = [1, 1]} : vector<2x32xf32> to vector<2x30xf32>
    %143 = vector.extract_strided_slice %133 {offsets = [0, 0], sizes = [2, 2], strides = [1, 1]} : vector<2x32xf32> to vector<2x2xf32>
    %144 = tpu.concatenate %142, %143 in 1 : vector<2x30xf32>, vector<2x2xf32> -> vector<2x32xf32>
    %145 = vector.extract_strided_slice %4 {offsets = [1, 0], sizes = [1, 32], strides = [1, 1]} : vector<2x32xf32> to vector<1x32xf32>
    %146 = vector.broadcast %145 : vector<1x32xf32> to vector<2x32xf32>
    %147 = arith.mulf %144, %146 : vector<2x32xf32>
    %148 = arith.addf %141, %147 : vector<2x32xf32>
    %cst_16 = arith.constant 2.000000e+00 : f32
    %149 = vector.broadcast %cst_16 : f32 to vector<2x32xf32>
    %150 = arith.mulf %149, %148 : vector<2x32xf32>
    %151 = math.tanh %150 : vector<2x32xf32>
    %152 = tpu.concatenate %97, %115, %133, %151 in 0 : vector<2x32xf32>, vector<2x32xf32>, vector<2x32xf32>, vector<2x32xf32> -> vector<8x32xf32>
    %c8 = arith.constant 8 : index
    %c0_17 = arith.constant 0 : index
    %153 = vector.load %arg12[%c8, %c0_17] : memref<128x32xf32, #tpu.memory_space<vmem>>, vector<8x32xf32>
    tpu.vector_store %arg12[%c8, %c0_17], %152 {strides = array<i32>} : memref<128x32xf32, #tpu.memory_space<vmem>>, vector<8x32xf32>,
    %154 = vector.extract_strided_slice %3 {offsets = [16, 0], sizes = [2, 32], strides = [1, 1]} : vector<128x32xf32> to vector<2x32xf32>
    %155 = vector.extract_strided_slice %151 {offsets = [0, 1], sizes = [2, 31], strides = [1, 1]} : vector<2x32xf32> to vector<2x31xf32>
    %156 = vector.extract_strided_slice %151 {offsets = [0, 0], sizes = [2, 1], strides = [1, 1]} : vector<2x32xf32> to vector<2x1xf32>
    %157 = tpu.concatenate %155, %156 in 1 : vector<2x31xf32>, vector<2x1xf32> -> vector<2x32xf32>
    %158 = vector.extract_strided_slice %4 {offsets = [0, 0], sizes = [1, 32], strides = [1, 1]} : vector<2x32xf32> to vector<1x32xf32>
    %159 = vector.broadcast %158 : vector<1x32xf32> to vector<2x32xf32>
    %160 = arith.mulf %157, %159 : vector<2x32xf32>
    %161 = arith.addf %154, %160 : vector<2x32xf32>
    %162 = vector.extract_strided_slice %151 {offsets = [0, 2], sizes = [2, 30], strides = [1, 1]} : vector<2x32xf32> to vector<2x30xf32>
    %163 = vector.extract_strided_slice %151 {offsets = [0, 0], sizes = [2, 2], strides = [1, 1]} : vector<2x32xf32> to vector<2x2xf32>
    %164 = tpu.concatenate %162, %163 in 1 : vector<2x30xf32>, vector<2x2xf32> -> vector<2x32xf32>
    %165 = vector.extract_strided_slice %4 {offsets = [1, 0], sizes = [1, 32], strides = [1, 1]} : vector<2x32xf32> to vector<1x32xf32>
    %166 = vector.broadcast %165 : vector<1x32xf32> to vector<2x32xf32>
    %167 = arith.mulf %164, %166 : vector<2x32xf32>
    %168 = arith.addf %161, %167 : vector<2x32xf32>
    %cst_18 = arith.constant 2.000000e+00 : f32
    %169 = vector.broadcast %cst_18 : f32 to vector<2x32xf32>
    %170 = arith.mulf %169, %168 : vector<2x32xf32>
    %171 = math.tanh %170 : vector<2x32xf32>
    %172 = vector.extract_strided_slice %3 {offsets = [18, 0], sizes = [2, 32], strides = [1, 1]} : vector<128x32xf32> to vector<2x32xf32>
    %173 = vector.extract_strided_slice %171 {offsets = [0, 1], sizes = [2, 31], strides = [1, 1]} : vector<2x32xf32> to vector<2x31xf32>
    %174 = vector.extract_strided_slice %171 {offsets = [0, 0], sizes = [2, 1], strides = [1, 1]} : vector<2x32xf32> to vector<2x1xf32>
    %175 = tpu.concatenate %173, %174 in 1 : vector<2x31xf32>, vector<2x1xf32> -> vector<2x32xf32>
    %176 = vector.extract_strided_slice %4 {offsets = [0, 0], sizes = [1, 32], strides = [1, 1]} : vector<2x32xf32> to vector<1x32xf32>
    %177 = vector.broadcast %176 : vector<1x32xf32> to vector<2x32xf32>
    %178 = arith.mulf %175, %177 : vector<2x32xf32>
    %179 = arith.addf %172, %178 : vector<2x32xf32>
    %180 = vector.extract_strided_slice %171 {offsets = [0, 2], sizes = [2, 30], strides = [1, 1]} : vector<2x32xf32> to vector<2x30xf32>
    %181 = vector.extract_strided_slice %171 {offsets = [0, 0], sizes = [2, 2], strides = [1, 1]} : vector<2x32xf32> to vector<2x2xf32>
    %182 = tpu.concatenate %180, %181 in 1 : vector<2x30xf32>, vector<2x2xf32> -> vector<2x32xf32>
    %183 = vector.extract_strided_slice %4 {offsets = [1, 0], sizes = [1, 32], strides = [1, 1]} : vector<2x32xf32> to vector<1x32xf32>
    %184 = vector.broadcast %183 : vector<1x32xf32> to vector<2x32xf32>
    %185 = arith.mulf %182, %184 : vector<2x32xf32>
    %186 = arith.addf %179, %185 : vector<2x32xf32>
    %cst_19 = arith.constant 2.000000e+00 : f32
    %187 = vector.broadcast %cst_19 : f32 to vector<2x32xf32>
    %188 = arith.mulf %187, %186 : vector<2x32xf32>
    %189 = math.tanh %188 : vector<2x32xf32>
    %190 = vector.extract_strided_slice %3 {offsets = [20, 0], sizes = [2, 32], strides = [1, 1]} : vector<128x32xf32> to vector<2x32xf32>
    %191 = vector.extract_strided_slice %189 {offsets = [0, 1], sizes = [2, 31], strides = [1, 1]} : vector<2x32xf32> to vector<2x31xf32>
    %192 = vector.extract_strided_slice %189 {offsets = [0, 0], sizes = [2, 1], strides = [1, 1]} : vector<2x32xf32> to vector<2x1xf32>
    %193 = tpu.concatenate %191, %192 in 1 : vector<2x31xf32>, vector<2x1xf32> -> vector<2x32xf32>
    %194 = vector.extract_strided_slice %4 {offsets = [0, 0], sizes = [1, 32], strides = [1, 1]} : vector<2x32xf32> to vector<1x32xf32>
    %195 = vector.broadcast %194 : vector<1x32xf32> to vector<2x32xf32>
    %196 = arith.mulf %193, %195 : vector<2x32xf32>
    %197 = arith.addf %190, %196 : vector<2x32xf32>
    %198 = vector.extract_strided_slice %189 {offsets = [0, 2], sizes = [2, 30], strides = [1, 1]} : vector<2x32xf32> to vector<2x30xf32>
    %199 = vector.extract_strided_slice %189 {offsets = [0, 0], sizes = [2, 2], strides = [1, 1]} : vector<2x32xf32> to vector<2x2xf32>
    %200 = tpu.concatenate %198, %199 in 1 : vector<2x30xf32>, vector<2x2xf32> -> vector<2x32xf32>
    %201 = vector.extract_strided_slice %4 {offsets = [1, 0], sizes = [1, 32], strides = [1, 1]} : vector<2x32xf32> to vector<1x32xf32>
    %202 = vector.broadcast %201 : vector<1x32xf32> to vector<2x32xf32>
    %203 = arith.mulf %200, %202 : vector<2x32xf32>
    %204 = arith.addf %197, %203 : vector<2x32xf32>
    %cst_20 = arith.constant 2.000000e+00 : f32
    %205 = vector.broadcast %cst_20 : f32 to vector<2x32xf32>
    %206 = arith.mulf %205, %204 : vector<2x32xf32>
    %207 = math.tanh %206 : vector<2x32xf32>
    %208 = vector.extract_strided_slice %3 {offsets = [22, 0], sizes = [2, 32], strides = [1, 1]} : vector<128x32xf32> to vector<2x32xf32>
    %209 = vector.extract_strided_slice %207 {offsets = [0, 1], sizes = [2, 31], strides = [1, 1]} : vector<2x32xf32> to vector<2x31xf32>
    %210 = vector.extract_strided_slice %207 {offsets = [0, 0], sizes = [2, 1], strides = [1, 1]} : vector<2x32xf32> to vector<2x1xf32>
    %211 = tpu.concatenate %209, %210 in 1 : vector<2x31xf32>, vector<2x1xf32> -> vector<2x32xf32>
    %212 = vector.extract_strided_slice %4 {offsets = [0, 0], sizes = [1, 32], strides = [1, 1]} : vector<2x32xf32> to vector<1x32xf32>
    %213 = vector.broadcast %212 : vector<1x32xf32> to vector<2x32xf32>
    %214 = arith.mulf %211, %213 : vector<2x32xf32>
    %215 = arith.addf %208, %214 : vector<2x32xf32>
    %216 = vector.extract_strided_slice %207 {offsets = [0, 2], sizes = [2, 30], strides = [1, 1]} : vector<2x32xf32> to vector<2x30xf32>
    %217 = vector.extract_strided_slice %207 {offsets = [0, 0], sizes = [2, 2], strides = [1, 1]} : vector<2x32xf32> to vector<2x2xf32>
    %218 = tpu.concatenate %216, %217 in 1 : vector<2x30xf32>, vector<2x2xf32> -> vector<2x32xf32>
    %219 = vector.extract_strided_slice %4 {offsets = [1, 0], sizes = [1, 32], strides = [1, 1]} : vector<2x32xf32> to vector<1x32xf32>
    %220 = vector.broadcast %219 : vector<1x32xf32> to vector<2x32xf32>
    %221 = arith.mulf %218, %220 : vector<2x32xf32>
    %222 = arith.addf %215, %221 : vector<2x32xf32>
    %cst_21 = arith.constant 2.000000e+00 : f32
    %223 = vector.broadcast %cst_21 : f32 to vector<2x32xf32>
    %224 = arith.mulf %223, %222 : vector<2x32xf32>
    %225 = math.tanh %224 : vector<2x32xf32>
    %226 = tpu.concatenate %171, %189, %207, %225 in 0 : vector<2x32xf32>, vector<2x32xf32>, vector<2x32xf32>, vector<2x32xf32> -> vector<8x32xf32>
    %c16 = arith.constant 16 : index
    %c0_22 = arith.constant 0 : index
    %227 = vector.load %arg12[%c16, %c0_22] : memref<128x32xf32, #tpu.memory_space<vmem>>, vector<8x32xf32>
    tpu.vector_store %arg12[%c16, %c0_22], %226 {strides = array<i32>} : memref<128x32xf32, #tpu.memory_space<vmem>>, vector<8x32xf32>,
    %228 = vector.extract_strided_slice %3 {offsets = [24, 0], sizes = [2, 32], strides = [1, 1]} : vector<128x32xf32> to vector<2x32xf32>
    %229 = vector.extract_strided_slice %225 {offsets = [0, 1], sizes = [2, 31], strides = [1, 1]} : vector<2x32xf32> to vector<2x31xf32>
    %230 = vector.extract_strided_slice %225 {offsets = [0, 0], sizes = [2, 1], strides = [1, 1]} : vector<2x32xf32> to vector<2x1xf32>
    %231 = tpu.concatenate %229, %230 in 1 : vector<2x31xf32>, vector<2x1xf32> -> vector<2x32xf32>
    %232 = vector.extract_strided_slice %4 {offsets = [0, 0], sizes = [1, 32], strides = [1, 1]} : vector<2x32xf32> to vector<1x32xf32>
    %233 = vector.broadcast %232 : vector<1x32xf32> to vector<2x32xf32>
    %234 = arith.mulf %231, %233 : vector<2x32xf32>
    %235 = arith.addf %228, %234 : vector<2x32xf32>
    %236 = vector.extract_strided_slice %225 {offsets = [0, 2], sizes = [2, 30], strides = [1, 1]} : vector<2x32xf32> to vector<2x30xf32>
    %237 = vector.extract_strided_slice %225 {offsets = [0, 0], sizes = [2, 2], strides = [1, 1]} : vector<2x32xf32> to vector<2x2xf32>
    %238 = tpu.concatenate %236, %237 in 1 : vector<2x30xf32>, vector<2x2xf32> -> vector<2x32xf32>
    %239 = vector.extract_strided_slice %4 {offsets = [1, 0], sizes = [1, 32], strides = [1, 1]} : vector<2x32xf32> to vector<1x32xf32>
    %240 = vector.broadcast %239 : vector<1x32xf32> to vector<2x32xf32>
    %241 = arith.mulf %238, %240 : vector<2x32xf32>
    %242 = arith.addf %235, %241 : vector<2x32xf32>
    %cst_23 = arith.constant 2.000000e+00 : f32
    %243 = vector.broadcast %cst_23 : f32 to vector<2x32xf32>
    %244 = arith.mulf %243, %242 : vector<2x32xf32>
    %245 = math.tanh %244 : vector<2x32xf32>
    %246 = vector.extract_strided_slice %3 {offsets = [26, 0], sizes = [2, 32], strides = [1, 1]} : vector<128x32xf32> to vector<2x32xf32>
    %247 = vector.extract_strided_slice %245 {offsets = [0, 1], sizes = [2, 31], strides = [1, 1]} : vector<2x32xf32> to vector<2x31xf32>
    %248 = vector.extract_strided_slice %245 {offsets = [0, 0], sizes = [2, 1], strides = [1, 1]} : vector<2x32xf32> to vector<2x1xf32>
    %249 = tpu.concatenate %247, %248 in 1 : vector<2x31xf32>, vector<2x1xf32> -> vector<2x32xf32>
    %250 = vector.extract_strided_slice %4 {offsets = [0, 0], sizes = [1, 32], strides = [1, 1]} : vector<2x32xf32> to vector<1x32xf32>
    %251 = vector.broadcast %250 : vector<1x32xf32> to vector<2x32xf32>
    %252 = arith.mulf %249, %251 : vector<2x32xf32>
    %253 = arith.addf %246, %252 : vector<2x32xf32>
    %254 = vector.extract_strided_slice %245 {offsets = [0, 2], sizes = [2, 30], strides = [1, 1]} : vector<2x32xf32> to vector<2x30xf32>
    %255 = vector.extract_strided_slice %245 {offsets = [0, 0], sizes = [2, 2], strides = [1, 1]} : vector<2x32xf32> to vector<2x2xf32>
    %256 = tpu.concatenate %254, %255 in 1 : vector<2x30xf32>, vector<2x2xf32> -> vector<2x32xf32>
    %257 = vector.extract_strided_slice %4 {offsets = [1, 0], sizes = [1, 32], strides = [1, 1]} : vector<2x32xf32> to vector<1x32xf32>
    %258 = vector.broadcast %257 : vector<1x32xf32> to vector<2x32xf32>
    %259 = arith.mulf %256, %258 : vector<2x32xf32>
    %260 = arith.addf %253, %259 : vector<2x32xf32>
    %cst_24 = arith.constant 2.000000e+00 : f32
    %261 = vector.broadcast %cst_24 : f32 to vector<2x32xf32>
    %262 = arith.mulf %261, %260 : vector<2x32xf32>
    %263 = math.tanh %262 : vector<2x32xf32>
    %264 = vector.extract_strided_slice %3 {offsets = [28, 0], sizes = [2, 32], strides = [1, 1]} : vector<128x32xf32> to vector<2x32xf32>
    %265 = vector.extract_strided_slice %263 {offsets = [0, 1], sizes = [2, 31], strides = [1, 1]} : vector<2x32xf32> to vector<2x31xf32>
    %266 = vector.extract_strided_slice %263 {offsets = [0, 0], sizes = [2, 1], strides = [1, 1]} : vector<2x32xf32> to vector<2x1xf32>
    %267 = tpu.concatenate %265, %266 in 1 : vector<2x31xf32>, vector<2x1xf32> -> vector<2x32xf32>
    %268 = vector.extract_strided_slice %4 {offsets = [0, 0], sizes = [1, 32], strides = [1, 1]} : vector<2x32xf32> to vector<1x32xf32>
    %269 = vector.broadcast %268 : vector<1x32xf32> to vector<2x32xf32>
    %270 = arith.mulf %267, %269 : vector<2x32xf32>
    %271 = arith.addf %264, %270 : vector<2x32xf32>
    %272 = vector.extract_strided_slice %263 {offsets = [0, 2], sizes = [2, 30], strides = [1, 1]} : vector<2x32xf32> to vector<2x30xf32>
    %273 = vector.extract_strided_slice %263 {offsets = [0, 0], sizes = [2, 2], strides = [1, 1]} : vector<2x32xf32> to vector<2x2xf32>
    %274 = tpu.concatenate %272, %273 in 1 : vector<2x30xf32>, vector<2x2xf32> -> vector<2x32xf32>
    %275 = vector.extract_strided_slice %4 {offsets = [1, 0], sizes = [1, 32], strides = [1, 1]} : vector<2x32xf32> to vector<1x32xf32>
    %276 = vector.broadcast %275 : vector<1x32xf32> to vector<2x32xf32>
    %277 = arith.mulf %274, %276 : vector<2x32xf32>
    %278 = arith.addf %271, %277 : vector<2x32xf32>
    %cst_25 = arith.constant 2.000000e+00 : f32
    %279 = vector.broadcast %cst_25 : f32 to vector<2x32xf32>
    %280 = arith.mulf %279, %278 : vector<2x32xf32>
    %281 = math.tanh %280 : vector<2x32xf32>
    %282 = vector.extract_strided_slice %3 {offsets = [30, 0], sizes = [2, 32], strides = [1, 1]} : vector<128x32xf32> to vector<2x32xf32>
    %283 = vector.extract_strided_slice %281 {offsets = [0, 1], sizes = [2, 31], strides = [1, 1]} : vector<2x32xf32> to vector<2x31xf32>
    %284 = vector.extract_strided_slice %281 {offsets = [0, 0], sizes = [2, 1], strides = [1, 1]} : vector<2x32xf32> to vector<2x1xf32>
    %285 = tpu.concatenate %283, %284 in 1 : vector<2x31xf32>, vector<2x1xf32> -> vector<2x32xf32>
    %286 = vector.extract_strided_slice %4 {offsets = [0, 0], sizes = [1, 32], strides = [1, 1]} : vector<2x32xf32> to vector<1x32xf32>
    %287 = vector.broadcast %286 : vector<1x32xf32> to vector<2x32xf32>
    %288 = arith.mulf %285, %287 : vector<2x32xf32>
    %289 = arith.addf %282, %288 : vector<2x32xf32>
    %290 = vector.extract_strided_slice %281 {offsets = [0, 2], sizes = [2, 30], strides = [1, 1]} : vector<2x32xf32> to vector<2x30xf32>
    %291 = vector.extract_strided_slice %281 {offsets = [0, 0], sizes = [2, 2], strides = [1, 1]} : vector<2x32xf32> to vector<2x2xf32>
    %292 = tpu.concatenate %290, %291 in 1 : vector<2x30xf32>, vector<2x2xf32> -> vector<2x32xf32>
    %293 = vector.extract_strided_slice %4 {offsets = [1, 0], sizes = [1, 32], strides = [1, 1]} : vector<2x32xf32> to vector<1x32xf32>
    %294 = vector.broadcast %293 : vector<1x32xf32> to vector<2x32xf32>
    %295 = arith.mulf %292, %294 : vector<2x32xf32>
    %296 = arith.addf %289, %295 : vector<2x32xf32>
    %cst_26 = arith.constant 2.000000e+00 : f32
    %297 = vector.broadcast %cst_26 : f32 to vector<2x32xf32>
    %298 = arith.mulf %297, %296 : vector<2x32xf32>
    %299 = math.tanh %298 : vector<2x32xf32>
    %300 = tpu.concatenate %245, %263, %281, %299 in 0 : vector<2x32xf32>, vector<2x32xf32>, vector<2x32xf32>, vector<2x32xf32> -> vector<8x32xf32>
    %c24 = arith.constant 24 : index
    %c0_27 = arith.constant 0 : index
    %301 = vector.load %arg12[%c24, %c0_27] : memref<128x32xf32, #tpu.memory_space<vmem>>, vector<8x32xf32>
    tpu.vector_store %arg12[%c24, %c0_27], %300 {strides = array<i32>} : memref<128x32xf32, #tpu.memory_space<vmem>>, vector<8x32xf32>,
    %302 = vector.extract_strided_slice %3 {offsets = [32, 0], sizes = [2, 32], strides = [1, 1]} : vector<128x32xf32> to vector<2x32xf32>
    %303 = vector.extract_strided_slice %299 {offsets = [0, 1], sizes = [2, 31], strides = [1, 1]} : vector<2x32xf32> to vector<2x31xf32>
    %304 = vector.extract_strided_slice %299 {offsets = [0, 0], sizes = [2, 1], strides = [1, 1]} : vector<2x32xf32> to vector<2x1xf32>
    %305 = tpu.concatenate %303, %304 in 1 : vector<2x31xf32>, vector<2x1xf32> -> vector<2x32xf32>
    %306 = vector.extract_strided_slice %4 {offsets = [0, 0], sizes = [1, 32], strides = [1, 1]} : vector<2x32xf32> to vector<1x32xf32>
    %307 = vector.broadcast %306 : vector<1x32xf32> to vector<2x32xf32>
    %308 = arith.mulf %305, %307 : vector<2x32xf32>
    %309 = arith.addf %302, %308 : vector<2x32xf32>
    %310 = vector.extract_strided_slice %299 {offsets = [0, 2], sizes = [2, 30], strides = [1, 1]} : vector<2x32xf32> to vector<2x30xf32>
    %311 = vector.extract_strided_slice %299 {offsets = [0, 0], sizes = [2, 2], strides = [1, 1]} : vector<2x32xf32> to vector<2x2xf32>
    %312 = tpu.concatenate %310, %311 in 1 : vector<2x30xf32>, vector<2x2xf32> -> vector<2x32xf32>
    %313 = vector.extract_strided_slice %4 {offsets = [1, 0], sizes = [1, 32], strides = [1, 1]} : vector<2x32xf32> to vector<1x32xf32>
    %314 = vector.broadcast %313 : vector<1x32xf32> to vector<2x32xf32>
    %315 = arith.mulf %312, %314 : vector<2x32xf32>
    %316 = arith.addf %309, %315 : vector<2x32xf32>
    %cst_28 = arith.constant 2.000000e+00 : f32
    %317 = vector.broadcast %cst_28 : f32 to vector<2x32xf32>
    %318 = arith.mulf %317, %316 : vector<2x32xf32>
    %319 = math.tanh %318 : vector<2x32xf32>
    %320 = vector.extract_strided_slice %3 {offsets = [34, 0], sizes = [2, 32], strides = [1, 1]} : vector<128x32xf32> to vector<2x32xf32>
    %321 = vector.extract_strided_slice %319 {offsets = [0, 1], sizes = [2, 31], strides = [1, 1]} : vector<2x32xf32> to vector<2x31xf32>
    %322 = vector.extract_strided_slice %319 {offsets = [0, 0], sizes = [2, 1], strides = [1, 1]} : vector<2x32xf32> to vector<2x1xf32>
    %323 = tpu.concatenate %321, %322 in 1 : vector<2x31xf32>, vector<2x1xf32> -> vector<2x32xf32>
    %324 = vector.extract_strided_slice %4 {offsets = [0, 0], sizes = [1, 32], strides = [1, 1]} : vector<2x32xf32> to vector<1x32xf32>
    %325 = vector.broadcast %324 : vector<1x32xf32> to vector<2x32xf32>
    %326 = arith.mulf %323, %325 : vector<2x32xf32>
    %327 = arith.addf %320, %326 : vector<2x32xf32>
    %328 = vector.extract_strided_slice %319 {offsets = [0, 2], sizes = [2, 30], strides = [1, 1]} : vector<2x32xf32> to vector<2x30xf32>
    %329 = vector.extract_strided_slice %319 {offsets = [0, 0], sizes = [2, 2], strides = [1, 1]} : vector<2x32xf32> to vector<2x2xf32>
    %330 = tpu.concatenate %328, %329 in 1 : vector<2x30xf32>, vector<2x2xf32> -> vector<2x32xf32>
    %331 = vector.extract_strided_slice %4 {offsets = [1, 0], sizes = [1, 32], strides = [1, 1]} : vector<2x32xf32> to vector<1x32xf32>
    %332 = vector.broadcast %331 : vector<1x32xf32> to vector<2x32xf32>
    %333 = arith.mulf %330, %332 : vector<2x32xf32>
    %334 = arith.addf %327, %333 : vector<2x32xf32>
    %cst_29 = arith.constant 2.000000e+00 : f32
    %335 = vector.broadcast %cst_29 : f32 to vector<2x32xf32>
    %336 = arith.mulf %335, %334 : vector<2x32xf32>
    %337 = math.tanh %336 : vector<2x32xf32>
    %338 = vector.extract_strided_slice %3 {offsets = [36, 0], sizes = [2, 32], strides = [1, 1]} : vector<128x32xf32> to vector<2x32xf32>
    %339 = vector.extract_strided_slice %337 {offsets = [0, 1], sizes = [2, 31], strides = [1, 1]} : vector<2x32xf32> to vector<2x31xf32>
    %340 = vector.extract_strided_slice %337 {offsets = [0, 0], sizes = [2, 1], strides = [1, 1]} : vector<2x32xf32> to vector<2x1xf32>
    %341 = tpu.concatenate %339, %340 in 1 : vector<2x31xf32>, vector<2x1xf32> -> vector<2x32xf32>
    %342 = vector.extract_strided_slice %4 {offsets = [0, 0], sizes = [1, 32], strides = [1, 1]} : vector<2x32xf32> to vector<1x32xf32>
    %343 = vector.broadcast %342 : vector<1x32xf32> to vector<2x32xf32>
    %344 = arith.mulf %341, %343 : vector<2x32xf32>
    %345 = arith.addf %338, %344 : vector<2x32xf32>
    %346 = vector.extract_strided_slice %337 {offsets = [0, 2], sizes = [2, 30], strides = [1, 1]} : vector<2x32xf32> to vector<2x30xf32>
    %347 = vector.extract_strided_slice %337 {offsets = [0, 0], sizes = [2, 2], strides = [1, 1]} : vector<2x32xf32> to vector<2x2xf32>
    %348 = tpu.concatenate %346, %347 in 1 : vector<2x30xf32>, vector<2x2xf32> -> vector<2x32xf32>
    %349 = vector.extract_strided_slice %4 {offsets = [1, 0], sizes = [1, 32], strides = [1, 1]} : vector<2x32xf32> to vector<1x32xf32>
    %350 = vector.broadcast %349 : vector<1x32xf32> to vector<2x32xf32>
    %351 = arith.mulf %348, %350 : vector<2x32xf32>
    %352 = arith.addf %345, %351 : vector<2x32xf32>
    %cst_30 = arith.constant 2.000000e+00 : f32
    %353 = vector.broadcast %cst_30 : f32 to vector<2x32xf32>
    %354 = arith.mulf %353, %352 : vector<2x32xf32>
    %355 = math.tanh %354 : vector<2x32xf32>
    %356 = vector.extract_strided_slice %3 {offsets = [38, 0], sizes = [2, 32], strides = [1, 1]} : vector<128x32xf32> to vector<2x32xf32>
    %357 = vector.extract_strided_slice %355 {offsets = [0, 1], sizes = [2, 31], strides = [1, 1]} : vector<2x32xf32> to vector<2x31xf32>
    %358 = vector.extract_strided_slice %355 {offsets = [0, 0], sizes = [2, 1], strides = [1, 1]} : vector<2x32xf32> to vector<2x1xf32>
    %359 = tpu.concatenate %357, %358 in 1 : vector<2x31xf32>, vector<2x1xf32> -> vector<2x32xf32>
    %360 = vector.extract_strided_slice %4 {offsets = [0, 0], sizes = [1, 32], strides = [1, 1]} : vector<2x32xf32> to vector<1x32xf32>
    %361 = vector.broadcast %360 : vector<1x32xf32> to vector<2x32xf32>
    %362 = arith.mulf %359, %361 : vector<2x32xf32>
    %363 = arith.addf %356, %362 : vector<2x32xf32>
    %364 = vector.extract_strided_slice %355 {offsets = [0, 2], sizes = [2, 30], strides = [1, 1]} : vector<2x32xf32> to vector<2x30xf32>
    %365 = vector.extract_strided_slice %355 {offsets = [0, 0], sizes = [2, 2], strides = [1, 1]} : vector<2x32xf32> to vector<2x2xf32>
    %366 = tpu.concatenate %364, %365 in 1 : vector<2x30xf32>, vector<2x2xf32> -> vector<2x32xf32>
    %367 = vector.extract_strided_slice %4 {offsets = [1, 0], sizes = [1, 32], strides = [1, 1]} : vector<2x32xf32> to vector<1x32xf32>
    %368 = vector.broadcast %367 : vector<1x32xf32> to vector<2x32xf32>
    %369 = arith.mulf %366, %368 : vector<2x32xf32>
    %370 = arith.addf %363, %369 : vector<2x32xf32>
    %cst_31 = arith.constant 2.000000e+00 : f32
    %371 = vector.broadcast %cst_31 : f32 to vector<2x32xf32>
    %372 = arith.mulf %371, %370 : vector<2x32xf32>
    %373 = math.tanh %372 : vector<2x32xf32>
    %374 = tpu.concatenate %319, %337, %355, %373 in 0 : vector<2x32xf32>, vector<2x32xf32>, vector<2x32xf32>, vector<2x32xf32> -> vector<8x32xf32>
    %c32 = arith.constant 32 : index
    %c0_32 = arith.constant 0 : index
    %375 = vector.load %arg12[%c32, %c0_32] : memref<128x32xf32, #tpu.memory_space<vmem>>, vector<8x32xf32>
    tpu.vector_store %arg12[%c32, %c0_32], %374 {strides = array<i32>} : memref<128x32xf32, #tpu.memory_space<vmem>>, vector<8x32xf32>,
    %376 = vector.extract_strided_slice %3 {offsets = [40, 0], sizes = [2, 32], strides = [1, 1]} : vector<128x32xf32> to vector<2x32xf32>
    %377 = vector.extract_strided_slice %373 {offsets = [0, 1], sizes = [2, 31], strides = [1, 1]} : vector<2x32xf32> to vector<2x31xf32>
    %378 = vector.extract_strided_slice %373 {offsets = [0, 0], sizes = [2, 1], strides = [1, 1]} : vector<2x32xf32> to vector<2x1xf32>
    %379 = tpu.concatenate %377, %378 in 1 : vector<2x31xf32>, vector<2x1xf32> -> vector<2x32xf32>
    %380 = vector.extract_strided_slice %4 {offsets = [0, 0], sizes = [1, 32], strides = [1, 1]} : vector<2x32xf32> to vector<1x32xf32>
    %381 = vector.broadcast %380 : vector<1x32xf32> to vector<2x32xf32>
    %382 = arith.mulf %379, %381 : vector<2x32xf32>
    %383 = arith.addf %376, %382 : vector<2x32xf32>
    %384 = vector.extract_strided_slice %373 {offsets = [0, 2], sizes = [2, 30], strides = [1, 1]} : vector<2x32xf32> to vector<2x30xf32>
    %385 = vector.extract_strided_slice %373 {offsets = [0, 0], sizes = [2, 2], strides = [1, 1]} : vector<2x32xf32> to vector<2x2xf32>
    %386 = tpu.concatenate %384, %385 in 1 : vector<2x30xf32>, vector<2x2xf32> -> vector<2x32xf32>
    %387 = vector.extract_strided_slice %4 {offsets = [1, 0], sizes = [1, 32], strides = [1, 1]} : vector<2x32xf32> to vector<1x32xf32>
    %388 = vector.broadcast %387 : vector<1x32xf32> to vector<2x32xf32>
    %389 = arith.mulf %386, %388 : vector<2x32xf32>
    %390 = arith.addf %383, %389 : vector<2x32xf32>
    %cst_33 = arith.constant 2.000000e+00 : f32
    %391 = vector.broadcast %cst_33 : f32 to vector<2x32xf32>
    %392 = arith.mulf %391, %390 : vector<2x32xf32>
    %393 = math.tanh %392 : vector<2x32xf32>
    %394 = vector.extract_strided_slice %3 {offsets = [42, 0], sizes = [2, 32], strides = [1, 1]} : vector<128x32xf32> to vector<2x32xf32>
    %395 = vector.extract_strided_slice %393 {offsets = [0, 1], sizes = [2, 31], strides = [1, 1]} : vector<2x32xf32> to vector<2x31xf32>
    %396 = vector.extract_strided_slice %393 {offsets = [0, 0], sizes = [2, 1], strides = [1, 1]} : vector<2x32xf32> to vector<2x1xf32>
    %397 = tpu.concatenate %395, %396 in 1 : vector<2x31xf32>, vector<2x1xf32> -> vector<2x32xf32>
    %398 = vector.extract_strided_slice %4 {offsets = [0, 0], sizes = [1, 32], strides = [1, 1]} : vector<2x32xf32> to vector<1x32xf32>
    %399 = vector.broadcast %398 : vector<1x32xf32> to vector<2x32xf32>
    %400 = arith.mulf %397, %399 : vector<2x32xf32>
    %401 = arith.addf %394, %400 : vector<2x32xf32>
    %402 = vector.extract_strided_slice %393 {offsets = [0, 2], sizes = [2, 30], strides = [1, 1]} : vector<2x32xf32> to vector<2x30xf32>
    %403 = vector.extract_strided_slice %393 {offsets = [0, 0], sizes = [2, 2], strides = [1, 1]} : vector<2x32xf32> to vector<2x2xf32>
    %404 = tpu.concatenate %402, %403 in 1 : vector<2x30xf32>, vector<2x2xf32> -> vector<2x32xf32>
    %405 = vector.extract_strided_slice %4 {offsets = [1, 0], sizes = [1, 32], strides = [1, 1]} : vector<2x32xf32> to vector<1x32xf32>
    %406 = vector.broadcast %405 : vector<1x32xf32> to vector<2x32xf32>
    %407 = arith.mulf %404, %406 : vector<2x32xf32>
    %408 = arith.addf %401, %407 : vector<2x32xf32>
    %cst_34 = arith.constant 2.000000e+00 : f32
    %409 = vector.broadcast %cst_34 : f32 to vector<2x32xf32>
    %410 = arith.mulf %409, %408 : vector<2x32xf32>
    %411 = math.tanh %410 : vector<2x32xf32>
    %412 = vector.extract_strided_slice %3 {offsets = [44, 0], sizes = [2, 32], strides = [1, 1]} : vector<128x32xf32> to vector<2x32xf32>
    %413 = vector.extract_strided_slice %411 {offsets = [0, 1], sizes = [2, 31], strides = [1, 1]} : vector<2x32xf32> to vector<2x31xf32>
    %414 = vector.extract_strided_slice %411 {offsets = [0, 0], sizes = [2, 1], strides = [1, 1]} : vector<2x32xf32> to vector<2x1xf32>
    %415 = tpu.concatenate %413, %414 in 1 : vector<2x31xf32>, vector<2x1xf32> -> vector<2x32xf32>
    %416 = vector.extract_strided_slice %4 {offsets = [0, 0], sizes = [1, 32], strides = [1, 1]} : vector<2x32xf32> to vector<1x32xf32>
    %417 = vector.broadcast %416 : vector<1x32xf32> to vector<2x32xf32>
    %418 = arith.mulf %415, %417 : vector<2x32xf32>
    %419 = arith.addf %412, %418 : vector<2x32xf32>
    %420 = vector.extract_strided_slice %411 {offsets = [0, 2], sizes = [2, 30], strides = [1, 1]} : vector<2x32xf32> to vector<2x30xf32>
    %421 = vector.extract_strided_slice %411 {offsets = [0, 0], sizes = [2, 2], strides = [1, 1]} : vector<2x32xf32> to vector<2x2xf32>
    %422 = tpu.concatenate %420, %421 in 1 : vector<2x30xf32>, vector<2x2xf32> -> vector<2x32xf32>
    %423 = vector.extract_strided_slice %4 {offsets = [1, 0], sizes = [1, 32], strides = [1, 1]} : vector<2x32xf32> to vector<1x32xf32>
    %424 = vector.broadcast %423 : vector<1x32xf32> to vector<2x32xf32>
    %425 = arith.mulf %422, %424 : vector<2x32xf32>
    %426 = arith.addf %419, %425 : vector<2x32xf32>
    %cst_35 = arith.constant 2.000000e+00 : f32
    %427 = vector.broadcast %cst_35 : f32 to vector<2x32xf32>
    %428 = arith.mulf %427, %426 : vector<2x32xf32>
    %429 = math.tanh %428 : vector<2x32xf32>
    %430 = vector.extract_strided_slice %3 {offsets = [46, 0], sizes = [2, 32], strides = [1, 1]} : vector<128x32xf32> to vector<2x32xf32>
    %431 = vector.extract_strided_slice %429 {offsets = [0, 1], sizes = [2, 31], strides = [1, 1]} : vector<2x32xf32> to vector<2x31xf32>
    %432 = vector.extract_strided_slice %429 {offsets = [0, 0], sizes = [2, 1], strides = [1, 1]} : vector<2x32xf32> to vector<2x1xf32>
    %433 = tpu.concatenate %431, %432 in 1 : vector<2x31xf32>, vector<2x1xf32> -> vector<2x32xf32>
    %434 = vector.extract_strided_slice %4 {offsets = [0, 0], sizes = [1, 32], strides = [1, 1]} : vector<2x32xf32> to vector<1x32xf32>
    %435 = vector.broadcast %434 : vector<1x32xf32> to vector<2x32xf32>
    %436 = arith.mulf %433, %435 : vector<2x32xf32>
    %437 = arith.addf %430, %436 : vector<2x32xf32>
    %438 = vector.extract_strided_slice %429 {offsets = [0, 2], sizes = [2, 30], strides = [1, 1]} : vector<2x32xf32> to vector<2x30xf32>
    %439 = vector.extract_strided_slice %429 {offsets = [0, 0], sizes = [2, 2], strides = [1, 1]} : vector<2x32xf32> to vector<2x2xf32>
    %440 = tpu.concatenate %438, %439 in 1 : vector<2x30xf32>, vector<2x2xf32> -> vector<2x32xf32>
    %441 = vector.extract_strided_slice %4 {offsets = [1, 0], sizes = [1, 32], strides = [1, 1]} : vector<2x32xf32> to vector<1x32xf32>
    %442 = vector.broadcast %441 : vector<1x32xf32> to vector<2x32xf32>
    %443 = arith.mulf %440, %442 : vector<2x32xf32>
    %444 = arith.addf %437, %443 : vector<2x32xf32>
    %cst_36 = arith.constant 2.000000e+00 : f32
    %445 = vector.broadcast %cst_36 : f32 to vector<2x32xf32>
    %446 = arith.mulf %445, %444 : vector<2x32xf32>
    %447 = math.tanh %446 : vector<2x32xf32>
    %448 = tpu.concatenate %393, %411, %429, %447 in 0 : vector<2x32xf32>, vector<2x32xf32>, vector<2x32xf32>, vector<2x32xf32> -> vector<8x32xf32>
    %c40 = arith.constant 40 : index
    %c0_37 = arith.constant 0 : index
    %449 = vector.load %arg12[%c40, %c0_37] : memref<128x32xf32, #tpu.memory_space<vmem>>, vector<8x32xf32>
    tpu.vector_store %arg12[%c40, %c0_37], %448 {strides = array<i32>} : memref<128x32xf32, #tpu.memory_space<vmem>>, vector<8x32xf32>,
    %450 = vector.extract_strided_slice %3 {offsets = [48, 0], sizes = [2, 32], strides = [1, 1]} : vector<128x32xf32> to vector<2x32xf32>
    %451 = vector.extract_strided_slice %447 {offsets = [0, 1], sizes = [2, 31], strides = [1, 1]} : vector<2x32xf32> to vector<2x31xf32>
    %452 = vector.extract_strided_slice %447 {offsets = [0, 0], sizes = [2, 1], strides = [1, 1]} : vector<2x32xf32> to vector<2x1xf32>
    %453 = tpu.concatenate %451, %452 in 1 : vector<2x31xf32>, vector<2x1xf32> -> vector<2x32xf32>
    %454 = vector.extract_strided_slice %4 {offsets = [0, 0], sizes = [1, 32], strides = [1, 1]} : vector<2x32xf32> to vector<1x32xf32>
    %455 = vector.broadcast %454 : vector<1x32xf32> to vector<2x32xf32>
    %456 = arith.mulf %453, %455 : vector<2x32xf32>
    %457 = arith.addf %450, %456 : vector<2x32xf32>
    %458 = vector.extract_strided_slice %447 {offsets = [0, 2], sizes = [2, 30], strides = [1, 1]} : vector<2x32xf32> to vector<2x30xf32>
    %459 = vector.extract_strided_slice %447 {offsets = [0, 0], sizes = [2, 2], strides = [1, 1]} : vector<2x32xf32> to vector<2x2xf32>
    %460 = tpu.concatenate %458, %459 in 1 : vector<2x30xf32>, vector<2x2xf32> -> vector<2x32xf32>
    %461 = vector.extract_strided_slice %4 {offsets = [1, 0], sizes = [1, 32], strides = [1, 1]} : vector<2x32xf32> to vector<1x32xf32>
    %462 = vector.broadcast %461 : vector<1x32xf32> to vector<2x32xf32>
    %463 = arith.mulf %460, %462 : vector<2x32xf32>
    %464 = arith.addf %457, %463 : vector<2x32xf32>
    %cst_38 = arith.constant 2.000000e+00 : f32
    %465 = vector.broadcast %cst_38 : f32 to vector<2x32xf32>
    %466 = arith.mulf %465, %464 : vector<2x32xf32>
    %467 = math.tanh %466 : vector<2x32xf32>
    %468 = vector.extract_strided_slice %3 {offsets = [50, 0], sizes = [2, 32], strides = [1, 1]} : vector<128x32xf32> to vector<2x32xf32>
    %469 = vector.extract_strided_slice %467 {offsets = [0, 1], sizes = [2, 31], strides = [1, 1]} : vector<2x32xf32> to vector<2x31xf32>
    %470 = vector.extract_strided_slice %467 {offsets = [0, 0], sizes = [2, 1], strides = [1, 1]} : vector<2x32xf32> to vector<2x1xf32>
    %471 = tpu.concatenate %469, %470 in 1 : vector<2x31xf32>, vector<2x1xf32> -> vector<2x32xf32>
    %472 = vector.extract_strided_slice %4 {offsets = [0, 0], sizes = [1, 32], strides = [1, 1]} : vector<2x32xf32> to vector<1x32xf32>
    %473 = vector.broadcast %472 : vector<1x32xf32> to vector<2x32xf32>
    %474 = arith.mulf %471, %473 : vector<2x32xf32>
    %475 = arith.addf %468, %474 : vector<2x32xf32>
    %476 = vector.extract_strided_slice %467 {offsets = [0, 2], sizes = [2, 30], strides = [1, 1]} : vector<2x32xf32> to vector<2x30xf32>
    %477 = vector.extract_strided_slice %467 {offsets = [0, 0], sizes = [2, 2], strides = [1, 1]} : vector<2x32xf32> to vector<2x2xf32>
    %478 = tpu.concatenate %476, %477 in 1 : vector<2x30xf32>, vector<2x2xf32> -> vector<2x32xf32>
    %479 = vector.extract_strided_slice %4 {offsets = [1, 0], sizes = [1, 32], strides = [1, 1]} : vector<2x32xf32> to vector<1x32xf32>
    %480 = vector.broadcast %479 : vector<1x32xf32> to vector<2x32xf32>
    %481 = arith.mulf %478, %480 : vector<2x32xf32>
    %482 = arith.addf %475, %481 : vector<2x32xf32>
    %cst_39 = arith.constant 2.000000e+00 : f32
    %483 = vector.broadcast %cst_39 : f32 to vector<2x32xf32>
    %484 = arith.mulf %483, %482 : vector<2x32xf32>
    %485 = math.tanh %484 : vector<2x32xf32>
    %486 = vector.extract_strided_slice %3 {offsets = [52, 0], sizes = [2, 32], strides = [1, 1]} : vector<128x32xf32> to vector<2x32xf32>
    %487 = vector.extract_strided_slice %485 {offsets = [0, 1], sizes = [2, 31], strides = [1, 1]} : vector<2x32xf32> to vector<2x31xf32>
    %488 = vector.extract_strided_slice %485 {offsets = [0, 0], sizes = [2, 1], strides = [1, 1]} : vector<2x32xf32> to vector<2x1xf32>
    %489 = tpu.concatenate %487, %488 in 1 : vector<2x31xf32>, vector<2x1xf32> -> vector<2x32xf32>
    %490 = vector.extract_strided_slice %4 {offsets = [0, 0], sizes = [1, 32], strides = [1, 1]} : vector<2x32xf32> to vector<1x32xf32>
    %491 = vector.broadcast %490 : vector<1x32xf32> to vector<2x32xf32>
    %492 = arith.mulf %489, %491 : vector<2x32xf32>
    %493 = arith.addf %486, %492 : vector<2x32xf32>
    %494 = vector.extract_strided_slice %485 {offsets = [0, 2], sizes = [2, 30], strides = [1, 1]} : vector<2x32xf32> to vector<2x30xf32>
    %495 = vector.extract_strided_slice %485 {offsets = [0, 0], sizes = [2, 2], strides = [1, 1]} : vector<2x32xf32> to vector<2x2xf32>
    %496 = tpu.concatenate %494, %495 in 1 : vector<2x30xf32>, vector<2x2xf32> -> vector<2x32xf32>
    %497 = vector.extract_strided_slice %4 {offsets = [1, 0], sizes = [1, 32], strides = [1, 1]} : vector<2x32xf32> to vector<1x32xf32>
    %498 = vector.broadcast %497 : vector<1x32xf32> to vector<2x32xf32>
    %499 = arith.mulf %496, %498 : vector<2x32xf32>
    %500 = arith.addf %493, %499 : vector<2x32xf32>
    %cst_40 = arith.constant 2.000000e+00 : f32
    %501 = vector.broadcast %cst_40 : f32 to vector<2x32xf32>
    %502 = arith.mulf %501, %500 : vector<2x32xf32>
    %503 = math.tanh %502 : vector<2x32xf32>
    %504 = vector.extract_strided_slice %3 {offsets = [54, 0], sizes = [2, 32], strides = [1, 1]} : vector<128x32xf32> to vector<2x32xf32>
    %505 = vector.extract_strided_slice %503 {offsets = [0, 1], sizes = [2, 31], strides = [1, 1]} : vector<2x32xf32> to vector<2x31xf32>
    %506 = vector.extract_strided_slice %503 {offsets = [0, 0], sizes = [2, 1], strides = [1, 1]} : vector<2x32xf32> to vector<2x1xf32>
    %507 = tpu.concatenate %505, %506 in 1 : vector<2x31xf32>, vector<2x1xf32> -> vector<2x32xf32>
    %508 = vector.extract_strided_slice %4 {offsets = [0, 0], sizes = [1, 32], strides = [1, 1]} : vector<2x32xf32> to vector<1x32xf32>
    %509 = vector.broadcast %508 : vector<1x32xf32> to vector<2x32xf32>
    %510 = arith.mulf %507, %509 : vector<2x32xf32>
    %511 = arith.addf %504, %510 : vector<2x32xf32>
    %512 = vector.extract_strided_slice %503 {offsets = [0, 2], sizes = [2, 30], strides = [1, 1]} : vector<2x32xf32> to vector<2x30xf32>
    %513 = vector.extract_strided_slice %503 {offsets = [0, 0], sizes = [2, 2], strides = [1, 1]} : vector<2x32xf32> to vector<2x2xf32>
    %514 = tpu.concatenate %512, %513 in 1 : vector<2x30xf32>, vector<2x2xf32> -> vector<2x32xf32>
    %515 = vector.extract_strided_slice %4 {offsets = [1, 0], sizes = [1, 32], strides = [1, 1]} : vector<2x32xf32> to vector<1x32xf32>
    %516 = vector.broadcast %515 : vector<1x32xf32> to vector<2x32xf32>
    %517 = arith.mulf %514, %516 : vector<2x32xf32>
    %518 = arith.addf %511, %517 : vector<2x32xf32>
    %cst_41 = arith.constant 2.000000e+00 : f32
    %519 = vector.broadcast %cst_41 : f32 to vector<2x32xf32>
    %520 = arith.mulf %519, %518 : vector<2x32xf32>
    %521 = math.tanh %520 : vector<2x32xf32>
    %522 = tpu.concatenate %467, %485, %503, %521 in 0 : vector<2x32xf32>, vector<2x32xf32>, vector<2x32xf32>, vector<2x32xf32> -> vector<8x32xf32>
    %c48 = arith.constant 48 : index
    %c0_42 = arith.constant 0 : index
    %523 = vector.load %arg12[%c48, %c0_42] : memref<128x32xf32, #tpu.memory_space<vmem>>, vector<8x32xf32>
    tpu.vector_store %arg12[%c48, %c0_42], %522 {strides = array<i32>} : memref<128x32xf32, #tpu.memory_space<vmem>>, vector<8x32xf32>,
    %524 = vector.extract_strided_slice %3 {offsets = [56, 0], sizes = [2, 32], strides = [1, 1]} : vector<128x32xf32> to vector<2x32xf32>
    %525 = vector.extract_strided_slice %521 {offsets = [0, 1], sizes = [2, 31], strides = [1, 1]} : vector<2x32xf32> to vector<2x31xf32>
    %526 = vector.extract_strided_slice %521 {offsets = [0, 0], sizes = [2, 1], strides = [1, 1]} : vector<2x32xf32> to vector<2x1xf32>
    %527 = tpu.concatenate %525, %526 in 1 : vector<2x31xf32>, vector<2x1xf32> -> vector<2x32xf32>
    %528 = vector.extract_strided_slice %4 {offsets = [0, 0], sizes = [1, 32], strides = [1, 1]} : vector<2x32xf32> to vector<1x32xf32>
    %529 = vector.broadcast %528 : vector<1x32xf32> to vector<2x32xf32>
    %530 = arith.mulf %527, %529 : vector<2x32xf32>
    %531 = arith.addf %524, %530 : vector<2x32xf32>
    %532 = vector.extract_strided_slice %521 {offsets = [0, 2], sizes = [2, 30], strides = [1, 1]} : vector<2x32xf32> to vector<2x30xf32>
    %533 = vector.extract_strided_slice %521 {offsets = [0, 0], sizes = [2, 2], strides = [1, 1]} : vector<2x32xf32> to vector<2x2xf32>
    %534 = tpu.concatenate %532, %533 in 1 : vector<2x30xf32>, vector<2x2xf32> -> vector<2x32xf32>
    %535 = vector.extract_strided_slice %4 {offsets = [1, 0], sizes = [1, 32], strides = [1, 1]} : vector<2x32xf32> to vector<1x32xf32>
    %536 = vector.broadcast %535 : vector<1x32xf32> to vector<2x32xf32>
    %537 = arith.mulf %534, %536 : vector<2x32xf32>
    %538 = arith.addf %531, %537 : vector<2x32xf32>
    %cst_43 = arith.constant 2.000000e+00 : f32
    %539 = vector.broadcast %cst_43 : f32 to vector<2x32xf32>
    %540 = arith.mulf %539, %538 : vector<2x32xf32>
    %541 = math.tanh %540 : vector<2x32xf32>
    %542 = vector.extract_strided_slice %3 {offsets = [58, 0], sizes = [2, 32], strides = [1, 1]} : vector<128x32xf32> to vector<2x32xf32>
    %543 = vector.extract_strided_slice %541 {offsets = [0, 1], sizes = [2, 31], strides = [1, 1]} : vector<2x32xf32> to vector<2x31xf32>
    %544 = vector.extract_strided_slice %541 {offsets = [0, 0], sizes = [2, 1], strides = [1, 1]} : vector<2x32xf32> to vector<2x1xf32>
    %545 = tpu.concatenate %543, %544 in 1 : vector<2x31xf32>, vector<2x1xf32> -> vector<2x32xf32>
    %546 = vector.extract_strided_slice %4 {offsets = [0, 0], sizes = [1, 32], strides = [1, 1]} : vector<2x32xf32> to vector<1x32xf32>
    %547 = vector.broadcast %546 : vector<1x32xf32> to vector<2x32xf32>
    %548 = arith.mulf %545, %547 : vector<2x32xf32>
    %549 = arith.addf %542, %548 : vector<2x32xf32>
    %550 = vector.extract_strided_slice %541 {offsets = [0, 2], sizes = [2, 30], strides = [1, 1]} : vector<2x32xf32> to vector<2x30xf32>
    %551 = vector.extract_strided_slice %541 {offsets = [0, 0], sizes = [2, 2], strides = [1, 1]} : vector<2x32xf32> to vector<2x2xf32>
    %552 = tpu.concatenate %550, %551 in 1 : vector<2x30xf32>, vector<2x2xf32> -> vector<2x32xf32>
    %553 = vector.extract_strided_slice %4 {offsets = [1, 0], sizes = [1, 32], strides = [1, 1]} : vector<2x32xf32> to vector<1x32xf32>
    %554 = vector.broadcast %553 : vector<1x32xf32> to vector<2x32xf32>
    %555 = arith.mulf %552, %554 : vector<2x32xf32>
    %556 = arith.addf %549, %555 : vector<2x32xf32>
    %cst_44 = arith.constant 2.000000e+00 : f32
    %557 = vector.broadcast %cst_44 : f32 to vector<2x32xf32>
    %558 = arith.mulf %557, %556 : vector<2x32xf32>
    %559 = math.tanh %558 : vector<2x32xf32>
    %560 = vector.extract_strided_slice %3 {offsets = [60, 0], sizes = [2, 32], strides = [1, 1]} : vector<128x32xf32> to vector<2x32xf32>
    %561 = vector.extract_strided_slice %559 {offsets = [0, 1], sizes = [2, 31], strides = [1, 1]} : vector<2x32xf32> to vector<2x31xf32>
    %562 = vector.extract_strided_slice %559 {offsets = [0, 0], sizes = [2, 1], strides = [1, 1]} : vector<2x32xf32> to vector<2x1xf32>
    %563 = tpu.concatenate %561, %562 in 1 : vector<2x31xf32>, vector<2x1xf32> -> vector<2x32xf32>
    %564 = vector.extract_strided_slice %4 {offsets = [0, 0], sizes = [1, 32], strides = [1, 1]} : vector<2x32xf32> to vector<1x32xf32>
    %565 = vector.broadcast %564 : vector<1x32xf32> to vector<2x32xf32>
    %566 = arith.mulf %563, %565 : vector<2x32xf32>
    %567 = arith.addf %560, %566 : vector<2x32xf32>
    %568 = vector.extract_strided_slice %559 {offsets = [0, 2], sizes = [2, 30], strides = [1, 1]} : vector<2x32xf32> to vector<2x30xf32>
    %569 = vector.extract_strided_slice %559 {offsets = [0, 0], sizes = [2, 2], strides = [1, 1]} : vector<2x32xf32> to vector<2x2xf32>
    %570 = tpu.concatenate %568, %569 in 1 : vector<2x30xf32>, vector<2x2xf32> -> vector<2x32xf32>
    %571 = vector.extract_strided_slice %4 {offsets = [1, 0], sizes = [1, 32], strides = [1, 1]} : vector<2x32xf32> to vector<1x32xf32>
    %572 = vector.broadcast %571 : vector<1x32xf32> to vector<2x32xf32>
    %573 = arith.mulf %570, %572 : vector<2x32xf32>
    %574 = arith.addf %567, %573 : vector<2x32xf32>
    %cst_45 = arith.constant 2.000000e+00 : f32
    %575 = vector.broadcast %cst_45 : f32 to vector<2x32xf32>
    %576 = arith.mulf %575, %574 : vector<2x32xf32>
    %577 = math.tanh %576 : vector<2x32xf32>
    %578 = vector.extract_strided_slice %3 {offsets = [62, 0], sizes = [2, 32], strides = [1, 1]} : vector<128x32xf32> to vector<2x32xf32>
    %579 = vector.extract_strided_slice %577 {offsets = [0, 1], sizes = [2, 31], strides = [1, 1]} : vector<2x32xf32> to vector<2x31xf32>
    %580 = vector.extract_strided_slice %577 {offsets = [0, 0], sizes = [2, 1], strides = [1, 1]} : vector<2x32xf32> to vector<2x1xf32>
    %581 = tpu.concatenate %579, %580 in 1 : vector<2x31xf32>, vector<2x1xf32> -> vector<2x32xf32>
    %582 = vector.extract_strided_slice %4 {offsets = [0, 0], sizes = [1, 32], strides = [1, 1]} : vector<2x32xf32> to vector<1x32xf32>
    %583 = vector.broadcast %582 : vector<1x32xf32> to vector<2x32xf32>
    %584 = arith.mulf %581, %583 : vector<2x32xf32>
    %585 = arith.addf %578, %584 : vector<2x32xf32>
    %586 = vector.extract_strided_slice %577 {offsets = [0, 2], sizes = [2, 30], strides = [1, 1]} : vector<2x32xf32> to vector<2x30xf32>
    %587 = vector.extract_strided_slice %577 {offsets = [0, 0], sizes = [2, 2], strides = [1, 1]} : vector<2x32xf32> to vector<2x2xf32>
    %588 = tpu.concatenate %586, %587 in 1 : vector<2x30xf32>, vector<2x2xf32> -> vector<2x32xf32>
    %589 = vector.extract_strided_slice %4 {offsets = [1, 0], sizes = [1, 32], strides = [1, 1]} : vector<2x32xf32> to vector<1x32xf32>
    %590 = vector.broadcast %589 : vector<1x32xf32> to vector<2x32xf32>
    %591 = arith.mulf %588, %590 : vector<2x32xf32>
    %592 = arith.addf %585, %591 : vector<2x32xf32>
    %cst_46 = arith.constant 2.000000e+00 : f32
    %593 = vector.broadcast %cst_46 : f32 to vector<2x32xf32>
    %594 = arith.mulf %593, %592 : vector<2x32xf32>
    %595 = math.tanh %594 : vector<2x32xf32>
    %596 = tpu.concatenate %541, %559, %577, %595 in 0 : vector<2x32xf32>, vector<2x32xf32>, vector<2x32xf32>, vector<2x32xf32> -> vector<8x32xf32>
    %c56 = arith.constant 56 : index
    %c0_47 = arith.constant 0 : index
    %597 = vector.load %arg12[%c56, %c0_47] : memref<128x32xf32, #tpu.memory_space<vmem>>, vector<8x32xf32>
    tpu.vector_store %arg12[%c56, %c0_47], %596 {strides = array<i32>} : memref<128x32xf32, #tpu.memory_space<vmem>>, vector<8x32xf32>,
    %598 = vector.extract_strided_slice %3 {offsets = [64, 0], sizes = [2, 32], strides = [1, 1]} : vector<128x32xf32> to vector<2x32xf32>
    %599 = vector.extract_strided_slice %595 {offsets = [0, 1], sizes = [2, 31], strides = [1, 1]} : vector<2x32xf32> to vector<2x31xf32>
    %600 = vector.extract_strided_slice %595 {offsets = [0, 0], sizes = [2, 1], strides = [1, 1]} : vector<2x32xf32> to vector<2x1xf32>
    %601 = tpu.concatenate %599, %600 in 1 : vector<2x31xf32>, vector<2x1xf32> -> vector<2x32xf32>
    %602 = vector.extract_strided_slice %4 {offsets = [0, 0], sizes = [1, 32], strides = [1, 1]} : vector<2x32xf32> to vector<1x32xf32>
    %603 = vector.broadcast %602 : vector<1x32xf32> to vector<2x32xf32>
    %604 = arith.mulf %601, %603 : vector<2x32xf32>
    %605 = arith.addf %598, %604 : vector<2x32xf32>
    %606 = vector.extract_strided_slice %595 {offsets = [0, 2], sizes = [2, 30], strides = [1, 1]} : vector<2x32xf32> to vector<2x30xf32>
    %607 = vector.extract_strided_slice %595 {offsets = [0, 0], sizes = [2, 2], strides = [1, 1]} : vector<2x32xf32> to vector<2x2xf32>
    %608 = tpu.concatenate %606, %607 in 1 : vector<2x30xf32>, vector<2x2xf32> -> vector<2x32xf32>
    %609 = vector.extract_strided_slice %4 {offsets = [1, 0], sizes = [1, 32], strides = [1, 1]} : vector<2x32xf32> to vector<1x32xf32>
    %610 = vector.broadcast %609 : vector<1x32xf32> to vector<2x32xf32>
    %611 = arith.mulf %608, %610 : vector<2x32xf32>
    %612 = arith.addf %605, %611 : vector<2x32xf32>
    %cst_48 = arith.constant 2.000000e+00 : f32
    %613 = vector.broadcast %cst_48 : f32 to vector<2x32xf32>
    %614 = arith.mulf %613, %612 : vector<2x32xf32>
    %615 = math.tanh %614 : vector<2x32xf32>
    %616 = vector.extract_strided_slice %3 {offsets = [66, 0], sizes = [2, 32], strides = [1, 1]} : vector<128x32xf32> to vector<2x32xf32>
    %617 = vector.extract_strided_slice %615 {offsets = [0, 1], sizes = [2, 31], strides = [1, 1]} : vector<2x32xf32> to vector<2x31xf32>
    %618 = vector.extract_strided_slice %615 {offsets = [0, 0], sizes = [2, 1], strides = [1, 1]} : vector<2x32xf32> to vector<2x1xf32>
    %619 = tpu.concatenate %617, %618 in 1 : vector<2x31xf32>, vector<2x1xf32> -> vector<2x32xf32>
    %620 = vector.extract_strided_slice %4 {offsets = [0, 0], sizes = [1, 32], strides = [1, 1]} : vector<2x32xf32> to vector<1x32xf32>
    %621 = vector.broadcast %620 : vector<1x32xf32> to vector<2x32xf32>
    %622 = arith.mulf %619, %621 : vector<2x32xf32>
    %623 = arith.addf %616, %622 : vector<2x32xf32>
    %624 = vector.extract_strided_slice %615 {offsets = [0, 2], sizes = [2, 30], strides = [1, 1]} : vector<2x32xf32> to vector<2x30xf32>
    %625 = vector.extract_strided_slice %615 {offsets = [0, 0], sizes = [2, 2], strides = [1, 1]} : vector<2x32xf32> to vector<2x2xf32>
    %626 = tpu.concatenate %624, %625 in 1 : vector<2x30xf32>, vector<2x2xf32> -> vector<2x32xf32>
    %627 = vector.extract_strided_slice %4 {offsets = [1, 0], sizes = [1, 32], strides = [1, 1]} : vector<2x32xf32> to vector<1x32xf32>
    %628 = vector.broadcast %627 : vector<1x32xf32> to vector<2x32xf32>
    %629 = arith.mulf %626, %628 : vector<2x32xf32>
    %630 = arith.addf %623, %629 : vector<2x32xf32>
    %cst_49 = arith.constant 2.000000e+00 : f32
    %631 = vector.broadcast %cst_49 : f32 to vector<2x32xf32>
    %632 = arith.mulf %631, %630 : vector<2x32xf32>
    %633 = math.tanh %632 : vector<2x32xf32>
    %634 = vector.extract_strided_slice %3 {offsets = [68, 0], sizes = [2, 32], strides = [1, 1]} : vector<128x32xf32> to vector<2x32xf32>
    %635 = vector.extract_strided_slice %633 {offsets = [0, 1], sizes = [2, 31], strides = [1, 1]} : vector<2x32xf32> to vector<2x31xf32>
    %636 = vector.extract_strided_slice %633 {offsets = [0, 0], sizes = [2, 1], strides = [1, 1]} : vector<2x32xf32> to vector<2x1xf32>
    %637 = tpu.concatenate %635, %636 in 1 : vector<2x31xf32>, vector<2x1xf32> -> vector<2x32xf32>
    %638 = vector.extract_strided_slice %4 {offsets = [0, 0], sizes = [1, 32], strides = [1, 1]} : vector<2x32xf32> to vector<1x32xf32>
    %639 = vector.broadcast %638 : vector<1x32xf32> to vector<2x32xf32>
    %640 = arith.mulf %637, %639 : vector<2x32xf32>
    %641 = arith.addf %634, %640 : vector<2x32xf32>
    %642 = vector.extract_strided_slice %633 {offsets = [0, 2], sizes = [2, 30], strides = [1, 1]} : vector<2x32xf32> to vector<2x30xf32>
    %643 = vector.extract_strided_slice %633 {offsets = [0, 0], sizes = [2, 2], strides = [1, 1]} : vector<2x32xf32> to vector<2x2xf32>
    %644 = tpu.concatenate %642, %643 in 1 : vector<2x30xf32>, vector<2x2xf32> -> vector<2x32xf32>
    %645 = vector.extract_strided_slice %4 {offsets = [1, 0], sizes = [1, 32], strides = [1, 1]} : vector<2x32xf32> to vector<1x32xf32>
    %646 = vector.broadcast %645 : vector<1x32xf32> to vector<2x32xf32>
    %647 = arith.mulf %644, %646 : vector<2x32xf32>
    %648 = arith.addf %641, %647 : vector<2x32xf32>
    %cst_50 = arith.constant 2.000000e+00 : f32
    %649 = vector.broadcast %cst_50 : f32 to vector<2x32xf32>
    %650 = arith.mulf %649, %648 : vector<2x32xf32>
    %651 = math.tanh %650 : vector<2x32xf32>
    %652 = vector.extract_strided_slice %3 {offsets = [70, 0], sizes = [2, 32], strides = [1, 1]} : vector<128x32xf32> to vector<2x32xf32>
    %653 = vector.extract_strided_slice %651 {offsets = [0, 1], sizes = [2, 31], strides = [1, 1]} : vector<2x32xf32> to vector<2x31xf32>
    %654 = vector.extract_strided_slice %651 {offsets = [0, 0], sizes = [2, 1], strides = [1, 1]} : vector<2x32xf32> to vector<2x1xf32>
    %655 = tpu.concatenate %653, %654 in 1 : vector<2x31xf32>, vector<2x1xf32> -> vector<2x32xf32>
    %656 = vector.extract_strided_slice %4 {offsets = [0, 0], sizes = [1, 32], strides = [1, 1]} : vector<2x32xf32> to vector<1x32xf32>
    %657 = vector.broadcast %656 : vector<1x32xf32> to vector<2x32xf32>
    %658 = arith.mulf %655, %657 : vector<2x32xf32>
    %659 = arith.addf %652, %658 : vector<2x32xf32>
    %660 = vector.extract_strided_slice %651 {offsets = [0, 2], sizes = [2, 30], strides = [1, 1]} : vector<2x32xf32> to vector<2x30xf32>
    %661 = vector.extract_strided_slice %651 {offsets = [0, 0], sizes = [2, 2], strides = [1, 1]} : vector<2x32xf32> to vector<2x2xf32>
    %662 = tpu.concatenate %660, %661 in 1 : vector<2x30xf32>, vector<2x2xf32> -> vector<2x32xf32>
    %663 = vector.extract_strided_slice %4 {offsets = [1, 0], sizes = [1, 32], strides = [1, 1]} : vector<2x32xf32> to vector<1x32xf32>
    %664 = vector.broadcast %663 : vector<1x32xf32> to vector<2x32xf32>
    %665 = arith.mulf %662, %664 : vector<2x32xf32>
    %666 = arith.addf %659, %665 : vector<2x32xf32>
    %cst_51 = arith.constant 2.000000e+00 : f32
    %667 = vector.broadcast %cst_51 : f32 to vector<2x32xf32>
    %668 = arith.mulf %667, %666 : vector<2x32xf32>
    %669 = math.tanh %668 : vector<2x32xf32>
    %670 = tpu.concatenate %615, %633, %651, %669 in 0 : vector<2x32xf32>, vector<2x32xf32>, vector<2x32xf32>, vector<2x32xf32> -> vector<8x32xf32>
    %c64 = arith.constant 64 : index
    %c0_52 = arith.constant 0 : index
    %671 = vector.load %arg12[%c64, %c0_52] : memref<128x32xf32, #tpu.memory_space<vmem>>, vector<8x32xf32>
    tpu.vector_store %arg12[%c64, %c0_52], %670 {strides = array<i32>} : memref<128x32xf32, #tpu.memory_space<vmem>>, vector<8x32xf32>,
    %672 = vector.extract_strided_slice %3 {offsets = [72, 0], sizes = [2, 32], strides = [1, 1]} : vector<128x32xf32> to vector<2x32xf32>
    %673 = vector.extract_strided_slice %669 {offsets = [0, 1], sizes = [2, 31], strides = [1, 1]} : vector<2x32xf32> to vector<2x31xf32>
    %674 = vector.extract_strided_slice %669 {offsets = [0, 0], sizes = [2, 1], strides = [1, 1]} : vector<2x32xf32> to vector<2x1xf32>
    %675 = tpu.concatenate %673, %674 in 1 : vector<2x31xf32>, vector<2x1xf32> -> vector<2x32xf32>
    %676 = vector.extract_strided_slice %4 {offsets = [0, 0], sizes = [1, 32], strides = [1, 1]} : vector<2x32xf32> to vector<1x32xf32>
    %677 = vector.broadcast %676 : vector<1x32xf32> to vector<2x32xf32>
    %678 = arith.mulf %675, %677 : vector<2x32xf32>
    %679 = arith.addf %672, %678 : vector<2x32xf32>
    %680 = vector.extract_strided_slice %669 {offsets = [0, 2], sizes = [2, 30], strides = [1, 1]} : vector<2x32xf32> to vector<2x30xf32>
    %681 = vector.extract_strided_slice %669 {offsets = [0, 0], sizes = [2, 2], strides = [1, 1]} : vector<2x32xf32> to vector<2x2xf32>
    %682 = tpu.concatenate %680, %681 in 1 : vector<2x30xf32>, vector<2x2xf32> -> vector<2x32xf32>
    %683 = vector.extract_strided_slice %4 {offsets = [1, 0], sizes = [1, 32], strides = [1, 1]} : vector<2x32xf32> to vector<1x32xf32>
    %684 = vector.broadcast %683 : vector<1x32xf32> to vector<2x32xf32>
    %685 = arith.mulf %682, %684 : vector<2x32xf32>
    %686 = arith.addf %679, %685 : vector<2x32xf32>
    %cst_53 = arith.constant 2.000000e+00 : f32
    %687 = vector.broadcast %cst_53 : f32 to vector<2x32xf32>
    %688 = arith.mulf %687, %686 : vector<2x32xf32>
    %689 = math.tanh %688 : vector<2x32xf32>
    %690 = vector.extract_strided_slice %3 {offsets = [74, 0], sizes = [2, 32], strides = [1, 1]} : vector<128x32xf32> to vector<2x32xf32>
    %691 = vector.extract_strided_slice %689 {offsets = [0, 1], sizes = [2, 31], strides = [1, 1]} : vector<2x32xf32> to vector<2x31xf32>
    %692 = vector.extract_strided_slice %689 {offsets = [0, 0], sizes = [2, 1], strides = [1, 1]} : vector<2x32xf32> to vector<2x1xf32>
    %693 = tpu.concatenate %691, %692 in 1 : vector<2x31xf32>, vector<2x1xf32> -> vector<2x32xf32>
    %694 = vector.extract_strided_slice %4 {offsets = [0, 0], sizes = [1, 32], strides = [1, 1]} : vector<2x32xf32> to vector<1x32xf32>
    %695 = vector.broadcast %694 : vector<1x32xf32> to vector<2x32xf32>
    %696 = arith.mulf %693, %695 : vector<2x32xf32>
    %697 = arith.addf %690, %696 : vector<2x32xf32>
    %698 = vector.extract_strided_slice %689 {offsets = [0, 2], sizes = [2, 30], strides = [1, 1]} : vector<2x32xf32> to vector<2x30xf32>
    %699 = vector.extract_strided_slice %689 {offsets = [0, 0], sizes = [2, 2], strides = [1, 1]} : vector<2x32xf32> to vector<2x2xf32>
    %700 = tpu.concatenate %698, %699 in 1 : vector<2x30xf32>, vector<2x2xf32> -> vector<2x32xf32>
    %701 = vector.extract_strided_slice %4 {offsets = [1, 0], sizes = [1, 32], strides = [1, 1]} : vector<2x32xf32> to vector<1x32xf32>
    %702 = vector.broadcast %701 : vector<1x32xf32> to vector<2x32xf32>
    %703 = arith.mulf %700, %702 : vector<2x32xf32>
    %704 = arith.addf %697, %703 : vector<2x32xf32>
    %cst_54 = arith.constant 2.000000e+00 : f32
    %705 = vector.broadcast %cst_54 : f32 to vector<2x32xf32>
    %706 = arith.mulf %705, %704 : vector<2x32xf32>
    %707 = math.tanh %706 : vector<2x32xf32>
    %708 = vector.extract_strided_slice %3 {offsets = [76, 0], sizes = [2, 32], strides = [1, 1]} : vector<128x32xf32> to vector<2x32xf32>
    %709 = vector.extract_strided_slice %707 {offsets = [0, 1], sizes = [2, 31], strides = [1, 1]} : vector<2x32xf32> to vector<2x31xf32>
    %710 = vector.extract_strided_slice %707 {offsets = [0, 0], sizes = [2, 1], strides = [1, 1]} : vector<2x32xf32> to vector<2x1xf32>
    %711 = tpu.concatenate %709, %710 in 1 : vector<2x31xf32>, vector<2x1xf32> -> vector<2x32xf32>
    %712 = vector.extract_strided_slice %4 {offsets = [0, 0], sizes = [1, 32], strides = [1, 1]} : vector<2x32xf32> to vector<1x32xf32>
    %713 = vector.broadcast %712 : vector<1x32xf32> to vector<2x32xf32>
    %714 = arith.mulf %711, %713 : vector<2x32xf32>
    %715 = arith.addf %708, %714 : vector<2x32xf32>
    %716 = vector.extract_strided_slice %707 {offsets = [0, 2], sizes = [2, 30], strides = [1, 1]} : vector<2x32xf32> to vector<2x30xf32>
    %717 = vector.extract_strided_slice %707 {offsets = [0, 0], sizes = [2, 2], strides = [1, 1]} : vector<2x32xf32> to vector<2x2xf32>
    %718 = tpu.concatenate %716, %717 in 1 : vector<2x30xf32>, vector<2x2xf32> -> vector<2x32xf32>
    %719 = vector.extract_strided_slice %4 {offsets = [1, 0], sizes = [1, 32], strides = [1, 1]} : vector<2x32xf32> to vector<1x32xf32>
    %720 = vector.broadcast %719 : vector<1x32xf32> to vector<2x32xf32>
    %721 = arith.mulf %718, %720 : vector<2x32xf32>
    %722 = arith.addf %715, %721 : vector<2x32xf32>
    %cst_55 = arith.constant 2.000000e+00 : f32
    %723 = vector.broadcast %cst_55 : f32 to vector<2x32xf32>
    %724 = arith.mulf %723, %722 : vector<2x32xf32>
    %725 = math.tanh %724 : vector<2x32xf32>
    %726 = vector.extract_strided_slice %3 {offsets = [78, 0], sizes = [2, 32], strides = [1, 1]} : vector<128x32xf32> to vector<2x32xf32>
    %727 = vector.extract_strided_slice %725 {offsets = [0, 1], sizes = [2, 31], strides = [1, 1]} : vector<2x32xf32> to vector<2x31xf32>
    %728 = vector.extract_strided_slice %725 {offsets = [0, 0], sizes = [2, 1], strides = [1, 1]} : vector<2x32xf32> to vector<2x1xf32>
    %729 = tpu.concatenate %727, %728 in 1 : vector<2x31xf32>, vector<2x1xf32> -> vector<2x32xf32>
    %730 = vector.extract_strided_slice %4 {offsets = [0, 0], sizes = [1, 32], strides = [1, 1]} : vector<2x32xf32> to vector<1x32xf32>
    %731 = vector.broadcast %730 : vector<1x32xf32> to vector<2x32xf32>
    %732 = arith.mulf %729, %731 : vector<2x32xf32>
    %733 = arith.addf %726, %732 : vector<2x32xf32>
    %734 = vector.extract_strided_slice %725 {offsets = [0, 2], sizes = [2, 30], strides = [1, 1]} : vector<2x32xf32> to vector<2x30xf32>
    %735 = vector.extract_strided_slice %725 {offsets = [0, 0], sizes = [2, 2], strides = [1, 1]} : vector<2x32xf32> to vector<2x2xf32>
    %736 = tpu.concatenate %734, %735 in 1 : vector<2x30xf32>, vector<2x2xf32> -> vector<2x32xf32>
    %737 = vector.extract_strided_slice %4 {offsets = [1, 0], sizes = [1, 32], strides = [1, 1]} : vector<2x32xf32> to vector<1x32xf32>
    %738 = vector.broadcast %737 : vector<1x32xf32> to vector<2x32xf32>
    %739 = arith.mulf %736, %738 : vector<2x32xf32>
    %740 = arith.addf %733, %739 : vector<2x32xf32>
    %cst_56 = arith.constant 2.000000e+00 : f32
    %741 = vector.broadcast %cst_56 : f32 to vector<2x32xf32>
    %742 = arith.mulf %741, %740 : vector<2x32xf32>
    %743 = math.tanh %742 : vector<2x32xf32>
    %744 = tpu.concatenate %689, %707, %725, %743 in 0 : vector<2x32xf32>, vector<2x32xf32>, vector<2x32xf32>, vector<2x32xf32> -> vector<8x32xf32>
    %c72 = arith.constant 72 : index
    %c0_57 = arith.constant 0 : index
    %745 = vector.load %arg12[%c72, %c0_57] : memref<128x32xf32, #tpu.memory_space<vmem>>, vector<8x32xf32>
    tpu.vector_store %arg12[%c72, %c0_57], %744 {strides = array<i32>} : memref<128x32xf32, #tpu.memory_space<vmem>>, vector<8x32xf32>,
    %746 = vector.extract_strided_slice %3 {offsets = [80, 0], sizes = [2, 32], strides = [1, 1]} : vector<128x32xf32> to vector<2x32xf32>
    %747 = vector.extract_strided_slice %743 {offsets = [0, 1], sizes = [2, 31], strides = [1, 1]} : vector<2x32xf32> to vector<2x31xf32>
    %748 = vector.extract_strided_slice %743 {offsets = [0, 0], sizes = [2, 1], strides = [1, 1]} : vector<2x32xf32> to vector<2x1xf32>
    %749 = tpu.concatenate %747, %748 in 1 : vector<2x31xf32>, vector<2x1xf32> -> vector<2x32xf32>
    %750 = vector.extract_strided_slice %4 {offsets = [0, 0], sizes = [1, 32], strides = [1, 1]} : vector<2x32xf32> to vector<1x32xf32>
    %751 = vector.broadcast %750 : vector<1x32xf32> to vector<2x32xf32>
    %752 = arith.mulf %749, %751 : vector<2x32xf32>
    %753 = arith.addf %746, %752 : vector<2x32xf32>
    %754 = vector.extract_strided_slice %743 {offsets = [0, 2], sizes = [2, 30], strides = [1, 1]} : vector<2x32xf32> to vector<2x30xf32>
    %755 = vector.extract_strided_slice %743 {offsets = [0, 0], sizes = [2, 2], strides = [1, 1]} : vector<2x32xf32> to vector<2x2xf32>
    %756 = tpu.concatenate %754, %755 in 1 : vector<2x30xf32>, vector<2x2xf32> -> vector<2x32xf32>
    %757 = vector.extract_strided_slice %4 {offsets = [1, 0], sizes = [1, 32], strides = [1, 1]} : vector<2x32xf32> to vector<1x32xf32>
    %758 = vector.broadcast %757 : vector<1x32xf32> to vector<2x32xf32>
    %759 = arith.mulf %756, %758 : vector<2x32xf32>
    %760 = arith.addf %753, %759 : vector<2x32xf32>
    %cst_58 = arith.constant 2.000000e+00 : f32
    %761 = vector.broadcast %cst_58 : f32 to vector<2x32xf32>
    %762 = arith.mulf %761, %760 : vector<2x32xf32>
    %763 = math.tanh %762 : vector<2x32xf32>
    %764 = vector.extract_strided_slice %3 {offsets = [82, 0], sizes = [2, 32], strides = [1, 1]} : vector<128x32xf32> to vector<2x32xf32>
    %765 = vector.extract_strided_slice %763 {offsets = [0, 1], sizes = [2, 31], strides = [1, 1]} : vector<2x32xf32> to vector<2x31xf32>
    %766 = vector.extract_strided_slice %763 {offsets = [0, 0], sizes = [2, 1], strides = [1, 1]} : vector<2x32xf32> to vector<2x1xf32>
    %767 = tpu.concatenate %765, %766 in 1 : vector<2x31xf32>, vector<2x1xf32> -> vector<2x32xf32>
    %768 = vector.extract_strided_slice %4 {offsets = [0, 0], sizes = [1, 32], strides = [1, 1]} : vector<2x32xf32> to vector<1x32xf32>
    %769 = vector.broadcast %768 : vector<1x32xf32> to vector<2x32xf32>
    %770 = arith.mulf %767, %769 : vector<2x32xf32>
    %771 = arith.addf %764, %770 : vector<2x32xf32>
    %772 = vector.extract_strided_slice %763 {offsets = [0, 2], sizes = [2, 30], strides = [1, 1]} : vector<2x32xf32> to vector<2x30xf32>
    %773 = vector.extract_strided_slice %763 {offsets = [0, 0], sizes = [2, 2], strides = [1, 1]} : vector<2x32xf32> to vector<2x2xf32>
    %774 = tpu.concatenate %772, %773 in 1 : vector<2x30xf32>, vector<2x2xf32> -> vector<2x32xf32>
    %775 = vector.extract_strided_slice %4 {offsets = [1, 0], sizes = [1, 32], strides = [1, 1]} : vector<2x32xf32> to vector<1x32xf32>
    %776 = vector.broadcast %775 : vector<1x32xf32> to vector<2x32xf32>
    %777 = arith.mulf %774, %776 : vector<2x32xf32>
    %778 = arith.addf %771, %777 : vector<2x32xf32>
    %cst_59 = arith.constant 2.000000e+00 : f32
    %779 = vector.broadcast %cst_59 : f32 to vector<2x32xf32>
    %780 = arith.mulf %779, %778 : vector<2x32xf32>
    %781 = math.tanh %780 : vector<2x32xf32>
    %782 = vector.extract_strided_slice %3 {offsets = [84, 0], sizes = [2, 32], strides = [1, 1]} : vector<128x32xf32> to vector<2x32xf32>
    %783 = vector.extract_strided_slice %781 {offsets = [0, 1], sizes = [2, 31], strides = [1, 1]} : vector<2x32xf32> to vector<2x31xf32>
    %784 = vector.extract_strided_slice %781 {offsets = [0, 0], sizes = [2, 1], strides = [1, 1]} : vector<2x32xf32> to vector<2x1xf32>
    %785 = tpu.concatenate %783, %784 in 1 : vector<2x31xf32>, vector<2x1xf32> -> vector<2x32xf32>
    %786 = vector.extract_strided_slice %4 {offsets = [0, 0], sizes = [1, 32], strides = [1, 1]} : vector<2x32xf32> to vector<1x32xf32>
    %787 = vector.broadcast %786 : vector<1x32xf32> to vector<2x32xf32>
    %788 = arith.mulf %785, %787 : vector<2x32xf32>
    %789 = arith.addf %782, %788 : vector<2x32xf32>
    %790 = vector.extract_strided_slice %781 {offsets = [0, 2], sizes = [2, 30], strides = [1, 1]} : vector<2x32xf32> to vector<2x30xf32>
    %791 = vector.extract_strided_slice %781 {offsets = [0, 0], sizes = [2, 2], strides = [1, 1]} : vector<2x32xf32> to vector<2x2xf32>
    %792 = tpu.concatenate %790, %791 in 1 : vector<2x30xf32>, vector<2x2xf32> -> vector<2x32xf32>
    %793 = vector.extract_strided_slice %4 {offsets = [1, 0], sizes = [1, 32], strides = [1, 1]} : vector<2x32xf32> to vector<1x32xf32>
    %794 = vector.broadcast %793 : vector<1x32xf32> to vector<2x32xf32>
    %795 = arith.mulf %792, %794 : vector<2x32xf32>
    %796 = arith.addf %789, %795 : vector<2x32xf32>
    %cst_60 = arith.constant 2.000000e+00 : f32
    %797 = vector.broadcast %cst_60 : f32 to vector<2x32xf32>
    %798 = arith.mulf %797, %796 : vector<2x32xf32>
    %799 = math.tanh %798 : vector<2x32xf32>
    %800 = vector.extract_strided_slice %3 {offsets = [86, 0], sizes = [2, 32], strides = [1, 1]} : vector<128x32xf32> to vector<2x32xf32>
    %801 = vector.extract_strided_slice %799 {offsets = [0, 1], sizes = [2, 31], strides = [1, 1]} : vector<2x32xf32> to vector<2x31xf32>
    %802 = vector.extract_strided_slice %799 {offsets = [0, 0], sizes = [2, 1], strides = [1, 1]} : vector<2x32xf32> to vector<2x1xf32>
    %803 = tpu.concatenate %801, %802 in 1 : vector<2x31xf32>, vector<2x1xf32> -> vector<2x32xf32>
    %804 = vector.extract_strided_slice %4 {offsets = [0, 0], sizes = [1, 32], strides = [1, 1]} : vector<2x32xf32> to vector<1x32xf32>
    %805 = vector.broadcast %804 : vector<1x32xf32> to vector<2x32xf32>
    %806 = arith.mulf %803, %805 : vector<2x32xf32>
    %807 = arith.addf %800, %806 : vector<2x32xf32>
    %808 = vector.extract_strided_slice %799 {offsets = [0, 2], sizes = [2, 30], strides = [1, 1]} : vector<2x32xf32> to vector<2x30xf32>
    %809 = vector.extract_strided_slice %799 {offsets = [0, 0], sizes = [2, 2], strides = [1, 1]} : vector<2x32xf32> to vector<2x2xf32>
    %810 = tpu.concatenate %808, %809 in 1 : vector<2x30xf32>, vector<2x2xf32> -> vector<2x32xf32>
    %811 = vector.extract_strided_slice %4 {offsets = [1, 0], sizes = [1, 32], strides = [1, 1]} : vector<2x32xf32> to vector<1x32xf32>
    %812 = vector.broadcast %811 : vector<1x32xf32> to vector<2x32xf32>
    %813 = arith.mulf %810, %812 : vector<2x32xf32>
    %814 = arith.addf %807, %813 : vector<2x32xf32>
    %cst_61 = arith.constant 2.000000e+00 : f32
    %815 = vector.broadcast %cst_61 : f32 to vector<2x32xf32>
    %816 = arith.mulf %815, %814 : vector<2x32xf32>
    %817 = math.tanh %816 : vector<2x32xf32>
    %818 = tpu.concatenate %763, %781, %799, %817 in 0 : vector<2x32xf32>, vector<2x32xf32>, vector<2x32xf32>, vector<2x32xf32> -> vector<8x32xf32>
    %c80 = arith.constant 80 : index
    %c0_62 = arith.constant 0 : index
    %819 = vector.load %arg12[%c80, %c0_62] : memref<128x32xf32, #tpu.memory_space<vmem>>, vector<8x32xf32>
    tpu.vector_store %arg12[%c80, %c0_62], %818 {strides = array<i32>} : memref<128x32xf32, #tpu.memory_space<vmem>>, vector<8x32xf32>,
    %820 = vector.extract_strided_slice %3 {offsets = [88, 0], sizes = [2, 32], strides = [1, 1]} : vector<128x32xf32> to vector<2x32xf32>
    %821 = vector.extract_strided_slice %817 {offsets = [0, 1], sizes = [2, 31], strides = [1, 1]} : vector<2x32xf32> to vector<2x31xf32>
    %822 = vector.extract_strided_slice %817 {offsets = [0, 0], sizes = [2, 1], strides = [1, 1]} : vector<2x32xf32> to vector<2x1xf32>
    %823 = tpu.concatenate %821, %822 in 1 : vector<2x31xf32>, vector<2x1xf32> -> vector<2x32xf32>
    %824 = vector.extract_strided_slice %4 {offsets = [0, 0], sizes = [1, 32], strides = [1, 1]} : vector<2x32xf32> to vector<1x32xf32>
    %825 = vector.broadcast %824 : vector<1x32xf32> to vector<2x32xf32>
    %826 = arith.mulf %823, %825 : vector<2x32xf32>
    %827 = arith.addf %820, %826 : vector<2x32xf32>
    %828 = vector.extract_strided_slice %817 {offsets = [0, 2], sizes = [2, 30], strides = [1, 1]} : vector<2x32xf32> to vector<2x30xf32>
    %829 = vector.extract_strided_slice %817 {offsets = [0, 0], sizes = [2, 2], strides = [1, 1]} : vector<2x32xf32> to vector<2x2xf32>
    %830 = tpu.concatenate %828, %829 in 1 : vector<2x30xf32>, vector<2x2xf32> -> vector<2x32xf32>
    %831 = vector.extract_strided_slice %4 {offsets = [1, 0], sizes = [1, 32], strides = [1, 1]} : vector<2x32xf32> to vector<1x32xf32>
    %832 = vector.broadcast %831 : vector<1x32xf32> to vector<2x32xf32>
    %833 = arith.mulf %830, %832 : vector<2x32xf32>
    %834 = arith.addf %827, %833 : vector<2x32xf32>
    %cst_63 = arith.constant 2.000000e+00 : f32
    %835 = vector.broadcast %cst_63 : f32 to vector<2x32xf32>
    %836 = arith.mulf %835, %834 : vector<2x32xf32>
    %837 = math.tanh %836 : vector<2x32xf32>
    %838 = vector.extract_strided_slice %3 {offsets = [90, 0], sizes = [2, 32], strides = [1, 1]} : vector<128x32xf32> to vector<2x32xf32>
    %839 = vector.extract_strided_slice %837 {offsets = [0, 1], sizes = [2, 31], strides = [1, 1]} : vector<2x32xf32> to vector<2x31xf32>
    %840 = vector.extract_strided_slice %837 {offsets = [0, 0], sizes = [2, 1], strides = [1, 1]} : vector<2x32xf32> to vector<2x1xf32>
    %841 = tpu.concatenate %839, %840 in 1 : vector<2x31xf32>, vector<2x1xf32> -> vector<2x32xf32>
    %842 = vector.extract_strided_slice %4 {offsets = [0, 0], sizes = [1, 32], strides = [1, 1]} : vector<2x32xf32> to vector<1x32xf32>
    %843 = vector.broadcast %842 : vector<1x32xf32> to vector<2x32xf32>
    %844 = arith.mulf %841, %843 : vector<2x32xf32>
    %845 = arith.addf %838, %844 : vector<2x32xf32>
    %846 = vector.extract_strided_slice %837 {offsets = [0, 2], sizes = [2, 30], strides = [1, 1]} : vector<2x32xf32> to vector<2x30xf32>
    %847 = vector.extract_strided_slice %837 {offsets = [0, 0], sizes = [2, 2], strides = [1, 1]} : vector<2x32xf32> to vector<2x2xf32>
    %848 = tpu.concatenate %846, %847 in 1 : vector<2x30xf32>, vector<2x2xf32> -> vector<2x32xf32>
    %849 = vector.extract_strided_slice %4 {offsets = [1, 0], sizes = [1, 32], strides = [1, 1]} : vector<2x32xf32> to vector<1x32xf32>
    %850 = vector.broadcast %849 : vector<1x32xf32> to vector<2x32xf32>
    %851 = arith.mulf %848, %850 : vector<2x32xf32>
    %852 = arith.addf %845, %851 : vector<2x32xf32>
    %cst_64 = arith.constant 2.000000e+00 : f32
    %853 = vector.broadcast %cst_64 : f32 to vector<2x32xf32>
    %854 = arith.mulf %853, %852 : vector<2x32xf32>
    %855 = math.tanh %854 : vector<2x32xf32>
    %856 = vector.extract_strided_slice %3 {offsets = [92, 0], sizes = [2, 32], strides = [1, 1]} : vector<128x32xf32> to vector<2x32xf32>
    %857 = vector.extract_strided_slice %855 {offsets = [0, 1], sizes = [2, 31], strides = [1, 1]} : vector<2x32xf32> to vector<2x31xf32>
    %858 = vector.extract_strided_slice %855 {offsets = [0, 0], sizes = [2, 1], strides = [1, 1]} : vector<2x32xf32> to vector<2x1xf32>
    %859 = tpu.concatenate %857, %858 in 1 : vector<2x31xf32>, vector<2x1xf32> -> vector<2x32xf32>
    %860 = vector.extract_strided_slice %4 {offsets = [0, 0], sizes = [1, 32], strides = [1, 1]} : vector<2x32xf32> to vector<1x32xf32>
    %861 = vector.broadcast %860 : vector<1x32xf32> to vector<2x32xf32>
    %862 = arith.mulf %859, %861 : vector<2x32xf32>
    %863 = arith.addf %856, %862 : vector<2x32xf32>
    %864 = vector.extract_strided_slice %855 {offsets = [0, 2], sizes = [2, 30], strides = [1, 1]} : vector<2x32xf32> to vector<2x30xf32>
    %865 = vector.extract_strided_slice %855 {offsets = [0, 0], sizes = [2, 2], strides = [1, 1]} : vector<2x32xf32> to vector<2x2xf32>
    %866 = tpu.concatenate %864, %865 in 1 : vector<2x30xf32>, vector<2x2xf32> -> vector<2x32xf32>
    %867 = vector.extract_strided_slice %4 {offsets = [1, 0], sizes = [1, 32], strides = [1, 1]} : vector<2x32xf32> to vector<1x32xf32>
    %868 = vector.broadcast %867 : vector<1x32xf32> to vector<2x32xf32>
    %869 = arith.mulf %866, %868 : vector<2x32xf32>
    %870 = arith.addf %863, %869 : vector<2x32xf32>
    %cst_65 = arith.constant 2.000000e+00 : f32
    %871 = vector.broadcast %cst_65 : f32 to vector<2x32xf32>
    %872 = arith.mulf %871, %870 : vector<2x32xf32>
    %873 = math.tanh %872 : vector<2x32xf32>
    %874 = vector.extract_strided_slice %3 {offsets = [94, 0], sizes = [2, 32], strides = [1, 1]} : vector<128x32xf32> to vector<2x32xf32>
    %875 = vector.extract_strided_slice %873 {offsets = [0, 1], sizes = [2, 31], strides = [1, 1]} : vector<2x32xf32> to vector<2x31xf32>
    %876 = vector.extract_strided_slice %873 {offsets = [0, 0], sizes = [2, 1], strides = [1, 1]} : vector<2x32xf32> to vector<2x1xf32>
    %877 = tpu.concatenate %875, %876 in 1 : vector<2x31xf32>, vector<2x1xf32> -> vector<2x32xf32>
    %878 = vector.extract_strided_slice %4 {offsets = [0, 0], sizes = [1, 32], strides = [1, 1]} : vector<2x32xf32> to vector<1x32xf32>
    %879 = vector.broadcast %878 : vector<1x32xf32> to vector<2x32xf32>
    %880 = arith.mulf %877, %879 : vector<2x32xf32>
    %881 = arith.addf %874, %880 : vector<2x32xf32>
    %882 = vector.extract_strided_slice %873 {offsets = [0, 2], sizes = [2, 30], strides = [1, 1]} : vector<2x32xf32> to vector<2x30xf32>
    %883 = vector.extract_strided_slice %873 {offsets = [0, 0], sizes = [2, 2], strides = [1, 1]} : vector<2x32xf32> to vector<2x2xf32>
    %884 = tpu.concatenate %882, %883 in 1 : vector<2x30xf32>, vector<2x2xf32> -> vector<2x32xf32>
    %885 = vector.extract_strided_slice %4 {offsets = [1, 0], sizes = [1, 32], strides = [1, 1]} : vector<2x32xf32> to vector<1x32xf32>
    %886 = vector.broadcast %885 : vector<1x32xf32> to vector<2x32xf32>
    %887 = arith.mulf %884, %886 : vector<2x32xf32>
    %888 = arith.addf %881, %887 : vector<2x32xf32>
    %cst_66 = arith.constant 2.000000e+00 : f32
    %889 = vector.broadcast %cst_66 : f32 to vector<2x32xf32>
    %890 = arith.mulf %889, %888 : vector<2x32xf32>
    %891 = math.tanh %890 : vector<2x32xf32>
    %892 = tpu.concatenate %837, %855, %873, %891 in 0 : vector<2x32xf32>, vector<2x32xf32>, vector<2x32xf32>, vector<2x32xf32> -> vector<8x32xf32>
    %c88 = arith.constant 88 : index
    %c0_67 = arith.constant 0 : index
    %893 = vector.load %arg12[%c88, %c0_67] : memref<128x32xf32, #tpu.memory_space<vmem>>, vector<8x32xf32>
    tpu.vector_store %arg12[%c88, %c0_67], %892 {strides = array<i32>} : memref<128x32xf32, #tpu.memory_space<vmem>>, vector<8x32xf32>,
    %894 = vector.extract_strided_slice %3 {offsets = [96, 0], sizes = [2, 32], strides = [1, 1]} : vector<128x32xf32> to vector<2x32xf32>
    %895 = vector.extract_strided_slice %891 {offsets = [0, 1], sizes = [2, 31], strides = [1, 1]} : vector<2x32xf32> to vector<2x31xf32>
    %896 = vector.extract_strided_slice %891 {offsets = [0, 0], sizes = [2, 1], strides = [1, 1]} : vector<2x32xf32> to vector<2x1xf32>
    %897 = tpu.concatenate %895, %896 in 1 : vector<2x31xf32>, vector<2x1xf32> -> vector<2x32xf32>
    %898 = vector.extract_strided_slice %4 {offsets = [0, 0], sizes = [1, 32], strides = [1, 1]} : vector<2x32xf32> to vector<1x32xf32>
    %899 = vector.broadcast %898 : vector<1x32xf32> to vector<2x32xf32>
    %900 = arith.mulf %897, %899 : vector<2x32xf32>
    %901 = arith.addf %894, %900 : vector<2x32xf32>
    %902 = vector.extract_strided_slice %891 {offsets = [0, 2], sizes = [2, 30], strides = [1, 1]} : vector<2x32xf32> to vector<2x30xf32>
    %903 = vector.extract_strided_slice %891 {offsets = [0, 0], sizes = [2, 2], strides = [1, 1]} : vector<2x32xf32> to vector<2x2xf32>
    %904 = tpu.concatenate %902, %903 in 1 : vector<2x30xf32>, vector<2x2xf32> -> vector<2x32xf32>
    %905 = vector.extract_strided_slice %4 {offsets = [1, 0], sizes = [1, 32], strides = [1, 1]} : vector<2x32xf32> to vector<1x32xf32>
    %906 = vector.broadcast %905 : vector<1x32xf32> to vector<2x32xf32>
    %907 = arith.mulf %904, %906 : vector<2x32xf32>
    %908 = arith.addf %901, %907 : vector<2x32xf32>
    %cst_68 = arith.constant 2.000000e+00 : f32
    %909 = vector.broadcast %cst_68 : f32 to vector<2x32xf32>
    %910 = arith.mulf %909, %908 : vector<2x32xf32>
    %911 = math.tanh %910 : vector<2x32xf32>
    %912 = vector.extract_strided_slice %3 {offsets = [98, 0], sizes = [2, 32], strides = [1, 1]} : vector<128x32xf32> to vector<2x32xf32>
    %913 = vector.extract_strided_slice %911 {offsets = [0, 1], sizes = [2, 31], strides = [1, 1]} : vector<2x32xf32> to vector<2x31xf32>
    %914 = vector.extract_strided_slice %911 {offsets = [0, 0], sizes = [2, 1], strides = [1, 1]} : vector<2x32xf32> to vector<2x1xf32>
    %915 = tpu.concatenate %913, %914 in 1 : vector<2x31xf32>, vector<2x1xf32> -> vector<2x32xf32>
    %916 = vector.extract_strided_slice %4 {offsets = [0, 0], sizes = [1, 32], strides = [1, 1]} : vector<2x32xf32> to vector<1x32xf32>
    %917 = vector.broadcast %916 : vector<1x32xf32> to vector<2x32xf32>
    %918 = arith.mulf %915, %917 : vector<2x32xf32>
    %919 = arith.addf %912, %918 : vector<2x32xf32>
    %920 = vector.extract_strided_slice %911 {offsets = [0, 2], sizes = [2, 30], strides = [1, 1]} : vector<2x32xf32> to vector<2x30xf32>
    %921 = vector.extract_strided_slice %911 {offsets = [0, 0], sizes = [2, 2], strides = [1, 1]} : vector<2x32xf32> to vector<2x2xf32>
    %922 = tpu.concatenate %920, %921 in 1 : vector<2x30xf32>, vector<2x2xf32> -> vector<2x32xf32>
    %923 = vector.extract_strided_slice %4 {offsets = [1, 0], sizes = [1, 32], strides = [1, 1]} : vector<2x32xf32> to vector<1x32xf32>
    %924 = vector.broadcast %923 : vector<1x32xf32> to vector<2x32xf32>
    %925 = arith.mulf %922, %924 : vector<2x32xf32>
    %926 = arith.addf %919, %925 : vector<2x32xf32>
    %cst_69 = arith.constant 2.000000e+00 : f32
    %927 = vector.broadcast %cst_69 : f32 to vector<2x32xf32>
    %928 = arith.mulf %927, %926 : vector<2x32xf32>
    %929 = math.tanh %928 : vector<2x32xf32>
    %930 = vector.extract_strided_slice %3 {offsets = [100, 0], sizes = [2, 32], strides = [1, 1]} : vector<128x32xf32> to vector<2x32xf32>
    %931 = vector.extract_strided_slice %929 {offsets = [0, 1], sizes = [2, 31], strides = [1, 1]} : vector<2x32xf32> to vector<2x31xf32>
    %932 = vector.extract_strided_slice %929 {offsets = [0, 0], sizes = [2, 1], strides = [1, 1]} : vector<2x32xf32> to vector<2x1xf32>
    %933 = tpu.concatenate %931, %932 in 1 : vector<2x31xf32>, vector<2x1xf32> -> vector<2x32xf32>
    %934 = vector.extract_strided_slice %4 {offsets = [0, 0], sizes = [1, 32], strides = [1, 1]} : vector<2x32xf32> to vector<1x32xf32>
    %935 = vector.broadcast %934 : vector<1x32xf32> to vector<2x32xf32>
    %936 = arith.mulf %933, %935 : vector<2x32xf32>
    %937 = arith.addf %930, %936 : vector<2x32xf32>
    %938 = vector.extract_strided_slice %929 {offsets = [0, 2], sizes = [2, 30], strides = [1, 1]} : vector<2x32xf32> to vector<2x30xf32>
    %939 = vector.extract_strided_slice %929 {offsets = [0, 0], sizes = [2, 2], strides = [1, 1]} : vector<2x32xf32> to vector<2x2xf32>
    %940 = tpu.concatenate %938, %939 in 1 : vector<2x30xf32>, vector<2x2xf32> -> vector<2x32xf32>
    %941 = vector.extract_strided_slice %4 {offsets = [1, 0], sizes = [1, 32], strides = [1, 1]} : vector<2x32xf32> to vector<1x32xf32>
    %942 = vector.broadcast %941 : vector<1x32xf32> to vector<2x32xf32>
    %943 = arith.mulf %940, %942 : vector<2x32xf32>
    %944 = arith.addf %937, %943 : vector<2x32xf32>
    %cst_70 = arith.constant 2.000000e+00 : f32
    %945 = vector.broadcast %cst_70 : f32 to vector<2x32xf32>
    %946 = arith.mulf %945, %944 : vector<2x32xf32>
    %947 = math.tanh %946 : vector<2x32xf32>
    %948 = vector.extract_strided_slice %3 {offsets = [102, 0], sizes = [2, 32], strides = [1, 1]} : vector<128x32xf32> to vector<2x32xf32>
    %949 = vector.extract_strided_slice %947 {offsets = [0, 1], sizes = [2, 31], strides = [1, 1]} : vector<2x32xf32> to vector<2x31xf32>
    %950 = vector.extract_strided_slice %947 {offsets = [0, 0], sizes = [2, 1], strides = [1, 1]} : vector<2x32xf32> to vector<2x1xf32>
    %951 = tpu.concatenate %949, %950 in 1 : vector<2x31xf32>, vector<2x1xf32> -> vector<2x32xf32>
    %952 = vector.extract_strided_slice %4 {offsets = [0, 0], sizes = [1, 32], strides = [1, 1]} : vector<2x32xf32> to vector<1x32xf32>
    %953 = vector.broadcast %952 : vector<1x32xf32> to vector<2x32xf32>
    %954 = arith.mulf %951, %953 : vector<2x32xf32>
    %955 = arith.addf %948, %954 : vector<2x32xf32>
    %956 = vector.extract_strided_slice %947 {offsets = [0, 2], sizes = [2, 30], strides = [1, 1]} : vector<2x32xf32> to vector<2x30xf32>
    %957 = vector.extract_strided_slice %947 {offsets = [0, 0], sizes = [2, 2], strides = [1, 1]} : vector<2x32xf32> to vector<2x2xf32>
    %958 = tpu.concatenate %956, %957 in 1 : vector<2x30xf32>, vector<2x2xf32> -> vector<2x32xf32>
    %959 = vector.extract_strided_slice %4 {offsets = [1, 0], sizes = [1, 32], strides = [1, 1]} : vector<2x32xf32> to vector<1x32xf32>
    %960 = vector.broadcast %959 : vector<1x32xf32> to vector<2x32xf32>
    %961 = arith.mulf %958, %960 : vector<2x32xf32>
    %962 = arith.addf %955, %961 : vector<2x32xf32>
    %cst_71 = arith.constant 2.000000e+00 : f32
    %963 = vector.broadcast %cst_71 : f32 to vector<2x32xf32>
    %964 = arith.mulf %963, %962 : vector<2x32xf32>
    %965 = math.tanh %964 : vector<2x32xf32>
    %966 = tpu.concatenate %911, %929, %947, %965 in 0 : vector<2x32xf32>, vector<2x32xf32>, vector<2x32xf32>, vector<2x32xf32> -> vector<8x32xf32>
    %c96 = arith.constant 96 : index
    %c0_72 = arith.constant 0 : index
    %967 = vector.load %arg12[%c96, %c0_72] : memref<128x32xf32, #tpu.memory_space<vmem>>, vector<8x32xf32>
    tpu.vector_store %arg12[%c96, %c0_72], %966 {strides = array<i32>} : memref<128x32xf32, #tpu.memory_space<vmem>>, vector<8x32xf32>,
    %968 = vector.extract_strided_slice %3 {offsets = [104, 0], sizes = [2, 32], strides = [1, 1]} : vector<128x32xf32> to vector<2x32xf32>
    %969 = vector.extract_strided_slice %965 {offsets = [0, 1], sizes = [2, 31], strides = [1, 1]} : vector<2x32xf32> to vector<2x31xf32>
    %970 = vector.extract_strided_slice %965 {offsets = [0, 0], sizes = [2, 1], strides = [1, 1]} : vector<2x32xf32> to vector<2x1xf32>
    %971 = tpu.concatenate %969, %970 in 1 : vector<2x31xf32>, vector<2x1xf32> -> vector<2x32xf32>
    %972 = vector.extract_strided_slice %4 {offsets = [0, 0], sizes = [1, 32], strides = [1, 1]} : vector<2x32xf32> to vector<1x32xf32>
    %973 = vector.broadcast %972 : vector<1x32xf32> to vector<2x32xf32>
    %974 = arith.mulf %971, %973 : vector<2x32xf32>
    %975 = arith.addf %968, %974 : vector<2x32xf32>
    %976 = vector.extract_strided_slice %965 {offsets = [0, 2], sizes = [2, 30], strides = [1, 1]} : vector<2x32xf32> to vector<2x30xf32>
    %977 = vector.extract_strided_slice %965 {offsets = [0, 0], sizes = [2, 2], strides = [1, 1]} : vector<2x32xf32> to vector<2x2xf32>
    %978 = tpu.concatenate %976, %977 in 1 : vector<2x30xf32>, vector<2x2xf32> -> vector<2x32xf32>
    %979 = vector.extract_strided_slice %4 {offsets = [1, 0], sizes = [1, 32], strides = [1, 1]} : vector<2x32xf32> to vector<1x32xf32>
    %980 = vector.broadcast %979 : vector<1x32xf32> to vector<2x32xf32>
    %981 = arith.mulf %978, %980 : vector<2x32xf32>
    %982 = arith.addf %975, %981 : vector<2x32xf32>
    %cst_73 = arith.constant 2.000000e+00 : f32
    %983 = vector.broadcast %cst_73 : f32 to vector<2x32xf32>
    %984 = arith.mulf %983, %982 : vector<2x32xf32>
    %985 = math.tanh %984 : vector<2x32xf32>
    %986 = vector.extract_strided_slice %3 {offsets = [106, 0], sizes = [2, 32], strides = [1, 1]} : vector<128x32xf32> to vector<2x32xf32>
    %987 = vector.extract_strided_slice %985 {offsets = [0, 1], sizes = [2, 31], strides = [1, 1]} : vector<2x32xf32> to vector<2x31xf32>
    %988 = vector.extract_strided_slice %985 {offsets = [0, 0], sizes = [2, 1], strides = [1, 1]} : vector<2x32xf32> to vector<2x1xf32>
    %989 = tpu.concatenate %987, %988 in 1 : vector<2x31xf32>, vector<2x1xf32> -> vector<2x32xf32>
    %990 = vector.extract_strided_slice %4 {offsets = [0, 0], sizes = [1, 32], strides = [1, 1]} : vector<2x32xf32> to vector<1x32xf32>
    %991 = vector.broadcast %990 : vector<1x32xf32> to vector<2x32xf32>
    %992 = arith.mulf %989, %991 : vector<2x32xf32>
    %993 = arith.addf %986, %992 : vector<2x32xf32>
    %994 = vector.extract_strided_slice %985 {offsets = [0, 2], sizes = [2, 30], strides = [1, 1]} : vector<2x32xf32> to vector<2x30xf32>
    %995 = vector.extract_strided_slice %985 {offsets = [0, 0], sizes = [2, 2], strides = [1, 1]} : vector<2x32xf32> to vector<2x2xf32>
    %996 = tpu.concatenate %994, %995 in 1 : vector<2x30xf32>, vector<2x2xf32> -> vector<2x32xf32>
    %997 = vector.extract_strided_slice %4 {offsets = [1, 0], sizes = [1, 32], strides = [1, 1]} : vector<2x32xf32> to vector<1x32xf32>
    %998 = vector.broadcast %997 : vector<1x32xf32> to vector<2x32xf32>
    %999 = arith.mulf %996, %998 : vector<2x32xf32>
    %1000 = arith.addf %993, %999 : vector<2x32xf32>
    %cst_74 = arith.constant 2.000000e+00 : f32
    %1001 = vector.broadcast %cst_74 : f32 to vector<2x32xf32>
    %1002 = arith.mulf %1001, %1000 : vector<2x32xf32>
    %1003 = math.tanh %1002 : vector<2x32xf32>
    %1004 = vector.extract_strided_slice %3 {offsets = [108, 0], sizes = [2, 32], strides = [1, 1]} : vector<128x32xf32> to vector<2x32xf32>
    %1005 = vector.extract_strided_slice %1003 {offsets = [0, 1], sizes = [2, 31], strides = [1, 1]} : vector<2x32xf32> to vector<2x31xf32>
    %1006 = vector.extract_strided_slice %1003 {offsets = [0, 0], sizes = [2, 1], strides = [1, 1]} : vector<2x32xf32> to vector<2x1xf32>
    %1007 = tpu.concatenate %1005, %1006 in 1 : vector<2x31xf32>, vector<2x1xf32> -> vector<2x32xf32>
    %1008 = vector.extract_strided_slice %4 {offsets = [0, 0], sizes = [1, 32], strides = [1, 1]} : vector<2x32xf32> to vector<1x32xf32>
    %1009 = vector.broadcast %1008 : vector<1x32xf32> to vector<2x32xf32>
    %1010 = arith.mulf %1007, %1009 : vector<2x32xf32>
    %1011 = arith.addf %1004, %1010 : vector<2x32xf32>
    %1012 = vector.extract_strided_slice %1003 {offsets = [0, 2], sizes = [2, 30], strides = [1, 1]} : vector<2x32xf32> to vector<2x30xf32>
    %1013 = vector.extract_strided_slice %1003 {offsets = [0, 0], sizes = [2, 2], strides = [1, 1]} : vector<2x32xf32> to vector<2x2xf32>
    %1014 = tpu.concatenate %1012, %1013 in 1 : vector<2x30xf32>, vector<2x2xf32> -> vector<2x32xf32>
    %1015 = vector.extract_strided_slice %4 {offsets = [1, 0], sizes = [1, 32], strides = [1, 1]} : vector<2x32xf32> to vector<1x32xf32>
    %1016 = vector.broadcast %1015 : vector<1x32xf32> to vector<2x32xf32>
    %1017 = arith.mulf %1014, %1016 : vector<2x32xf32>
    %1018 = arith.addf %1011, %1017 : vector<2x32xf32>
    %cst_75 = arith.constant 2.000000e+00 : f32
    %1019 = vector.broadcast %cst_75 : f32 to vector<2x32xf32>
    %1020 = arith.mulf %1019, %1018 : vector<2x32xf32>
    %1021 = math.tanh %1020 : vector<2x32xf32>
    %1022 = vector.extract_strided_slice %3 {offsets = [110, 0], sizes = [2, 32], strides = [1, 1]} : vector<128x32xf32> to vector<2x32xf32>
    %1023 = vector.extract_strided_slice %1021 {offsets = [0, 1], sizes = [2, 31], strides = [1, 1]} : vector<2x32xf32> to vector<2x31xf32>
    %1024 = vector.extract_strided_slice %1021 {offsets = [0, 0], sizes = [2, 1], strides = [1, 1]} : vector<2x32xf32> to vector<2x1xf32>
    %1025 = tpu.concatenate %1023, %1024 in 1 : vector<2x31xf32>, vector<2x1xf32> -> vector<2x32xf32>
    %1026 = vector.extract_strided_slice %4 {offsets = [0, 0], sizes = [1, 32], strides = [1, 1]} : vector<2x32xf32> to vector<1x32xf32>
    %1027 = vector.broadcast %1026 : vector<1x32xf32> to vector<2x32xf32>
    %1028 = arith.mulf %1025, %1027 : vector<2x32xf32>
    %1029 = arith.addf %1022, %1028 : vector<2x32xf32>
    %1030 = vector.extract_strided_slice %1021 {offsets = [0, 2], sizes = [2, 30], strides = [1, 1]} : vector<2x32xf32> to vector<2x30xf32>
    %1031 = vector.extract_strided_slice %1021 {offsets = [0, 0], sizes = [2, 2], strides = [1, 1]} : vector<2x32xf32> to vector<2x2xf32>
    %1032 = tpu.concatenate %1030, %1031 in 1 : vector<2x30xf32>, vector<2x2xf32> -> vector<2x32xf32>
    %1033 = vector.extract_strided_slice %4 {offsets = [1, 0], sizes = [1, 32], strides = [1, 1]} : vector<2x32xf32> to vector<1x32xf32>
    %1034 = vector.broadcast %1033 : vector<1x32xf32> to vector<2x32xf32>
    %1035 = arith.mulf %1032, %1034 : vector<2x32xf32>
    %1036 = arith.addf %1029, %1035 : vector<2x32xf32>
    %cst_76 = arith.constant 2.000000e+00 : f32
    %1037 = vector.broadcast %cst_76 : f32 to vector<2x32xf32>
    %1038 = arith.mulf %1037, %1036 : vector<2x32xf32>
    %1039 = math.tanh %1038 : vector<2x32xf32>
    %1040 = tpu.concatenate %985, %1003, %1021, %1039 in 0 : vector<2x32xf32>, vector<2x32xf32>, vector<2x32xf32>, vector<2x32xf32> -> vector<8x32xf32>
    %c104 = arith.constant 104 : index
    %c0_77 = arith.constant 0 : index
    %1041 = vector.load %arg12[%c104, %c0_77] : memref<128x32xf32, #tpu.memory_space<vmem>>, vector<8x32xf32>
    tpu.vector_store %arg12[%c104, %c0_77], %1040 {strides = array<i32>} : memref<128x32xf32, #tpu.memory_space<vmem>>, vector<8x32xf32>,
    %1042 = vector.extract_strided_slice %3 {offsets = [112, 0], sizes = [2, 32], strides = [1, 1]} : vector<128x32xf32> to vector<2x32xf32>
    %1043 = vector.extract_strided_slice %1039 {offsets = [0, 1], sizes = [2, 31], strides = [1, 1]} : vector<2x32xf32> to vector<2x31xf32>
    %1044 = vector.extract_strided_slice %1039 {offsets = [0, 0], sizes = [2, 1], strides = [1, 1]} : vector<2x32xf32> to vector<2x1xf32>
    %1045 = tpu.concatenate %1043, %1044 in 1 : vector<2x31xf32>, vector<2x1xf32> -> vector<2x32xf32>
    %1046 = vector.extract_strided_slice %4 {offsets = [0, 0], sizes = [1, 32], strides = [1, 1]} : vector<2x32xf32> to vector<1x32xf32>
    %1047 = vector.broadcast %1046 : vector<1x32xf32> to vector<2x32xf32>
    %1048 = arith.mulf %1045, %1047 : vector<2x32xf32>
    %1049 = arith.addf %1042, %1048 : vector<2x32xf32>
    %1050 = vector.extract_strided_slice %1039 {offsets = [0, 2], sizes = [2, 30], strides = [1, 1]} : vector<2x32xf32> to vector<2x30xf32>
    %1051 = vector.extract_strided_slice %1039 {offsets = [0, 0], sizes = [2, 2], strides = [1, 1]} : vector<2x32xf32> to vector<2x2xf32>
    %1052 = tpu.concatenate %1050, %1051 in 1 : vector<2x30xf32>, vector<2x2xf32> -> vector<2x32xf32>
    %1053 = vector.extract_strided_slice %4 {offsets = [1, 0], sizes = [1, 32], strides = [1, 1]} : vector<2x32xf32> to vector<1x32xf32>
    %1054 = vector.broadcast %1053 : vector<1x32xf32> to vector<2x32xf32>
    %1055 = arith.mulf %1052, %1054 : vector<2x32xf32>
    %1056 = arith.addf %1049, %1055 : vector<2x32xf32>
    %cst_78 = arith.constant 2.000000e+00 : f32
    %1057 = vector.broadcast %cst_78 : f32 to vector<2x32xf32>
    %1058 = arith.mulf %1057, %1056 : vector<2x32xf32>
    %1059 = math.tanh %1058 : vector<2x32xf32>
    %1060 = vector.extract_strided_slice %3 {offsets = [114, 0], sizes = [2, 32], strides = [1, 1]} : vector<128x32xf32> to vector<2x32xf32>
    %1061 = vector.extract_strided_slice %1059 {offsets = [0, 1], sizes = [2, 31], strides = [1, 1]} : vector<2x32xf32> to vector<2x31xf32>
    %1062 = vector.extract_strided_slice %1059 {offsets = [0, 0], sizes = [2, 1], strides = [1, 1]} : vector<2x32xf32> to vector<2x1xf32>
    %1063 = tpu.concatenate %1061, %1062 in 1 : vector<2x31xf32>, vector<2x1xf32> -> vector<2x32xf32>
    %1064 = vector.extract_strided_slice %4 {offsets = [0, 0], sizes = [1, 32], strides = [1, 1]} : vector<2x32xf32> to vector<1x32xf32>
    %1065 = vector.broadcast %1064 : vector<1x32xf32> to vector<2x32xf32>
    %1066 = arith.mulf %1063, %1065 : vector<2x32xf32>
    %1067 = arith.addf %1060, %1066 : vector<2x32xf32>
    %1068 = vector.extract_strided_slice %1059 {offsets = [0, 2], sizes = [2, 30], strides = [1, 1]} : vector<2x32xf32> to vector<2x30xf32>
    %1069 = vector.extract_strided_slice %1059 {offsets = [0, 0], sizes = [2, 2], strides = [1, 1]} : vector<2x32xf32> to vector<2x2xf32>
    %1070 = tpu.concatenate %1068, %1069 in 1 : vector<2x30xf32>, vector<2x2xf32> -> vector<2x32xf32>
    %1071 = vector.extract_strided_slice %4 {offsets = [1, 0], sizes = [1, 32], strides = [1, 1]} : vector<2x32xf32> to vector<1x32xf32>
    %1072 = vector.broadcast %1071 : vector<1x32xf32> to vector<2x32xf32>
    %1073 = arith.mulf %1070, %1072 : vector<2x32xf32>
    %1074 = arith.addf %1067, %1073 : vector<2x32xf32>
    %cst_79 = arith.constant 2.000000e+00 : f32
    %1075 = vector.broadcast %cst_79 : f32 to vector<2x32xf32>
    %1076 = arith.mulf %1075, %1074 : vector<2x32xf32>
    %1077 = math.tanh %1076 : vector<2x32xf32>
    %1078 = vector.extract_strided_slice %3 {offsets = [116, 0], sizes = [2, 32], strides = [1, 1]} : vector<128x32xf32> to vector<2x32xf32>
    %1079 = vector.extract_strided_slice %1077 {offsets = [0, 1], sizes = [2, 31], strides = [1, 1]} : vector<2x32xf32> to vector<2x31xf32>
    %1080 = vector.extract_strided_slice %1077 {offsets = [0, 0], sizes = [2, 1], strides = [1, 1]} : vector<2x32xf32> to vector<2x1xf32>
    %1081 = tpu.concatenate %1079, %1080 in 1 : vector<2x31xf32>, vector<2x1xf32> -> vector<2x32xf32>
    %1082 = vector.extract_strided_slice %4 {offsets = [0, 0], sizes = [1, 32], strides = [1, 1]} : vector<2x32xf32> to vector<1x32xf32>
    %1083 = vector.broadcast %1082 : vector<1x32xf32> to vector<2x32xf32>
    %1084 = arith.mulf %1081, %1083 : vector<2x32xf32>
    %1085 = arith.addf %1078, %1084 : vector<2x32xf32>
    %1086 = vector.extract_strided_slice %1077 {offsets = [0, 2], sizes = [2, 30], strides = [1, 1]} : vector<2x32xf32> to vector<2x30xf32>
    %1087 = vector.extract_strided_slice %1077 {offsets = [0, 0], sizes = [2, 2], strides = [1, 1]} : vector<2x32xf32> to vector<2x2xf32>
    %1088 = tpu.concatenate %1086, %1087 in 1 : vector<2x30xf32>, vector<2x2xf32> -> vector<2x32xf32>
    %1089 = vector.extract_strided_slice %4 {offsets = [1, 0], sizes = [1, 32], strides = [1, 1]} : vector<2x32xf32> to vector<1x32xf32>
    %1090 = vector.broadcast %1089 : vector<1x32xf32> to vector<2x32xf32>
    %1091 = arith.mulf %1088, %1090 : vector<2x32xf32>
    %1092 = arith.addf %1085, %1091 : vector<2x32xf32>
    %cst_80 = arith.constant 2.000000e+00 : f32
    %1093 = vector.broadcast %cst_80 : f32 to vector<2x32xf32>
    %1094 = arith.mulf %1093, %1092 : vector<2x32xf32>
    %1095 = math.tanh %1094 : vector<2x32xf32>
    %1096 = vector.extract_strided_slice %3 {offsets = [118, 0], sizes = [2, 32], strides = [1, 1]} : vector<128x32xf32> to vector<2x32xf32>
    %1097 = vector.extract_strided_slice %1095 {offsets = [0, 1], sizes = [2, 31], strides = [1, 1]} : vector<2x32xf32> to vector<2x31xf32>
    %1098 = vector.extract_strided_slice %1095 {offsets = [0, 0], sizes = [2, 1], strides = [1, 1]} : vector<2x32xf32> to vector<2x1xf32>
    %1099 = tpu.concatenate %1097, %1098 in 1 : vector<2x31xf32>, vector<2x1xf32> -> vector<2x32xf32>
    %1100 = vector.extract_strided_slice %4 {offsets = [0, 0], sizes = [1, 32], strides = [1, 1]} : vector<2x32xf32> to vector<1x32xf32>
    %1101 = vector.broadcast %1100 : vector<1x32xf32> to vector<2x32xf32>
    %1102 = arith.mulf %1099, %1101 : vector<2x32xf32>
    %1103 = arith.addf %1096, %1102 : vector<2x32xf32>
    %1104 = vector.extract_strided_slice %1095 {offsets = [0, 2], sizes = [2, 30], strides = [1, 1]} : vector<2x32xf32> to vector<2x30xf32>
    %1105 = vector.extract_strided_slice %1095 {offsets = [0, 0], sizes = [2, 2], strides = [1, 1]} : vector<2x32xf32> to vector<2x2xf32>
    %1106 = tpu.concatenate %1104, %1105 in 1 : vector<2x30xf32>, vector<2x2xf32> -> vector<2x32xf32>
    %1107 = vector.extract_strided_slice %4 {offsets = [1, 0], sizes = [1, 32], strides = [1, 1]} : vector<2x32xf32> to vector<1x32xf32>
    %1108 = vector.broadcast %1107 : vector<1x32xf32> to vector<2x32xf32>
    %1109 = arith.mulf %1106, %1108 : vector<2x32xf32>
    %1110 = arith.addf %1103, %1109 : vector<2x32xf32>
    %cst_81 = arith.constant 2.000000e+00 : f32
    %1111 = vector.broadcast %cst_81 : f32 to vector<2x32xf32>
    %1112 = arith.mulf %1111, %1110 : vector<2x32xf32>
    %1113 = math.tanh %1112 : vector<2x32xf32>
    %1114 = tpu.concatenate %1059, %1077, %1095, %1113 in 0 : vector<2x32xf32>, vector<2x32xf32>, vector<2x32xf32>, vector<2x32xf32> -> vector<8x32xf32>
    %c112 = arith.constant 112 : index
    %c0_82 = arith.constant 0 : index
    %1115 = vector.load %arg12[%c112, %c0_82] : memref<128x32xf32, #tpu.memory_space<vmem>>, vector<8x32xf32>
    tpu.vector_store %arg12[%c112, %c0_82], %1114 {strides = array<i32>} : memref<128x32xf32, #tpu.memory_space<vmem>>, vector<8x32xf32>,
    %1116 = vector.extract_strided_slice %3 {offsets = [120, 0], sizes = [2, 32], strides = [1, 1]} : vector<128x32xf32> to vector<2x32xf32>
    %1117 = vector.extract_strided_slice %1113 {offsets = [0, 1], sizes = [2, 31], strides = [1, 1]} : vector<2x32xf32> to vector<2x31xf32>
    %1118 = vector.extract_strided_slice %1113 {offsets = [0, 0], sizes = [2, 1], strides = [1, 1]} : vector<2x32xf32> to vector<2x1xf32>
    %1119 = tpu.concatenate %1117, %1118 in 1 : vector<2x31xf32>, vector<2x1xf32> -> vector<2x32xf32>
    %1120 = vector.extract_strided_slice %4 {offsets = [0, 0], sizes = [1, 32], strides = [1, 1]} : vector<2x32xf32> to vector<1x32xf32>
    %1121 = vector.broadcast %1120 : vector<1x32xf32> to vector<2x32xf32>
    %1122 = arith.mulf %1119, %1121 : vector<2x32xf32>
    %1123 = arith.addf %1116, %1122 : vector<2x32xf32>
    %1124 = vector.extract_strided_slice %1113 {offsets = [0, 2], sizes = [2, 30], strides = [1, 1]} : vector<2x32xf32> to vector<2x30xf32>
    %1125 = vector.extract_strided_slice %1113 {offsets = [0, 0], sizes = [2, 2], strides = [1, 1]} : vector<2x32xf32> to vector<2x2xf32>
    %1126 = tpu.concatenate %1124, %1125 in 1 : vector<2x30xf32>, vector<2x2xf32> -> vector<2x32xf32>
    %1127 = vector.extract_strided_slice %4 {offsets = [1, 0], sizes = [1, 32], strides = [1, 1]} : vector<2x32xf32> to vector<1x32xf32>
    %1128 = vector.broadcast %1127 : vector<1x32xf32> to vector<2x32xf32>
    %1129 = arith.mulf %1126, %1128 : vector<2x32xf32>
    %1130 = arith.addf %1123, %1129 : vector<2x32xf32>
    %cst_83 = arith.constant 2.000000e+00 : f32
    %1131 = vector.broadcast %cst_83 : f32 to vector<2x32xf32>
    %1132 = arith.mulf %1131, %1130 : vector<2x32xf32>
    %1133 = math.tanh %1132 : vector<2x32xf32>
    %1134 = vector.extract_strided_slice %3 {offsets = [122, 0], sizes = [2, 32], strides = [1, 1]} : vector<128x32xf32> to vector<2x32xf32>
    %1135 = vector.extract_strided_slice %1133 {offsets = [0, 1], sizes = [2, 31], strides = [1, 1]} : vector<2x32xf32> to vector<2x31xf32>
    %1136 = vector.extract_strided_slice %1133 {offsets = [0, 0], sizes = [2, 1], strides = [1, 1]} : vector<2x32xf32> to vector<2x1xf32>
    %1137 = tpu.concatenate %1135, %1136 in 1 : vector<2x31xf32>, vector<2x1xf32> -> vector<2x32xf32>
    %1138 = vector.extract_strided_slice %4 {offsets = [0, 0], sizes = [1, 32], strides = [1, 1]} : vector<2x32xf32> to vector<1x32xf32>
    %1139 = vector.broadcast %1138 : vector<1x32xf32> to vector<2x32xf32>
    %1140 = arith.mulf %1137, %1139 : vector<2x32xf32>
    %1141 = arith.addf %1134, %1140 : vector<2x32xf32>
    %1142 = vector.extract_strided_slice %1133 {offsets = [0, 2], sizes = [2, 30], strides = [1, 1]} : vector<2x32xf32> to vector<2x30xf32>
    %1143 = vector.extract_strided_slice %1133 {offsets = [0, 0], sizes = [2, 2], strides = [1, 1]} : vector<2x32xf32> to vector<2x2xf32>
    %1144 = tpu.concatenate %1142, %1143 in 1 : vector<2x30xf32>, vector<2x2xf32> -> vector<2x32xf32>
    %1145 = vector.extract_strided_slice %4 {offsets = [1, 0], sizes = [1, 32], strides = [1, 1]} : vector<2x32xf32> to vector<1x32xf32>
    %1146 = vector.broadcast %1145 : vector<1x32xf32> to vector<2x32xf32>
    %1147 = arith.mulf %1144, %1146 : vector<2x32xf32>
    %1148 = arith.addf %1141, %1147 : vector<2x32xf32>
    %cst_84 = arith.constant 2.000000e+00 : f32
    %1149 = vector.broadcast %cst_84 : f32 to vector<2x32xf32>
    %1150 = arith.mulf %1149, %1148 : vector<2x32xf32>
    %1151 = math.tanh %1150 : vector<2x32xf32>
    %1152 = vector.extract_strided_slice %3 {offsets = [124, 0], sizes = [2, 32], strides = [1, 1]} : vector<128x32xf32> to vector<2x32xf32>
    %1153 = vector.extract_strided_slice %1151 {offsets = [0, 1], sizes = [2, 31], strides = [1, 1]} : vector<2x32xf32> to vector<2x31xf32>
    %1154 = vector.extract_strided_slice %1151 {offsets = [0, 0], sizes = [2, 1], strides = [1, 1]} : vector<2x32xf32> to vector<2x1xf32>
    %1155 = tpu.concatenate %1153, %1154 in 1 : vector<2x31xf32>, vector<2x1xf32> -> vector<2x32xf32>
    %1156 = vector.extract_strided_slice %4 {offsets = [0, 0], sizes = [1, 32], strides = [1, 1]} : vector<2x32xf32> to vector<1x32xf32>
    %1157 = vector.broadcast %1156 : vector<1x32xf32> to vector<2x32xf32>
    %1158 = arith.mulf %1155, %1157 : vector<2x32xf32>
    %1159 = arith.addf %1152, %1158 : vector<2x32xf32>
    %1160 = vector.extract_strided_slice %1151 {offsets = [0, 2], sizes = [2, 30], strides = [1, 1]} : vector<2x32xf32> to vector<2x30xf32>
    %1161 = vector.extract_strided_slice %1151 {offsets = [0, 0], sizes = [2, 2], strides = [1, 1]} : vector<2x32xf32> to vector<2x2xf32>
    %1162 = tpu.concatenate %1160, %1161 in 1 : vector<2x30xf32>, vector<2x2xf32> -> vector<2x32xf32>
    %1163 = vector.extract_strided_slice %4 {offsets = [1, 0], sizes = [1, 32], strides = [1, 1]} : vector<2x32xf32> to vector<1x32xf32>
    %1164 = vector.broadcast %1163 : vector<1x32xf32> to vector<2x32xf32>
    %1165 = arith.mulf %1162, %1164 : vector<2x32xf32>
    %1166 = arith.addf %1159, %1165 : vector<2x32xf32>
    %cst_85 = arith.constant 2.000000e+00 : f32
    %1167 = vector.broadcast %cst_85 : f32 to vector<2x32xf32>
    %1168 = arith.mulf %1167, %1166 : vector<2x32xf32>
    %1169 = math.tanh %1168 : vector<2x32xf32>
    %1170 = vector.extract_strided_slice %3 {offsets = [126, 0], sizes = [2, 32], strides = [1, 1]} : vector<128x32xf32> to vector<2x32xf32>
    %1171 = vector.extract_strided_slice %1169 {offsets = [0, 1], sizes = [2, 31], strides = [1, 1]} : vector<2x32xf32> to vector<2x31xf32>
    %1172 = vector.extract_strided_slice %1169 {offsets = [0, 0], sizes = [2, 1], strides = [1, 1]} : vector<2x32xf32> to vector<2x1xf32>
    %1173 = tpu.concatenate %1171, %1172 in 1 : vector<2x31xf32>, vector<2x1xf32> -> vector<2x32xf32>
    %1174 = vector.extract_strided_slice %4 {offsets = [0, 0], sizes = [1, 32], strides = [1, 1]} : vector<2x32xf32> to vector<1x32xf32>
    %1175 = vector.broadcast %1174 : vector<1x32xf32> to vector<2x32xf32>
    %1176 = arith.mulf %1173, %1175 : vector<2x32xf32>
    %1177 = arith.addf %1170, %1176 : vector<2x32xf32>
    %1178 = vector.extract_strided_slice %1169 {offsets = [0, 2], sizes = [2, 30], strides = [1, 1]} : vector<2x32xf32> to vector<2x30xf32>
    %1179 = vector.extract_strided_slice %1169 {offsets = [0, 0], sizes = [2, 2], strides = [1, 1]} : vector<2x32xf32> to vector<2x2xf32>
    %1180 = tpu.concatenate %1178, %1179 in 1 : vector<2x30xf32>, vector<2x2xf32> -> vector<2x32xf32>
    %1181 = vector.extract_strided_slice %4 {offsets = [1, 0], sizes = [1, 32], strides = [1, 1]} : vector<2x32xf32> to vector<1x32xf32>
    %1182 = vector.broadcast %1181 : vector<1x32xf32> to vector<2x32xf32>
    %1183 = arith.mulf %1180, %1182 : vector<2x32xf32>
    %1184 = arith.addf %1177, %1183 : vector<2x32xf32>
    %cst_86 = arith.constant 2.000000e+00 : f32
    %1185 = vector.broadcast %cst_86 : f32 to vector<2x32xf32>
    %1186 = arith.mulf %1185, %1184 : vector<2x32xf32>
    %1187 = math.tanh %1186 : vector<2x32xf32>
    %1188 = tpu.concatenate %1133, %1151, %1169, %1187 in 0 : vector<2x32xf32>, vector<2x32xf32>, vector<2x32xf32>, vector<2x32xf32> -> vector<8x32xf32>
    %c120 = arith.constant 120 : index
    %c0_87 = arith.constant 0 : index
    %1189 = vector.load %arg12[%c120, %c0_87] : memref<128x32xf32, #tpu.memory_space<vmem>>, vector<8x32xf32>
    tpu.vector_store %arg12[%c120, %c0_87], %1188 {strides = array<i32>} : memref<128x32xf32, #tpu.memory_space<vmem>>, vector<8x32xf32>,
    %c0_88 = arith.constant 0 : index
    %c0_89 = arith.constant 0 : index
    %1190 = vector.load %arg12[%c0_88, %c0_89] : memref<128x32xf32, #tpu.memory_space<vmem>>, vector<128x32xf32>
    %c0_90 = arith.constant 0 : index
    %c0_91 = arith.constant 0 : index
    %1191 = vector.load %arg4[%c0_90, %c0_91] : memref<32x10xf32, #tpu.memory_space<vmem>>, vector<32x10xf32>
    %cst_92 = arith.constant dense<0.000000e+00> : vector<128x10xf32>
    %1192 = tpu.matmul %1190, %1191, %cst_92 {dimension_numbers = #tpu.dot_dimension_numbers<[1], [0], [0], [1], [0, 0, 1, 1], [], []>} : vector<128x32xf32>, vector<32x10xf32>, vector<128x10xf32> -> vector<128x10xf32>
    %c0_93 = arith.constant 0 : index
    %c0_94 = arith.constant 0 : index
    %1193 = vector.load %arg5[%c0_93, %c0_94] : memref<1x10xf32, #tpu.memory_space<vmem>>, vector<1x10xf32>
    %1194 = vector.broadcast %1193 : vector<1x10xf32> to vector<128x10xf32>
    %1195 = arith.addf %1192, %1194 : vector<128x10xf32>
    %cst_95 = arith.constant 0.000000e+00 : f32
    %1196 = vector.broadcast %cst_95 : f32 to vector<128x10xf32>
    %1197 = arith.cmpf oge, %1195, %1196 : vector<128x10xf32>
    %cst_96 = arith.constant 6.250000e-02 : f32
    %1198 = vector.broadcast %cst_96 : f32 to vector<128x10xf32>
    %1199 = arith.mulf %1195, %1198 : vector<128x10xf32>
    %1200 = arith.select %1197, %1195, %1199 : vector<128x10xi1>, vector<128x10xf32>
    %c0_97 = arith.constant 0 : index
    %c0_98 = arith.constant 0 : index
    %1201 = vector.load %arg6[%c0_97, %c0_98] : memref<32x4xf32, #tpu.memory_space<vmem>>, vector<32x4xf32>
    %cst_99 = arith.constant dense<0.000000e+00> : vector<128x4xf32>
    %1202 = tpu.matmul %3, %1201, %cst_99 {dimension_numbers = #tpu.dot_dimension_numbers<[1], [0], [0], [1], [0, 0, 1, 1], [], []>} : vector<128x32xf32>, vector<32x4xf32>, vector<128x4xf32> -> vector<128x4xf32>
    %c0_100 = arith.constant 0 : index
    %c0_101 = arith.constant 0 : index
    %1203 = vector.load %arg7[%c0_100, %c0_101] : memref<1x4xf32, #tpu.memory_space<vmem>>, vector<1x4xf32>
    %1204 = vector.broadcast %1203 : vector<1x4xf32> to vector<128x4xf32>
    %1205 = arith.addf %1202, %1204 : vector<128x4xf32>
    %cst_102 = arith.constant 0.000000e+00 : f32
    %1206 = vector.broadcast %cst_102 : f32 to vector<128x4xf32>
    %1207 = arith.cmpf oge, %1205, %1206 : vector<128x4xf32>
    %cst_103 = arith.constant 6.250000e-02 : f32
    %1208 = vector.broadcast %cst_103 : f32 to vector<128x4xf32>
    %1209 = arith.mulf %1205, %1208 : vector<128x4xf32>
    %1210 = arith.select %1207, %1205, %1209 : vector<128x4xi1>, vector<128x4xf32>
    %c0_104 = arith.constant 0 : index
    %c0_105 = arith.constant 0 : index
    %1211 = vector.load %arg8[%c0_104, %c0_105] : memref<4x10xf32, #tpu.memory_space<vmem>>, vector<4x10xf32>
    %cst_106 = arith.constant dense<0.000000e+00> : vector<128x10xf32>
    %1212 = tpu.matmul %1210, %1211, %cst_106 {dimension_numbers = #tpu.dot_dimension_numbers<[1], [0], [0], [1], [0, 0, 1, 1], [], []>} : vector<128x4xf32>, vector<4x10xf32>, vector<128x10xf32> -> vector<128x10xf32>
    %c0_107 = arith.constant 0 : index
    %c0_108 = arith.constant 0 : index
    %1213 = vector.load %arg9[%c0_107, %c0_108] : memref<1x10xf32, #tpu.memory_space<vmem>>, vector<1x10xf32>
    %1214 = vector.broadcast %1213 : vector<1x10xf32> to vector<128x10xf32>
    %1215 = arith.addf %1212, %1214 : vector<128x10xf32>
    %cst_109 = arith.constant 0.000000e+00 : f32
    %1216 = vector.broadcast %cst_109 : f32 to vector<128x10xf32>
    %1217 = arith.cmpf oge, %1215, %1216 : vector<128x10xf32>
    %cst_110 = arith.constant 6.250000e-02 : f32
    %1218 = vector.broadcast %cst_110 : f32 to vector<128x10xf32>
    %1219 = arith.mulf %1215, %1218 : vector<128x10xf32>
    %1220 = arith.select %1217, %1215, %1219 : vector<128x10xi1>, vector<128x10xf32>
    %1221 = arith.addf %1200, %1220 : vector<128x10xf32>
    %cst_111 = arith.constant 0.000000e+00 : f32
    %1222 = vector.broadcast %cst_111 : f32 to vector<128x10xf32>
    %1223 = arith.maximumf %1221, %1222 : vector<128x10xf32>
    %c0_112 = arith.constant 0 : index
    %c0_113 = arith.constant 0 : index
    %1224 = vector.load %arg10[%c0_112, %c0_113] : memref<2x128xf32, #tpu.memory_space<vmem>>, vector<2x128xf32>
    %cst_114 = arith.constant dense<0.000000e+00> : vector<2x10xf32>
    %1225 = tpu.matmul %1224, %1223, %cst_114 {dimension_numbers = #tpu.dot_dimension_numbers<[1], [0], [0], [1], [0, 0, 1, 1], [], []>} : vector<2x128xf32>, vector<128x10xf32>, vector<2x10xf32> -> vector<2x10xf32>
    %c0_115 = arith.constant 0 : index
    %c0_116 = arith.constant 0 : index
    %c0_117 = arith.constant 0 : index
    %1226 = vector.load %arg11[%c0_115, %c0_116, %c0_117] : memref<1x2x10xf32, #tpu.memory_space<vmem>>, vector<1x2x10xf32>
    %1227 = vector.shape_cast %1226 : vector<1x2x10xf32> to vector<2x10xf32>
    %1228 = vector.shape_cast %1225 : vector<2x10xf32> to vector<1x2x10xf32>
    tpu.vector_store %arg11[%c0_115, %c0_116, %c0_117], %1228 {strides = array<i32>} : memref<1x2x10xf32, #tpu.memory_space<vmem>>, vector<1x2x10xf32>,
    return
  }
  func.func @transform_0(%arg0: i32) -> (i32, i32, i32) {
    %c0_i32 = arith.constant 0 : i32
    %c0_i32_0 = arith.constant 0 : i32
    %c0_i32_1 = arith.constant 0 : i32
    return %arg0, %c0_i32, %c0_i32_0 : i32, i32, i32
  }
  func.func @transform_1(%arg0: i32) -> (i32, i32) {
    %c0_i32 = arith.constant 0 : i32
    %c0_i32_0 = arith.constant 0 : i32
    %c0_i32_1 = arith.constant 0 : i32
    return %c0_i32, %c0_i32_0 : i32, i32
  }
  func.func @transform_2(%arg0: i32) -> (i32, i32) {
    %c0_i32 = arith.constant 0 : i32
    %c0_i32_0 = arith.constant 0 : i32
    %c0_i32_1 = arith.constant 0 : i32
    return %c0_i32, %c0_i32_0 : i32, i32
  }
  func.func @transform_3(%arg0: i32) -> (i32, i32) {
    %c0_i32 = arith.constant 0 : i32
    %c0_i32_0 = arith.constant 0 : i32
    %c0_i32_1 = arith.constant 0 : i32
    return %c0_i32, %c0_i32_0 : i32, i32
  }
  func.func @transform_4(%arg0: i32) -> (i32, i32) {
    %c0_i32 = arith.constant 0 : i32
    %c0_i32_0 = arith.constant 0 : i32
    %c0_i32_1 = arith.constant 0 : i32
    return %c0_i32, %c0_i32_0 : i32, i32
  }
  func.func @transform_5(%arg0: i32) -> (i32, i32) {
    %c0_i32 = arith.constant 0 : i32
    %c0_i32_0 = arith.constant 0 : i32
    %c0_i32_1 = arith.constant 0 : i32
    return %c0_i32, %c0_i32_0 : i32, i32
  }
  func.func @transform_6(%arg0: i32) -> (i32, i32) {
    %c0_i32 = arith.constant 0 : i32
    %c0_i32_0 = arith.constant 0 : i32
    %c0_i32_1 = arith.constant 0 : i32
    return %c0_i32, %c0_i32_0 : i32, i32
  }
  func.func @transform_7(%arg0: i32) -> (i32, i32) {
    %c0_i32 = arith.constant 0 : i32
    %c0_i32_0 = arith.constant 0 : i32
    %c0_i32_1 = arith.constant 0 : i32
    return %c0_i32, %c0_i32_0 : i32, i32
  }
  func.func @transform_8(%arg0: i32) -> (i32, i32) {
    %c0_i32 = arith.constant 0 : i32
    %c0_i32_0 = arith.constant 0 : i32
    %c0_i32_1 = arith.constant 0 : i32
    return %c0_i32, %c0_i32_0 : i32, i32
  }
  func.func @transform_9(%arg0: i32) -> (i32, i32) {
    %c0_i32 = arith.constant 0 : i32
    %c0_i32_0 = arith.constant 0 : i32
    %c0_i32_1 = arith.constant 0 : i32
    return %c0_i32, %c0_i32_0 : i32, i32
  }
  func.func @transform_10(%arg0: i32) -> (i32, i32, i32) {
    %c0_i32 = arith.constant 0 : i32
    %c0_i32_0 = arith.constant 0 : i32
    %c0_i32_1 = arith.constant 0 : i32
    return %arg0, %c0_i32, %c0_i32_0 : i32, i32, i32
  }
}

</mosaic_0001>

<llo_original>
// kernel: tpu_custom_call.1
$region0: #{tpu_custom_call.1}
  #allocation0 [shape = 'u32[]', space=smem, size = 0x4, offset = 0x4, fixed_abs, tag = 'smem constant byte address 0x4 - core index']
  #allocation1 [shape = 'u32[72,128]{1,0:T(1,128)}', space=vmem, size = 0x9000, scoped, tag = 'internal scratch']
  #allocation2 [shape = 'f32[128,32]{1,0:T(8,128)}', space=vmem, size = 0x10000, scoped, tag = 'scratch operand']
  %s0 = inlined_call_operand.vmem [shape: f32[1,128,32], index: 0, kind: input, shape index: {}]
  %s1 = inlined_call_operand.vmem [shape: f32[32,32], index: 1, kind: input, shape index: {}]
  %s2 = inlined_call_operand.vmem [shape: f32[2,32], index: 2, kind: input, shape index: {}]
  %s3 = inlined_call_operand.vmem [shape: f32[32,10], index: 3, kind: input, shape index: {}]
  %s4 = inlined_call_operand.vmem [shape: f32[1,10], index: 4, kind: input, shape index: {}]
  %s5 = inlined_call_operand.vmem [shape: f32[32,4], index: 5, kind: input, shape index: {}]
  %s6 = inlined_call_operand.vmem [shape: f32[1,4], index: 6, kind: input, shape index: {}]
  %s7 = inlined_call_operand.vmem [shape: f32[4,10], index: 7, kind: input, shape index: {}]
  %s8 = inlined_call_operand.vmem [shape: f32[1,10], index: 8, kind: input, shape index: {}]
  %s9 = inlined_call_operand.vmem [shape: f32[2,128], index: 9, kind: input, shape index: {}]
  %s10 = inlined_call_operand.hbm [shape: f32[1,2,10], index: 10, kind: output, shape index: {}]
  %s11 = sld [smem:[#allocation0]]
  $region50: #{tpu_custom_call.1} parent=0
    _
  %s13 = ssub.s32 1, %s11
  %s14 = scalar_select 0, %s13, %s11
  $region1: #{tpu_custom_call.1} parent=0
    #allocation3 [shape = 'u8[1024]{0}', space=vmem, size = 0x400, scoped, tag = 'output window, operand 0, single buffered']
    #allocation4 [shape = 's32[1]{0}', space=sflag, size = 0x4, scoped, tag = 'scoped memory for tpu_custom_call.1']
    %15 = vsyncpa [#allocation4], 0
    // Predicated region
    $region2: #{tpu_custom_call.1} parent=1 // pred_check
      _
    $region3: #{tpu_custom_call.1} parent=1 // pred_check_branch
      %17 = sbr.rel (0) target = $region5
    $region4: #{tpu_custom_call.1} parent=1 // pred_region
      _
    $region5: #{tpu_custom_call.1} parent=1 // pred_fallthru
      _
    // Predicated region
    $region6: #{tpu_custom_call.1} parent=1 // pred_check
      _
    $region7: #{tpu_custom_call.1} parent=1 // pred_check_branch
      %19 = sbr.rel (0) target = $region9
    $region8: #{tpu_custom_call.1} parent=1 // pred_region
      _
    $region9: #{tpu_custom_call.1} parent=1 // pred_fallthru
      _
    // Predicated region
    $region10: #{tpu_custom_call.1} parent=1 // pred_check
      _
    $region11: #{tpu_custom_call.1} parent=1 // pred_check_branch
      %21 = sbr.rel (0) target = $region13
    $region12: #{tpu_custom_call.1} parent=1 // pred_region
      _
    $region13: #{tpu_custom_call.1} parent=1 // pred_fallthru
      _
    // Predicated region
    $region14: #{tpu_custom_call.1} parent=1 // pred_check
      _
    $region15: #{tpu_custom_call.1} parent=1 // pred_check_branch
      %23 = sbr.rel (0) target = $region17
    $region16: #{tpu_custom_call.1} parent=1 // pred_region
      _
    $region17: #{tpu_custom_call.1} parent=1 // pred_fallthru
      _
    // Predicated region
    $region18: #{tpu_custom_call.1} parent=1 // pred_check
      _
    $region19: #{tpu_custom_call.1} parent=1 // pred_check_branch
      %25 = sbr.rel (0) target = $region21
    $region20: #{tpu_custom_call.1} parent=1 // pred_region
      _
    $region21: #{tpu_custom_call.1} parent=1 // pred_fallthru
      _
    // Predicated region
    $region22: #{tpu_custom_call.1} parent=1 // pred_check
      _
    $region23: #{tpu_custom_call.1} parent=1 // pred_check_branch
      %27 = sbr.rel (0) target = $region25
    $region24: #{tpu_custom_call.1} parent=1 // pred_region
      _
    $region25: #{tpu_custom_call.1} parent=1 // pred_fallthru
      _
    // Predicated region
    $region26: #{tpu_custom_call.1} parent=1 // pred_check
      _
    $region27: #{tpu_custom_call.1} parent=1 // pred_check_branch
      %29 = sbr.rel (0) target = $region29
    $region28: #{tpu_custom_call.1} parent=1 // pred_region
      _
    $region29: #{tpu_custom_call.1} parent=1 // pred_fallthru
      _
    // Predicated region
    $region30: #{tpu_custom_call.1} parent=1 // pred_check
      _
    $region31: #{tpu_custom_call.1} parent=1 // pred_check_branch
      %31 = sbr.rel (0) target = $region33
    $region32: #{tpu_custom_call.1} parent=1 // pred_region
      _
    $region33: #{tpu_custom_call.1} parent=1 // pred_fallthru
      _
    // Predicated region
    $region34: #{tpu_custom_call.1} parent=1 // pred_check
      _
    $region35: #{tpu_custom_call.1} parent=1 // pred_check_branch
      %33 = sbr.rel (0) target = $region37
    $region36: #{tpu_custom_call.1} parent=1 // pred_region
      _
    $region37: #{tpu_custom_call.1} parent=1 // pred_fallthru
      _
    // Predicated region
    $region38: #{tpu_custom_call.1} parent=1 // pred_check
      _
    $region39: #{tpu_custom_call.1} parent=1 // pred_check_branch
      %35 = sbr.rel (0) target = $region41
    $region40: #{tpu_custom_call.1} parent=1 // pred_region
      _
    $region41: #{tpu_custom_call.1} parent=1 // pred_fallthru
      _
    %v36 = vld [vmem:[%s0] sm:$0xff]
    %v37 = vld [vmem:[%s0 + $0x8] sm:$0xff]
    %v38 = vld [vmem:[%s0 + $0x10] sm:$0xff]
    %v39 = vld [vmem:[%s0 + $0x18] sm:$0xff]
    %v40 = vld [vmem:[%s0 + $0x20] sm:$0xff]
    %v41 = vld [vmem:[%s0 + $0x28] sm:$0xff]
    %v42 = vld [vmem:[%s0 + $0x30] sm:$0xff]
    %v43 = vld [vmem:[%s0 + $0x38] sm:$0xff]
    %v44 = vld [vmem:[%s0 + $0x40] sm:$0xff]
    %v45 = vld [vmem:[%s0 + $0x48] sm:$0xff]
    %v46 = vld [vmem:[%s0 + $0x50] sm:$0xff]
    %v47 = vld [vmem:[%s0 + $0x58] sm:$0xff]
    %v48 = vld [vmem:[%s0 + $0x60] sm:$0xff]
    %v49 = vld [vmem:[%s0 + $0x68] sm:$0xff]
    %v50 = vld [vmem:[%s0 + $0x70] sm:$0xff]
    %v51 = vld [vmem:[%s0 + $0x78] sm:$0xff]
    %v52 = vld [vmem:[%s1] sm:$0xff]
    %v53 = vld [vmem:[%s1 + $0x8] sm:$0xff]
    %v54 = vld [vmem:[%s1 + $0x10] sm:$0xff]
    %v55 = vld [vmem:[%s1 + $0x18] sm:$0xff]
    %vm56 = vcmask 261120
    %v58 = vsel %vm56, %v36, 0
    %v61 = vsel %vm56, %v37, 0
    %v64 = vsel %vm56, %v38, 0
    %v67 = vsel %vm56, %v39, 0
    %v70 = vsel %vm56, %v40, 0
    %v73 = vsel %vm56, %v41, 0
    %v76 = vsel %vm56, %v42, 0
    %v79 = vsel %vm56, %v43, 0
    %v82 = vsel %vm56, %v44, 0
    %v85 = vsel %vm56, %v45, 0
    %v88 = vsel %vm56, %v46, 0
    %v91 = vsel %vm56, %v47, 0
    %v94 = vsel %vm56, %v48, 0
    %v97 = vsel %vm56, %v49, 0
    %v100 = vsel %vm56, %v50, 0
    %v103 = vsel %vm56, %v51, 0
    %105 = vmatpush.msra.mxu0 0.0
    %106 = vmatpush.msra.mxu0 0.0
    %107 = vmatpush.msra.mxu0 0.0
    %108 = vmatpush.msra.mxu0 0.0
    %109 = vmatpush.msra.mxu0 0.0
    %110 = vmatpush.msra.mxu0 0.0
    %111 = vmatpush.msra.mxu0 0.0
    %112 = vmatpush.msra.mxu0 0.0
    %113 = vmatpush.msra.mxu0 0.0
    %114 = vmatpush.msra.mxu0 0.0
    %115 = vmatpush.msra.mxu0 0.0
    %116 = vmatpush.msra.mxu0 0.0
    %117 = vmatpush.msra.mxu0 %v55
    %118 = vmatpush.msra.mxu0 %v54
    %119 = vmatpush.msra.mxu0 %v53
    %120 = vmatpush.msra.mxu0 %v52
    %121 = vmatmul.f32.gmra.mxu0 %v58
    %v122 = vpop.f32.mrf.mxu0
    %v123 = vadd.f32 0.0, %v122
    %124 = vmatmul.f32.gmra.mxu0 %v61
    %v125 = vpop.f32.mrf.mxu0
    %v126 = vadd.f32 0.0, %v125
    %127 = vmatmul.f32.gmra.mxu0 %v64
    %v128 = vpop.f32.mrf.mxu0
    %v129 = vadd.f32 0.0, %v128
    %130 = vmatmul.f32.gmra.mxu0 %v67
    %v131 = vpop.f32.mrf.mxu0
    %v132 = vadd.f32 0.0, %v131
    %133 = vmatmul.f32.gmra.mxu0 %v70
    %v134 = vpop.f32.mrf.mxu0
    %v135 = vadd.f32 0.0, %v134
    %136 = vmatmul.f32.gmra.mxu0 %v73
    %v137 = vpop.f32.mrf.mxu0
    %v138 = vadd.f32 0.0, %v137
    %139 = vmatmul.f32.gmra.mxu0 %v76
    %v140 = vpop.f32.mrf.mxu0
    %v141 = vadd.f32 0.0, %v140
    %142 = vmatmul.f32.gmra.mxu0 %v79
    %v143 = vpop.f32.mrf.mxu0
    %v144 = vadd.f32 0.0, %v143
    %145 = vmatmul.f32.gmra.mxu0 %v82
    %v146 = vpop.f32.mrf.mxu0
    %v147 = vadd.f32 0.0, %v146
    %148 = vmatmul.f32.gmra.mxu0 %v85
    %v149 = vpop.f32.mrf.mxu0
    %v150 = vadd.f32 0.0, %v149
    %151 = vmatmul.f32.gmra.mxu0 %v88
    %v152 = vpop.f32.mrf.mxu0
    %v153 = vadd.f32 0.0, %v152
    %154 = vmatmul.f32.gmra.mxu0 %v91
    %v155 = vpop.f32.mrf.mxu0
    %v156 = vadd.f32 0.0, %v155
    %157 = vmatmul.f32.gmra.mxu0 %v94
    %v158 = vpop.f32.mrf.mxu0
    %v159 = vadd.f32 0.0, %v158
    %160 = vmatmul.f32.gmra.mxu0 %v97
    %v161 = vpop.f32.mrf.mxu0
    %v162 = vadd.f32 0.0, %v161
    %163 = vmatmul.f32.gmra.mxu0 %v100
    %v164 = vpop.f32.mrf.mxu0
    %v165 = vadd.f32 0.0, %v164
    %166 = vmatmul.f32.gmra.mxu0 %v103
    %v167 = vpop.f32.mrf.mxu0
    %v168 = vadd.f32 0.0, %v167
    %169 = vdwg.mxu0
    %v170 = vld [vmem:[%s2] sm:$0x3]
    %v171 = vperm.slane %v170, 0
    %v172 = vmul.f32 %v171, 0.0
    %v173 = vadd.f32 %v123, %v172
    %v174 = vperm.slane %v170, 1
    %v175 = vmul.f32 %v174, 0.0
    %v176 = vadd.f32 %v173, %v175
    %v177 = vmul.f32 %v176, 2.0
    %v178 = vtanh.pop %v177
    %180 = vrot.lane.b32.xlu0 %v178, 127
    %v181 = vpop.permute.xlu0 %180
    %183 = vrot.lane.b32.xlu0 %v178, 31
    %v184 = vpop.permute.xlu0 %183
    %vm186 = vcmask 252928
    %v187 = vsel %vm186, %v181, %v184
    %v188 = vmul.f32 %v187, %v171
    %v190 = vrot.slane %v188, 6
    %v192 = vadd.f32 %v123, %v190
    %193 = vrot.lane.b32.xlu0 %v178, 126
    %v194 = vpop.permute.xlu0 %193
    %196 = vrot.lane.b32.xlu0 %v178, 30
    %v197 = vpop.permute.xlu0 %196
    %vm199 = vcmask 244736
    %v200 = vsel %vm199, %v194, %v197
    %v201 = vmul.f32 %v200, %v174
    %v203 = vrot.slane %v201, 6
    %v205 = vadd.f32 %v192, %v203
    %v206 = vmul.f32 %v205, 2.0
    %v207 = vtanh.pop %v206
    %209 = vrot.lane.b32.xlu0 %v207, 127
    %v210 = vpop.permute.xlu0 %209
    %212 = vrot.lane.b32.xlu0 %v207, 31
    %v213 = vpop.permute.xlu0 %212
    %v215 = vsel %vm186, %v210, %v213
    %v216 = vmul.f32 %v215, %v171
    %v218 = vrot.slane %v216, 6
    %v220 = vadd.f32 %v123, %v218
    %221 = vrot.lane.b32.xlu0 %v207, 126
    %v222 = vpop.permute.xlu0 %221
    %224 = vrot.lane.b32.xlu0 %v207, 30
    %v225 = vpop.permute.xlu0 %224
    %v227 = vsel %vm199, %v222, %v225
    %v228 = vmul.f32 %v227, %v174
    %v230 = vrot.slane %v228, 6
    %v232 = vadd.f32 %v220, %v230
    %v233 = vmul.f32 %v232, 2.0
    %v234 = vtanh.pop %v233
    %236 = vrot.lane.b32.xlu0 %v234, 127
    %v237 = vpop.permute.xlu0 %236
    %239 = vrot.lane.b32.xlu0 %v234, 31
    %v240 = vpop.permute.xlu0 %239
    %v242 = vsel %vm186, %v237, %v240
    %v243 = vmul.f32 %v242, %v171
    %v245 = vrot.slane %v243, 6
    %v247 = vadd.f32 %v123, %v245
    %248 = vrot.lane.b32.xlu0 %v234, 126
    %v249 = vpop.permute.xlu0 %248
    %251 = vrot.lane.b32.xlu0 %v234, 30
    %v252 = vpop.permute.xlu0 %251
    %v254 = vsel %vm199, %v249, %v252
    %v255 = vmul.f32 %v254, %v174
    %v257 = vrot.slane %v255, 6
    %v259 = vadd.f32 %v247, %v257
    %v260 = vmul.f32 %v259, 2.0
    %v261 = vtanh.pop %v260
    %vm262 = vcmask 1041408
    %v263 = vsel %vm262, %v178, %v207
    %vm264 = vcmask 1043456
    %v265 = vsel %vm264, %v263, %v234
    %vm266 = vcmask 1045504
    %v267 = vsel %vm266, %v265, %v261
    %268 = vst.msk [vmem:[#allocation2] sm:$0xff] %vm56, %v267
    %270 = vrot.lane.b32.xlu0 %v261, 127
    %v271 = vpop.permute.xlu0 %270
    %273 = vrot.lane.b32.xlu0 %v261, 31
    %v274 = vpop.permute.xlu0 %273
    %v276 = vsel %vm186, %v271, %v274
    %v277 = vmul.f32 %v276, %v171
    %v279 = vrot.slane %v277, 6
    %v281 = vadd.f32 %v126, %v279
    %282 = vrot.lane.b32.xlu0 %v261, 126
    %v283 = vpop.permute.xlu0 %282
    %285 = vrot.lane.b32.xlu0 %v261, 30
    %v286 = vpop.permute.xlu0 %285
    %v288 = vsel %vm199, %v283, %v286
    %v289 = vmul.f32 %v288, %v174
    %v291 = vrot.slane %v289, 6
    %v293 = vadd.f32 %v281, %v291
    %v294 = vmul.f32 %v293, 2.0
    %v295 = vtanh.pop %v294
    %297 = vrot.lane.b32.xlu0 %v295, 127
    %v298 = vpop.permute.xlu0 %297
    %300 = vrot.lane.b32.xlu0 %v295, 31
    %v301 = vpop.permute.xlu0 %300
    %v303 = vsel %vm186, %v298, %v301
    %v304 = vmul.f32 %v303, %v171
    %v306 = vrot.slane %v304, 6
    %v308 = vadd.f32 %v126, %v306
    %309 = vrot.lane.b32.xlu0 %v295, 126
    %v310 = vpop.permute.xlu0 %309
    %312 = vrot.lane.b32.xlu0 %v295, 30
    %v313 = vpop.permute.xlu0 %312
    %v315 = vsel %vm199, %v310, %v313
    %v316 = vmul.f32 %v315, %v174
    %v318 = vrot.slane %v316, 6
    %v320 = vadd.f32 %v308, %v318
    %v321 = vmul.f32 %v320, 2.0
    %v322 = vtanh.pop %v321
    %324 = vrot.lane.b32.xlu0 %v322, 127
    %v325 = vpop.permute.xlu0 %324
    %327 = vrot.lane.b32.xlu0 %v322, 31
    %v328 = vpop.permute.xlu0 %327
    %v330 = vsel %vm186, %v325, %v328
    %v331 = vmul.f32 %v330, %v171
    %v333 = vrot.slane %v331, 6
    %v335 = vadd.f32 %v126, %v333
    %336 = vrot.lane.b32.xlu0 %v322, 126
    %v337 = vpop.permute.xlu0 %336
    %339 = vrot.lane.b32.xlu0 %v322, 30
    %v340 = vpop.permute.xlu0 %339
    %v342 = vsel %vm199, %v337, %v340
    %v343 = vmul.f32 %v342, %v174
    %v345 = vrot.slane %v343, 6
    %v347 = vadd.f32 %v335, %v345
    %v348 = vmul.f32 %v347, 2.0
    %v349 = vtanh.pop %v348
    %351 = vrot.lane.b32.xlu0 %v349, 127
    %v352 = vpop.permute.xlu0 %351
    %354 = vrot.lane.b32.xlu0 %v349, 31
    %v355 = vpop.permute.xlu0 %354
    %v357 = vsel %vm186, %v352, %v355
    %v358 = vmul.f32 %v357, %v171
    %v360 = vrot.slane %v358, 6
    %v362 = vadd.f32 %v126, %v360
    %363 = vrot.lane.b32.xlu0 %v349, 126
    %v364 = vpop.permute.xlu0 %363
    %366 = vrot.lane.b32.xlu0 %v349, 30
    %v367 = vpop.permute.xlu0 %366
    %v369 = vsel %vm199, %v364, %v367
    %v370 = vmul.f32 %v369, %v174
    %v372 = vrot.slane %v370, 6
    %v374 = vadd.f32 %v362, %v372
    %v375 = vmul.f32 %v374, 2.0
    %v376 = vtanh.pop %v375
    %v377 = vsel %vm262, %v295, %v322
    %v378 = vsel %vm264, %v377, %v349
    %v379 = vsel %vm266, %v378, %v376
    %380 = vst.msk [vmem:[#allocation2 + $0x8] sm:$0xff] %vm56, %v379
    %382 = vrot.lane.b32.xlu0 %v376, 127
    %v383 = vpop.permute.xlu0 %382
    %385 = vrot.lane.b32.xlu0 %v376, 31
    %v386 = vpop.permute.xlu0 %385
    %v388 = vsel %vm186, %v383, %v386
    %v389 = vmul.f32 %v388, %v171
    %v391 = vrot.slane %v389, 6
    %v393 = vadd.f32 %v129, %v391
    %394 = vrot.lane.b32.xlu0 %v376, 126
    %v395 = vpop.permute.xlu0 %394
    %397 = vrot.lane.b32.xlu0 %v376, 30
    %v398 = vpop.permute.xlu0 %397
    %v400 = vsel %vm199, %v395, %v398
    %v401 = vmul.f32 %v400, %v174
    %v403 = vrot.slane %v401, 6
    %v405 = vadd.f32 %v393, %v403
    %v406 = vmul.f32 %v405, 2.0
    %v407 = vtanh.pop %v406
    %409 = vrot.lane.b32.xlu0 %v407, 127
    %v410 = vpop.permute.xlu0 %409
    %412 = vrot.lane.b32.xlu0 %v407, 31
    %v413 = vpop.permute.xlu0 %412
    %v415 = vsel %vm186, %v410, %v413
    %v416 = vmul.f32 %v415, %v171
    %v418 = vrot.slane %v416, 6
    %v420 = vadd.f32 %v129, %v418
    %421 = vrot.lane.b32.xlu0 %v407, 126
    %v422 = vpop.permute.xlu0 %421
    %424 = vrot.lane.b32.xlu0 %v407, 30
    %v425 = vpop.permute.xlu0 %424
    %v427 = vsel %vm199, %v422, %v425
    %v428 = vmul.f32 %v427, %v174
    %v430 = vrot.slane %v428, 6
    %v432 = vadd.f32 %v420, %v430
    %v433 = vmul.f32 %v432, 2.0
    %v434 = vtanh.pop %v433
    %436 = vrot.lane.b32.xlu0 %v434, 127
    %v437 = vpop.permute.xlu0 %436
    %439 = vrot.lane.b32.xlu0 %v434, 31
    %v440 = vpop.permute.xlu0 %439
    %v442 = vsel %vm186, %v437, %v440
    %v443 = vmul.f32 %v442, %v171
    %v445 = vrot.slane %v443, 6
    %v447 = vadd.f32 %v129, %v445
    %448 = vrot.lane.b32.xlu0 %v434, 126
    %v449 = vpop.permute.xlu0 %448
    %451 = vrot.lane.b32.xlu0 %v434, 30
    %v452 = vpop.permute.xlu0 %451
    %v454 = vsel %vm199, %v449, %v452
    %v455 = vmul.f32 %v454, %v174
    %v457 = vrot.slane %v455, 6
    %v459 = vadd.f32 %v447, %v457
    %v460 = vmul.f32 %v459, 2.0
    %v461 = vtanh.pop %v460
    %463 = vrot.lane.b32.xlu0 %v461, 127
    %v464 = vpop.permute.xlu0 %463
    %466 = vrot.lane.b32.xlu0 %v461, 31
    %v467 = vpop.permute.xlu0 %466
    %v469 = vsel %vm186, %v464, %v467
    %v470 = vmul.f32 %v469, %v171
    %v472 = vrot.slane %v470, 6
    %v474 = vadd.f32 %v129, %v472
    %475 = vrot.lane.b32.xlu0 %v461, 126
    %v476 = vpop.permute.xlu0 %475
    %478 = vrot.lane.b32.xlu0 %v461, 30
    %v479 = vpop.permute.xlu0 %478
    %v481 = vsel %vm199, %v476, %v479
    %v482 = vmul.f32 %v481, %v174
    %v484 = vrot.slane %v482, 6
    %v486 = vadd.f32 %v474, %v484
    %v487 = vmul.f32 %v486, 2.0
    %v488 = vtanh.pop %v487
    %v489 = vsel %vm262, %v407, %v434
    %v490 = vsel %vm264, %v489, %v461
    %v491 = vsel %vm266, %v490, %v488
    %492 = vst.msk [vmem:[#allocation2 + $0x10] sm:$0xff] %vm56, %v491
    %494 = vrot.lane.b32.xlu0 %v488, 127
    %v495 = vpop.permute.xlu0 %494
    %497 = vrot.lane.b32.xlu0 %v488, 31
    %v498 = vpop.permute.xlu0 %497
    %v500 = vsel %vm186, %v495, %v498
    %v501 = vmul.f32 %v500, %v171
    %v503 = vrot.slane %v501, 6
    %v505 = vadd.f32 %v132, %v503
    %506 = vrot.lane.b32.xlu0 %v488, 126
    %v507 = vpop.permute.xlu0 %506
    %509 = vrot.lane.b32.xlu0 %v488, 30
    %v510 = vpop.permute.xlu0 %509
    %v512 = vsel %vm199, %v507, %v510
    %v513 = vmul.f32 %v512, %v174
    %v515 = vrot.slane %v513, 6
    %v517 = vadd.f32 %v505, %v515
    %v518 = vmul.f32 %v517, 2.0
    %v519 = vtanh.pop %v518
    %521 = vrot.lane.b32.xlu0 %v519, 127
    %v522 = vpop.permute.xlu0 %521
    %524 = vrot.lane.b32.xlu0 %v519, 31
    %v525 = vpop.permute.xlu0 %524
    %v527 = vsel %vm186, %v522, %v525
    %v528 = vmul.f32 %v527, %v171
    %v530 = vrot.slane %v528, 6
    %v532 = vadd.f32 %v132, %v530
    %533 = vrot.lane.b32.xlu0 %v519, 126
    %v534 = vpop.permute.xlu0 %533
    %536 = vrot.lane.b32.xlu0 %v519, 30
    %v537 = vpop.permute.xlu0 %536
    %v539 = vsel %vm199, %v534, %v537
    %v540 = vmul.f32 %v539, %v174
    %v542 = vrot.slane %v540, 6
    %v544 = vadd.f32 %v532, %v542
    %v545 = vmul.f32 %v544, 2.0
    %v546 = vtanh.pop %v545
    %548 = vrot.lane.b32.xlu0 %v546, 127
    %v549 = vpop.permute.xlu0 %548
    %551 = vrot.lane.b32.xlu0 %v546, 31
    %v552 = vpop.permute.xlu0 %551
    %v554 = vsel %vm186, %v549, %v552
    %v555 = vmul.f32 %v554, %v171
    %v557 = vrot.slane %v555, 6
    %v559 = vadd.f32 %v132, %v557
    %560 = vrot.lane.b32.xlu0 %v546, 126
    %v561 = vpop.permute.xlu0 %560
    %563 = vrot.lane.b32.xlu0 %v546, 30
    %v564 = vpop.permute.xlu0 %563
    %v566 = vsel %vm199, %v561, %v564
    %v567 = vmul.f32 %v566, %v174
    %v569 = vrot.slane %v567, 6
    %v571 = vadd.f32 %v559, %v569
    %v572 = vmul.f32 %v571, 2.0
    %v573 = vtanh.pop %v572
    %575 = vrot.lane.b32.xlu0 %v573, 127
    %v576 = vpop.permute.xlu0 %575
    %578 = vrot.lane.b32.xlu0 %v573, 31
    %v579 = vpop.permute.xlu0 %578
    %v581 = vsel %vm186, %v576, %v579
    %v582 = vmul.f32 %v581, %v171
    %v584 = vrot.slane %v582, 6
    %v586 = vadd.f32 %v132, %v584
    %587 = vrot.lane.b32.xlu0 %v573, 126
    %v588 = vpop.permute.xlu0 %587
    %590 = vrot.lane.b32.xlu0 %v573, 30
    %v591 = vpop.permute.xlu0 %590
    %v593 = vsel %vm199, %v588, %v591
    %v594 = vmul.f32 %v593, %v174
    %v596 = vrot.slane %v594, 6
    %v598 = vadd.f32 %v586, %v596
    %v599 = vmul.f32 %v598, 2.0
    %v600 = vtanh.pop %v599
    %v601 = vsel %vm262, %v519, %v546
    %v602 = vsel %vm264, %v601, %v573
    %v603 = vsel %vm266, %v602, %v600
    %604 = vst.msk [vmem:[#allocation2 + $0x18] sm:$0xff] %vm56, %v603
    %606 = vrot.lane.b32.xlu0 %v600, 127
    %v607 = vpop.permute.xlu0 %606
    %609 = vrot.lane.b32.xlu0 %v600, 31
    %v610 = vpop.permute.xlu0 %609
    %v612 = vsel %vm186, %v607, %v610
    %v613 = vmul.f32 %v612, %v171
    %v615 = vrot.slane %v613, 6
    %v617 = vadd.f32 %v135, %v615
    %618 = vrot.lane.b32.xlu0 %v600, 126
    %v619 = vpop.permute.xlu0 %618
    %621 = vrot.lane.b32.xlu0 %v600, 30
    %v622 = vpop.permute.xlu0 %621
    %v624 = vsel %vm199, %v619, %v622
    %v625 = vmul.f32 %v624, %v174
    %v627 = vrot.slane %v625, 6
    %v629 = vadd.f32 %v617, %v627
    %v630 = vmul.f32 %v629, 2.0
    %v631 = vtanh.pop %v630
    %633 = vrot.lane.b32.xlu0 %v631, 127
    %v634 = vpop.permute.xlu0 %633
    %636 = vrot.lane.b32.xlu0 %v631, 31
    %v637 = vpop.permute.xlu0 %636
    %v639 = vsel %vm186, %v634, %v637
    %v640 = vmul.f32 %v639, %v171
    %v642 = vrot.slane %v640, 6
    %v644 = vadd.f32 %v135, %v642
    %645 = vrot.lane.b32.xlu0 %v631, 126
    %v646 = vpop.permute.xlu0 %645
    %648 = vrot.lane.b32.xlu0 %v631, 30
    %v649 = vpop.permute.xlu0 %648
    %v651 = vsel %vm199, %v646, %v649
    %v652 = vmul.f32 %v651, %v174
    %v654 = vrot.slane %v652, 6
    %v656 = vadd.f32 %v644, %v654
    %v657 = vmul.f32 %v656, 2.0
    %v658 = vtanh.pop %v657
    %660 = vrot.lane.b32.xlu0 %v658, 127
    %v661 = vpop.permute.xlu0 %660
    %663 = vrot.lane.b32.xlu0 %v658, 31
    %v664 = vpop.permute.xlu0 %663
    %v666 = vsel %vm186, %v661, %v664
    %v667 = vmul.f32 %v666, %v171
    %v669 = vrot.slane %v667, 6
    %v671 = vadd.f32 %v135, %v669
    %672 = vrot.lane.b32.xlu0 %v658, 126
    %v673 = vpop.permute.xlu0 %672
    %675 = vrot.lane.b32.xlu0 %v658, 30
    %v676 = vpop.permute.xlu0 %675
    %v678 = vsel %vm199, %v673, %v676
    %v679 = vmul.f32 %v678, %v174
    %v681 = vrot.slane %v679, 6
    %v683 = vadd.f32 %v671, %v681
    %v684 = vmul.f32 %v683, 2.0
    %v685 = vtanh.pop %v684
    %687 = vrot.lane.b32.xlu0 %v685, 127
    %v688 = vpop.permute.xlu0 %687
    %690 = vrot.lane.b32.xlu0 %v685, 31
    %v691 = vpop.permute.xlu0 %690
    %v693 = vsel %vm186, %v688, %v691
    %v694 = vmul.f32 %v693, %v171
    %v696 = vrot.slane %v694, 6
    %v698 = vadd.f32 %v135, %v696
    %699 = vrot.lane.b32.xlu0 %v685, 126
    %v700 = vpop.permute.xlu0 %699
    %702 = vrot.lane.b32.xlu0 %v685, 30
    %v703 = vpop.permute.xlu0 %702
    %v705 = vsel %vm199, %v700, %v703
    %v706 = vmul.f32 %v705, %v174
    %v708 = vrot.slane %v706, 6
    %v710 = vadd.f32 %v698, %v708
    %v711 = vmul.f32 %v710, 2.0
    %v712 = vtanh.pop %v711
    %v713 = vsel %vm262, %v631, %v658
    %v714 = vsel %vm264, %v713, %v685
    %v715 = vsel %vm266, %v714, %v712
    %716 = vst.msk [vmem:[#allocation2 + $0x20] sm:$0xff] %vm56, %v715
    %718 = vrot.lane.b32.xlu0 %v712, 127
    %v719 = vpop.permute.xlu0 %718
    %721 = vrot.lane.b32.xlu0 %v712, 31
    %v722 = vpop.permute.xlu0 %721
    %v724 = vsel %vm186, %v719, %v722
    %v725 = vmul.f32 %v724, %v171
    %v727 = vrot.slane %v725, 6
    %v729 = vadd.f32 %v138, %v727
    %730 = vrot.lane.b32.xlu0 %v712, 126
    %v731 = vpop.permute.xlu0 %730
    %733 = vrot.lane.b32.xlu0 %v712, 30
    %v734 = vpop.permute.xlu0 %733
    %v736 = vsel %vm199, %v731, %v734
    %v737 = vmul.f32 %v736, %v174
    %v739 = vrot.slane %v737, 6
    %v741 = vadd.f32 %v729, %v739
    %v742 = vmul.f32 %v741, 2.0
    %v743 = vtanh.pop %v742
    %745 = vrot.lane.b32.xlu0 %v743, 127
    %v746 = vpop.permute.xlu0 %745
    %748 = vrot.lane.b32.xlu0 %v743, 31
    %v749 = vpop.permute.xlu0 %748
    %v751 = vsel %vm186, %v746, %v749
    %v752 = vmul.f32 %v751, %v171
    %v754 = vrot.slane %v752, 6
    %v756 = vadd.f32 %v138, %v754
    %757 = vrot.lane.b32.xlu0 %v743, 126
    %v758 = vpop.permute.xlu0 %757
    %760 = vrot.lane.b32.xlu0 %v743, 30
    %v761 = vpop.permute.xlu0 %760
    %v763 = vsel %vm199, %v758, %v761
    %v764 = vmul.f32 %v763, %v174
    %v766 = vrot.slane %v764, 6
    %v768 = vadd.f32 %v756, %v766
    %v769 = vmul.f32 %v768, 2.0
    %v770 = vtanh.pop %v769
    %772 = vrot.lane.b32.xlu0 %v770, 127
    %v773 = vpop.permute.xlu0 %772
    %775 = vrot.lane.b32.xlu0 %v770, 31
    %v776 = vpop.permute.xlu0 %775
    %v778 = vsel %vm186, %v773, %v776
    %v779 = vmul.f32 %v778, %v171
    %v781 = vrot.slane %v779, 6
    %v783 = vadd.f32 %v138, %v781
    %784 = vrot.lane.b32.xlu0 %v770, 126
    %v785 = vpop.permute.xlu0 %784
    %787 = vrot.lane.b32.xlu0 %v770, 30
    %v788 = vpop.permute.xlu0 %787
    %v790 = vsel %vm199, %v785, %v788
    %v791 = vmul.f32 %v790, %v174
    %v793 = vrot.slane %v791, 6
    %v795 = vadd.f32 %v783, %v793
    %v796 = vmul.f32 %v795, 2.0
    %v797 = vtanh.pop %v796
    %799 = vrot.lane.b32.xlu0 %v797, 127
    %v800 = vpop.permute.xlu0 %799
    %802 = vrot.lane.b32.xlu0 %v797, 31
    %v803 = vpop.permute.xlu0 %802
    %v805 = vsel %vm186, %v800, %v803
    %v806 = vmul.f32 %v805, %v171
    %v808 = vrot.slane %v806, 6
    %v810 = vadd.f32 %v138, %v808
    %811 = vrot.lane.b32.xlu0 %v797, 126
    %v812 = vpop.permute.xlu0 %811
    %814 = vrot.lane.b32.xlu0 %v797, 30
    %v815 = vpop.permute.xlu0 %814
    %v817 = vsel %vm199, %v812, %v815
    %v818 = vmul.f32 %v817, %v174
    %v820 = vrot.slane %v818, 6
    %v822 = vadd.f32 %v810, %v820
    %v823 = vmul.f32 %v822, 2.0
    %v824 = vtanh.pop %v823
    %v825 = vsel %vm262, %v743, %v770
    %v826 = vsel %vm264, %v825, %v797
    %v827 = vsel %vm266, %v826, %v824
    %828 = vst.msk [vmem:[#allocation2 + $0x28] sm:$0xff] %vm56, %v827
    %830 = vrot.lane.b32.xlu0 %v824, 127
    %v831 = vpop.permute.xlu0 %830
    %833 = vrot.lane.b32.xlu0 %v824, 31
    %v834 = vpop.permute.xlu0 %833
    %v836 = vsel %vm186, %v831, %v834
    %v837 = vmul.f32 %v836, %v171
    %v839 = vrot.slane %v837, 6
    %v841 = vadd.f32 %v141, %v839
    %842 = vrot.lane.b32.xlu0 %v824, 126
    %v843 = vpop.permute.xlu0 %842
    %845 = vrot.lane.b32.xlu0 %v824, 30
    %v846 = vpop.permute.xlu0 %845
    %v848 = vsel %vm199, %v843, %v846
    %v849 = vmul.f32 %v848, %v174
    %v851 = vrot.slane %v849, 6
    %v853 = vadd.f32 %v841, %v851
    %v854 = vmul.f32 %v853, 2.0
    %v855 = vtanh.pop %v854
    %857 = vrot.lane.b32.xlu0 %v855, 127
    %v858 = vpop.permute.xlu0 %857
    %860 = vrot.lane.b32.xlu0 %v855, 31
    %v861 = vpop.permute.xlu0 %860
    %v863 = vsel %vm186, %v858, %v861
    %v864 = vmul.f32 %v863, %v171
    %v866 = vrot.slane %v864, 6
    %v868 = vadd.f32 %v141, %v866
    %869 = vrot.lane.b32.xlu0 %v855, 126
    %v870 = vpop.permute.xlu0 %869
    %872 = vrot.lane.b32.xlu0 %v855, 30
    %v873 = vpop.permute.xlu0 %872
    %v875 = vsel %vm199, %v870, %v873
    %v876 = vmul.f32 %v875, %v174
    %v878 = vrot.slane %v876, 6
    %v880 = vadd.f32 %v868, %v878
    %v881 = vmul.f32 %v880, 2.0
    %v882 = vtanh.pop %v881
    %884 = vrot.lane.b32.xlu0 %v882, 127
    %v885 = vpop.permute.xlu0 %884
    %887 = vrot.lane.b32.xlu0 %v882, 31
    %v888 = vpop.permute.xlu0 %887
    %v890 = vsel %vm186, %v885, %v888
    %v891 = vmul.f32 %v890, %v171
    %v893 = vrot.slane %v891, 6
    %v895 = vadd.f32 %v141, %v893
    %896 = vrot.lane.b32.xlu0 %v882, 126
    %v897 = vpop.permute.xlu0 %896
    %899 = vrot.lane.b32.xlu0 %v882, 30
    %v900 = vpop.permute.xlu0 %899
    %v902 = vsel %vm199, %v897, %v900
    %v903 = vmul.f32 %v902, %v174
    %v905 = vrot.slane %v903, 6
    %v907 = vadd.f32 %v895, %v905
    %v908 = vmul.f32 %v907, 2.0
    %v909 = vtanh.pop %v908
    %911 = vrot.lane.b32.xlu0 %v909, 127
    %v912 = vpop.permute.xlu0 %911
    %914 = vrot.lane.b32.xlu0 %v909, 31
    %v915 = vpop.permute.xlu0 %914
    %v917 = vsel %vm186, %v912, %v915
    %v918 = vmul.f32 %v917, %v171
    %v920 = vrot.slane %v918, 6
    %v922 = vadd.f32 %v141, %v920
    %923 = vrot.lane.b32.xlu0 %v909, 126
    %v924 = vpop.permute.xlu0 %923
    %926 = vrot.lane.b32.xlu0 %v909, 30
    %v927 = vpop.permute.xlu0 %926
    %v929 = vsel %vm199, %v924, %v927
    %v930 = vmul.f32 %v929, %v174
    %v932 = vrot.slane %v930, 6
    %v934 = vadd.f32 %v922, %v932
    %v935 = vmul.f32 %v934, 2.0
    %v936 = vtanh.pop %v935
    %v937 = vsel %vm262, %v855, %v882
    %v938 = vsel %vm264, %v937, %v909
    %v939 = vsel %vm266, %v938, %v936
    %940 = vst.msk [vmem:[#allocation2 + $0x30] sm:$0xff] %vm56, %v939
    %942 = vrot.lane.b32.xlu0 %v936, 127
    %v943 = vpop.permute.xlu0 %942
    %945 = vrot.lane.b32.xlu0 %v936, 31
    %v946 = vpop.permute.xlu0 %945
    %v948 = vsel %vm186, %v943, %v946
    %v949 = vmul.f32 %v948, %v171
    %v951 = vrot.slane %v949, 6
    %v953 = vadd.f32 %v144, %v951
    %954 = vrot.lane.b32.xlu0 %v936, 126
    %v955 = vpop.permute.xlu0 %954
    %957 = vrot.lane.b32.xlu0 %v936, 30
    %v958 = vpop.permute.xlu0 %957
    %v960 = vsel %vm199, %v955, %v958
    %v961 = vmul.f32 %v960, %v174
    %v963 = vrot.slane %v961, 6
    %v965 = vadd.f32 %v953, %v963
    %v966 = vmul.f32 %v965, 2.0
    %v967 = vtanh.pop %v966
    %969 = vrot.lane.b32.xlu0 %v967, 127
    %v970 = vpop.permute.xlu0 %969
    %972 = vrot.lane.b32.xlu0 %v967, 31
    %v973 = vpop.permute.xlu0 %972
    %v975 = vsel %vm186, %v970, %v973
    %v976 = vmul.f32 %v975, %v171
    %v978 = vrot.slane %v976, 6
    %v980 = vadd.f32 %v144, %v978
    %981 = vrot.lane.b32.xlu0 %v967, 126
    %v982 = vpop.permute.xlu0 %981
    %984 = vrot.lane.b32.xlu0 %v967, 30
    %v985 = vpop.permute.xlu0 %984
    %v987 = vsel %vm199, %v982, %v985
    %v988 = vmul.f32 %v987, %v174
    %v990 = vrot.slane %v988, 6
    %v992 = vadd.f32 %v980, %v990
    %v993 = vmul.f32 %v992, 2.0
    %v994 = vtanh.pop %v993
    %996 = vrot.lane.b32.xlu0 %v994, 127
    %v997 = vpop.permute.xlu0 %996
    %999 = vrot.lane.b32.xlu0 %v994, 31
    %v1000 = vpop.permute.xlu0 %999
    %v1002 = vsel %vm186, %v997, %v1000
    %v1003 = vmul.f32 %v1002, %v171
    %v1005 = vrot.slane %v1003, 6
    %v1007 = vadd.f32 %v144, %v1005
    %1008 = vrot.lane.b32.xlu0 %v994, 126
    %v1009 = vpop.permute.xlu0 %1008
    %1011 = vrot.lane.b32.xlu0 %v994, 30
    %v1012 = vpop.permute.xlu0 %1011
    %v1014 = vsel %vm199, %v1009, %v1012
    %v1015 = vmul.f32 %v1014, %v174
    %v1017 = vrot.slane %v1015, 6
    %v1019 = vadd.f32 %v1007, %v1017
    %v1020 = vmul.f32 %v1019, 2.0
    %v1021 = vtanh.pop %v1020
    %1023 = vrot.lane.b32.xlu0 %v1021, 127
    %v1024 = vpop.permute.xlu0 %1023
    %1026 = vrot.lane.b32.xlu0 %v1021, 31
    %v1027 = vpop.permute.xlu0 %1026
    %v1029 = vsel %vm186, %v1024, %v1027
    %v1030 = vmul.f32 %v1029, %v171
    %v1032 = vrot.slane %v1030, 6
    %v1034 = vadd.f32 %v144, %v1032
    %1035 = vrot.lane.b32.xlu0 %v1021, 126
    %v1036 = vpop.permute.xlu0 %1035
    %1038 = vrot.lane.b32.xlu0 %v1021, 30
    %v1039 = vpop.permute.xlu0 %1038
    %v1041 = vsel %vm199, %v1036, %v1039
    %v1042 = vmul.f32 %v1041, %v174
    %v1044 = vrot.slane %v1042, 6
    %v1046 = vadd.f32 %v1034, %v1044
    %v1047 = vmul.f32 %v1046, 2.0
    %v1048 = vtanh.pop %v1047
    %v1049 = vsel %vm262, %v967, %v994
    %v1050 = vsel %vm264, %v1049, %v1021
    %v1051 = vsel %vm266, %v1050, %v1048
    %1052 = vst.msk [vmem:[#allocation2 + $0x38] sm:$0xff] %vm56, %v1051
    %1054 = vrot.lane.b32.xlu0 %v1048, 127
    %v1055 = vpop.permute.xlu0 %1054
    %1057 = vrot.lane.b32.xlu0 %v1048, 31
    %v1058 = vpop.permute.xlu0 %1057
    %v1060 = vsel %vm186, %v1055, %v1058
    %v1061 = vmul.f32 %v1060, %v171
    %v1063 = vrot.slane %v1061, 6
    %v1065 = vadd.f32 %v147, %v1063
    %1066 = vrot.lane.b32.xlu0 %v1048, 126
    %v1067 = vpop.permute.xlu0 %1066
    %1069 = vrot.lane.b32.xlu0 %v1048, 30
    %v1070 = vpop.permute.xlu0 %1069
    %v1072 = vsel %vm199, %v1067, %v1070
    %v1073 = vmul.f32 %v1072, %v174
    %v1075 = vrot.slane %v1073, 6
    %v1077 = vadd.f32 %v1065, %v1075
    %v1078 = vmul.f32 %v1077, 2.0
    %v1079 = vtanh.pop %v1078
    %1081 = vrot.lane.b32.xlu0 %v1079, 127
    %v1082 = vpop.permute.xlu0 %1081
    %1084 = vrot.lane.b32.xlu0 %v1079, 31
    %v1085 = vpop.permute.xlu0 %1084
    %v1087 = vsel %vm186, %v1082, %v1085
    %v1088 = vmul.f32 %v1087, %v171
    %v1090 = vrot.slane %v1088, 6
    %v1092 = vadd.f32 %v147, %v1090
    %1093 = vrot.lane.b32.xlu0 %v1079, 126
    %v1094 = vpop.permute.xlu0 %1093
    %1096 = vrot.lane.b32.xlu0 %v1079, 30
    %v1097 = vpop.permute.xlu0 %1096
    %v1099 = vsel %vm199, %v1094, %v1097
    %v1100 = vmul.f32 %v1099, %v174
    %v1102 = vrot.slane %v1100, 6
    %v1104 = vadd.f32 %v1092, %v1102
    %v1105 = vmul.f32 %v1104, 2.0
    %v1106 = vtanh.pop %v1105
    %1108 = vrot.lane.b32.xlu0 %v1106, 127
    %v1109 = vpop.permute.xlu0 %1108
    %1111 = vrot.lane.b32.xlu0 %v1106, 31
    %v1112 = vpop.permute.xlu0 %1111
    %v1114 = vsel %vm186, %v1109, %v1112
    %v1115 = vmul.f32 %v1114, %v171
    %v1117 = vrot.slane %v1115, 6
    %v1119 = vadd.f32 %v147, %v1117
    %1120 = vrot.lane.b32.xlu0 %v1106, 126
    %v1121 = vpop.permute.xlu0 %1120
    %1123 = vrot.lane.b32.xlu0 %v1106, 30
    %v1124 = vpop.permute.xlu0 %1123
    %v1126 = vsel %vm199, %v1121, %v1124
    %v1127 = vmul.f32 %v1126, %v174
    %v1129 = vrot.slane %v1127, 6
    %v1131 = vadd.f32 %v1119, %v1129
    %v1132 = vmul.f32 %v1131, 2.0
    %v1133 = vtanh.pop %v1132
    %1135 = vrot.lane.b32.xlu0 %v1133, 127
    %v1136 = vpop.permute.xlu0 %1135
    %1138 = vrot.lane.b32.xlu0 %v1133, 31
    %v1139 = vpop.permute.xlu0 %1138
    %v1141 = vsel %vm186, %v1136, %v1139
    %v1142 = vmul.f32 %v1141, %v171
    %v1144 = vrot.slane %v1142, 6
    %v1146 = vadd.f32 %v147, %v1144
    %1147 = vrot.lane.b32.xlu0 %v1133, 126
    %v1148 = vpop.permute.xlu0 %1147
    %1150 = vrot.lane.b32.xlu0 %v1133, 30
    %v1151 = vpop.permute.xlu0 %1150
    %v1153 = vsel %vm199, %v1148, %v1151
    %v1154 = vmul.f32 %v1153, %v174
    %v1156 = vrot.slane %v1154, 6
    %v1158 = vadd.f32 %v1146, %v1156
    %v1159 = vmul.f32 %v1158, 2.0
    %v1160 = vtanh.pop %v1159
    %v1161 = vsel %vm262, %v1079, %v1106
    %v1162 = vsel %vm264, %v1161, %v1133
    %v1163 = vsel %vm266, %v1162, %v1160
    %1164 = vst.msk [vmem:[#allocation2 + $0x40] sm:$0xff] %vm56, %v1163
    %1166 = vrot.lane.b32.xlu0 %v1160, 127
    %v1167 = vpop.permute.xlu0 %1166
    %1169 = vrot.lane.b32.xlu0 %v1160, 31
    %v1170 = vpop.permute.xlu0 %1169
    %v1172 = vsel %vm186, %v1167, %v1170
    %v1173 = vmul.f32 %v1172, %v171
    %v1175 = vrot.slane %v1173, 6
    %v1177 = vadd.f32 %v150, %v1175
    %1178 = vrot.lane.b32.xlu0 %v1160, 126
    %v1179 = vpop.permute.xlu0 %1178
    %1181 = vrot.lane.b32.xlu0 %v1160, 30
    %v1182 = vpop.permute.xlu0 %1181
    %v1184 = vsel %vm199, %v1179, %v1182
    %v1185 = vmul.f32 %v1184, %v174
    %v1187 = vrot.slane %v1185, 6
    %v1189 = vadd.f32 %v1177, %v1187
    %v1190 = vmul.f32 %v1189, 2.0
    %v1191 = vtanh.pop %v1190
    %1193 = vrot.lane.b32.xlu0 %v1191, 127
    %v1194 = vpop.permute.xlu0 %1193
    %1196 = vrot.lane.b32.xlu0 %v1191, 31
    %v1197 = vpop.permute.xlu0 %1196
    %v1199 = vsel %vm186, %v1194, %v1197
    %v1200 = vmul.f32 %v1199, %v171
    %v1202 = vrot.slane %v1200, 6
    %v1204 = vadd.f32 %v150, %v1202
    %1205 = vrot.lane.b32.xlu0 %v1191, 126
    %v1206 = vpop.permute.xlu0 %1205
    %1208 = vrot.lane.b32.xlu0 %v1191, 30
    %v1209 = vpop.permute.xlu0 %1208
    %v1211 = vsel %vm199, %v1206, %v1209
    %v1212 = vmul.f32 %v1211, %v174
    %v1214 = vrot.slane %v1212, 6
    %v1216 = vadd.f32 %v1204, %v1214
    %v1217 = vmul.f32 %v1216, 2.0
    %v1218 = vtanh.pop %v1217
    %1220 = vrot.lane.b32.xlu0 %v1218, 127
    %v1221 = vpop.permute.xlu0 %1220
    %1223 = vrot.lane.b32.xlu0 %v1218, 31
    %v1224 = vpop.permute.xlu0 %1223
    %v1226 = vsel %vm186, %v1221, %v1224
    %v1227 = vmul.f32 %v1226, %v171
    %v1229 = vrot.slane %v1227, 6
    %v1231 = vadd.f32 %v150, %v1229
    %1232 = vrot.lane.b32.xlu0 %v1218, 126
    %v1233 = vpop.permute.xlu0 %1232
    %1235 = vrot.lane.b32.xlu0 %v1218, 30
    %v1236 = vpop.permute.xlu0 %1235
    %v1238 = vsel %vm199, %v1233, %v1236
    %v1239 = vmul.f32 %v1238, %v174
    %v1241 = vrot.slane %v1239, 6
    %v1243 = vadd.f32 %v1231, %v1241
    %v1244 = vmul.f32 %v1243, 2.0
    %v1245 = vtanh.pop %v1244
    %1247 = vrot.lane.b32.xlu0 %v1245, 127
    %v1248 = vpop.permute.xlu0 %1247
    %1250 = vrot.lane.b32.xlu0 %v1245, 31
    %v1251 = vpop.permute.xlu0 %1250
    %v1253 = vsel %vm186, %v1248, %v1251
    %v1254 = vmul.f32 %v1253, %v171
    %v1256 = vrot.slane %v1254, 6
    %v1258 = vadd.f32 %v150, %v1256
    %1259 = vrot.lane.b32.xlu0 %v1245, 126
    %v1260 = vpop.permute.xlu0 %1259
    %1262 = vrot.lane.b32.xlu0 %v1245, 30
    %v1263 = vpop.permute.xlu0 %1262
    %v1265 = vsel %vm199, %v1260, %v1263
    %v1266 = vmul.f32 %v1265, %v174
    %v1268 = vrot.slane %v1266, 6
    %v1270 = vadd.f32 %v1258, %v1268
    %v1271 = vmul.f32 %v1270, 2.0
    %v1272 = vtanh.pop %v1271
    %v1273 = vsel %vm262, %v1191, %v1218
    %v1274 = vsel %vm264, %v1273, %v1245
    %v1275 = vsel %vm266, %v1274, %v1272
    %1276 = vst.msk [vmem:[#allocation2 + $0x48] sm:$0xff] %vm56, %v1275
    %1278 = vrot.lane.b32.xlu0 %v1272, 127
    %v1279 = vpop.permute.xlu0 %1278
    %1281 = vrot.lane.b32.xlu0 %v1272, 31
    %v1282 = vpop.permute.xlu0 %1281
    %v1284 = vsel %vm186, %v1279, %v1282
    %v1285 = vmul.f32 %v1284, %v171
    %v1287 = vrot.slane %v1285, 6
    %v1289 = vadd.f32 %v153, %v1287
    %1290 = vrot.lane.b32.xlu0 %v1272, 126
    %v1291 = vpop.permute.xlu0 %1290
    %1293 = vrot.lane.b32.xlu0 %v1272, 30
    %v1294 = vpop.permute.xlu0 %1293
    %v1296 = vsel %vm199, %v1291, %v1294
    %v1297 = vmul.f32 %v1296, %v174
    %v1299 = vrot.slane %v1297, 6
    %v1301 = vadd.f32 %v1289, %v1299
    %v1302 = vmul.f32 %v1301, 2.0
    %v1303 = vtanh.pop %v1302
    %1305 = vrot.lane.b32.xlu0 %v1303, 127
    %v1306 = vpop.permute.xlu0 %1305
    %1308 = vrot.lane.b32.xlu0 %v1303, 31
    %v1309 = vpop.permute.xlu0 %1308
    %v1311 = vsel %vm186, %v1306, %v1309
    %v1312 = vmul.f32 %v1311, %v171
    %v1314 = vrot.slane %v1312, 6
    %v1316 = vadd.f32 %v153, %v1314
    %1317 = vrot.lane.b32.xlu0 %v1303, 126
    %v1318 = vpop.permute.xlu0 %1317
    %1320 = vrot.lane.b32.xlu0 %v1303, 30
    %v1321 = vpop.permute.xlu0 %1320
    %v1323 = vsel %vm199, %v1318, %v1321
    %v1324 = vmul.f32 %v1323, %v174
    %v1326 = vrot.slane %v1324, 6
    %v1328 = vadd.f32 %v1316, %v1326
    %v1329 = vmul.f32 %v1328, 2.0
    %v1330 = vtanh.pop %v1329
    %1332 = vrot.lane.b32.xlu0 %v1330, 127
    %v1333 = vpop.permute.xlu0 %1332
    %1335 = vrot.lane.b32.xlu0 %v1330, 31
    %v1336 = vpop.permute.xlu0 %1335
    %v1338 = vsel %vm186, %v1333, %v1336
    %v1339 = vmul.f32 %v1338, %v171
    %v1341 = vrot.slane %v1339, 6
    %v1343 = vadd.f32 %v153, %v1341
    %1344 = vrot.lane.b32.xlu0 %v1330, 126
    %v1345 = vpop.permute.xlu0 %1344
    %1347 = vrot.lane.b32.xlu0 %v1330, 30
    %v1348 = vpop.permute.xlu0 %1347
    %v1350 = vsel %vm199, %v1345, %v1348
    %v1351 = vmul.f32 %v1350, %v174
    %v1353 = vrot.slane %v1351, 6
    %v1355 = vadd.f32 %v1343, %v1353
    %v1356 = vmul.f32 %v1355, 2.0
    %v1357 = vtanh.pop %v1356
    %1359 = vrot.lane.b32.xlu0 %v1357, 127
    %v1360 = vpop.permute.xlu0 %1359
    %1362 = vrot.lane.b32.xlu0 %v1357, 31
    %v1363 = vpop.permute.xlu0 %1362
    %v1365 = vsel %vm186, %v1360, %v1363
    %v1366 = vmul.f32 %v1365, %v171
    %v1368 = vrot.slane %v1366, 6
    %v1370 = vadd.f32 %v153, %v1368
    %1371 = vrot.lane.b32.xlu0 %v1357, 126
    %v1372 = vpop.permute.xlu0 %1371
    %1374 = vrot.lane.b32.xlu0 %v1357, 30
    %v1375 = vpop.permute.xlu0 %1374
    %v1377 = vsel %vm199, %v1372, %v1375
    %v1378 = vmul.f32 %v1377, %v174
    %v1380 = vrot.slane %v1378, 6
    %v1382 = vadd.f32 %v1370, %v1380
    %v1383 = vmul.f32 %v1382, 2.0
    %v1384 = vtanh.pop %v1383
    %v1385 = vsel %vm262, %v1303, %v1330
    %v1386 = vsel %vm264, %v1385, %v1357
    %v1387 = vsel %vm266, %v1386, %v1384
    %1388 = vst.msk [vmem:[#allocation2 + $0x50] sm:$0xff] %vm56, %v1387
    %1390 = vrot.lane.b32.xlu0 %v1384, 127
    %v1391 = vpop.permute.xlu0 %1390
    %1393 = vrot.lane.b32.xlu0 %v1384, 31
    %v1394 = vpop.permute.xlu0 %1393
    %v1396 = vsel %vm186, %v1391, %v1394
    %v1397 = vmul.f32 %v1396, %v171
    %v1399 = vrot.slane %v1397, 6
    %v1401 = vadd.f32 %v156, %v1399
    %1402 = vrot.lane.b32.xlu0 %v1384, 126
    %v1403 = vpop.permute.xlu0 %1402
    %1405 = vrot.lane.b32.xlu0 %v1384, 30
    %v1406 = vpop.permute.xlu0 %1405
    %v1408 = vsel %vm199, %v1403, %v1406
    %v1409 = vmul.f32 %v1408, %v174
    %v1411 = vrot.slane %v1409, 6
    %v1413 = vadd.f32 %v1401, %v1411
    %v1414 = vmul.f32 %v1413, 2.0
    %v1415 = vtanh.pop %v1414
    %1417 = vrot.lane.b32.xlu0 %v1415, 127
    %v1418 = vpop.permute.xlu0 %1417
    %1420 = vrot.lane.b32.xlu0 %v1415, 31
    %v1421 = vpop.permute.xlu0 %1420
    %v1423 = vsel %vm186, %v1418, %v1421
    %v1424 = vmul.f32 %v1423, %v171
    %v1426 = vrot.slane %v1424, 6
    %v1428 = vadd.f32 %v156, %v1426
    %1429 = vrot.lane.b32.xlu0 %v1415, 126
    %v1430 = vpop.permute.xlu0 %1429
    %1432 = vrot.lane.b32.xlu0 %v1415, 30
    %v1433 = vpop.permute.xlu0 %1432
    %v1435 = vsel %vm199, %v1430, %v1433
    %v1436 = vmul.f32 %v1435, %v174
    %v1438 = vrot.slane %v1436, 6
    %v1440 = vadd.f32 %v1428, %v1438
    %v1441 = vmul.f32 %v1440, 2.0
    %v1442 = vtanh.pop %v1441
    %1444 = vrot.lane.b32.xlu0 %v1442, 127
    %v1445 = vpop.permute.xlu0 %1444
    %1447 = vrot.lane.b32.xlu0 %v1442, 31
    %v1448 = vpop.permute.xlu0 %1447
    %v1450 = vsel %vm186, %v1445, %v1448
    %v1451 = vmul.f32 %v1450, %v171
    %v1453 = vrot.slane %v1451, 6
    %v1455 = vadd.f32 %v156, %v1453
    %1456 = vrot.lane.b32.xlu0 %v1442, 126
    %v1457 = vpop.permute.xlu0 %1456
    %1459 = vrot.lane.b32.xlu0 %v1442, 30
    %v1460 = vpop.permute.xlu0 %1459
    %v1462 = vsel %vm199, %v1457, %v1460
    %v1463 = vmul.f32 %v1462, %v174
    %v1465 = vrot.slane %v1463, 6
    %v1467 = vadd.f32 %v1455, %v1465
    %v1468 = vmul.f32 %v1467, 2.0
    %v1469 = vtanh.pop %v1468
    %1471 = vrot.lane.b32.xlu0 %v1469, 127
    %v1472 = vpop.permute.xlu0 %1471
    %1474 = vrot.lane.b32.xlu0 %v1469, 31
    %v1475 = vpop.permute.xlu0 %1474
    %v1477 = vsel %vm186, %v1472, %v1475
    %v1478 = vmul.f32 %v1477, %v171
    %v1480 = vrot.slane %v1478, 6
    %v1482 = vadd.f32 %v156, %v1480
    %1483 = vrot.lane.b32.xlu0 %v1469, 126
    %v1484 = vpop.permute.xlu0 %1483
    %1486 = vrot.lane.b32.xlu0 %v1469, 30
    %v1487 = vpop.permute.xlu0 %1486
    %v1489 = vsel %vm199, %v1484, %v1487
    %v1490 = vmul.f32 %v1489, %v174
    %v1492 = vrot.slane %v1490, 6
    %v1494 = vadd.f32 %v1482, %v1492
    %v1495 = vmul.f32 %v1494, 2.0
    %v1496 = vtanh.pop %v1495
    %v1497 = vsel %vm262, %v1415, %v1442
    %v1498 = vsel %vm264, %v1497, %v1469
    %v1499 = vsel %vm266, %v1498, %v1496
    %1500 = vst.msk [vmem:[#allocation2 + $0x58] sm:$0xff] %vm56, %v1499
    %1502 = vrot.lane.b32.xlu0 %v1496, 127
    %v1503 = vpop.permute.xlu0 %1502
    %1505 = vrot.lane.b32.xlu0 %v1496, 31
    %v1506 = vpop.permute.xlu0 %1505
    %v1508 = vsel %vm186, %v1503, %v1506
    %v1509 = vmul.f32 %v1508, %v171
    %v1511 = vrot.slane %v1509, 6
    %v1513 = vadd.f32 %v159, %v1511
    %1514 = vrot.lane.b32.xlu0 %v1496, 126
    %v1515 = vpop.permute.xlu0 %1514
    %1517 = vrot.lane.b32.xlu0 %v1496, 30
    %v1518 = vpop.permute.xlu0 %1517
    %v1520 = vsel %vm199, %v1515, %v1518
    %v1521 = vmul.f32 %v1520, %v174
    %v1523 = vrot.slane %v1521, 6
    %v1525 = vadd.f32 %v1513, %v1523
    %v1526 = vmul.f32 %v1525, 2.0
    %v1527 = vtanh.pop %v1526
    %1529 = vrot.lane.b32.xlu0 %v1527, 127
    %v1530 = vpop.permute.xlu0 %1529
    %1532 = vrot.lane.b32.xlu0 %v1527, 31
    %v1533 = vpop.permute.xlu0 %1532
    %v1535 = vsel %vm186, %v1530, %v1533
    %v1536 = vmul.f32 %v1535, %v171
    %v1538 = vrot.slane %v1536, 6
    %v1540 = vadd.f32 %v159, %v1538
    %1541 = vrot.lane.b32.xlu0 %v1527, 126
    %v1542 = vpop.permute.xlu0 %1541
    %1544 = vrot.lane.b32.xlu0 %v1527, 30
    %v1545 = vpop.permute.xlu0 %1544
    %v1547 = vsel %vm199, %v1542, %v1545
    %v1548 = vmul.f32 %v1547, %v174
    %v1550 = vrot.slane %v1548, 6
    %v1552 = vadd.f32 %v1540, %v1550
    %v1553 = vmul.f32 %v1552, 2.0
    %v1554 = vtanh.pop %v1553
    %1556 = vrot.lane.b32.xlu0 %v1554, 127
    %v1557 = vpop.permute.xlu0 %1556
    %1559 = vrot.lane.b32.xlu0 %v1554, 31
    %v1560 = vpop.permute.xlu0 %1559
    %v1562 = vsel %vm186, %v1557, %v1560
    %v1563 = vmul.f32 %v1562, %v171
    %v1565 = vrot.slane %v1563, 6
    %v1567 = vadd.f32 %v159, %v1565
    %1568 = vrot.lane.b32.xlu0 %v1554, 126
    %v1569 = vpop.permute.xlu0 %1568
    %1571 = vrot.lane.b32.xlu0 %v1554, 30
    %v1572 = vpop.permute.xlu0 %1571
    %v1574 = vsel %vm199, %v1569, %v1572
    %v1575 = vmul.f32 %v1574, %v174
    %v1577 = vrot.slane %v1575, 6
    %v1579 = vadd.f32 %v1567, %v1577
    %v1580 = vmul.f32 %v1579, 2.0
    %v1581 = vtanh.pop %v1580
    %1583 = vrot.lane.b32.xlu0 %v1581, 127
    %v1584 = vpop.permute.xlu0 %1583
    %1586 = vrot.lane.b32.xlu0 %v1581, 31
    %v1587 = vpop.permute.xlu0 %1586
    %v1589 = vsel %vm186, %v1584, %v1587
    %v1590 = vmul.f32 %v1589, %v171
    %v1592 = vrot.slane %v1590, 6
    %v1594 = vadd.f32 %v159, %v1592
    %1595 = vrot.lane.b32.xlu0 %v1581, 126
    %v1596 = vpop.permute.xlu0 %1595
    %1598 = vrot.lane.b32.xlu0 %v1581, 30
    %v1599 = vpop.permute.xlu0 %1598
    %v1601 = vsel %vm199, %v1596, %v1599
    %v1602 = vmul.f32 %v1601, %v174
    %v1604 = vrot.slane %v1602, 6
    %v1606 = vadd.f32 %v1594, %v1604
    %v1607 = vmul.f32 %v1606, 2.0
    %v1608 = vtanh.pop %v1607
    %v1609 = vsel %vm262, %v1527, %v1554
    %v1610 = vsel %vm264, %v1609, %v1581
    %v1611 = vsel %vm266, %v1610, %v1608
    %1612 = vst.msk [vmem:[#allocation2 + $0x60] sm:$0xff] %vm56, %v1611
    %1614 = vrot.lane.b32.xlu0 %v1608, 127
    %v1615 = vpop.permute.xlu0 %1614
    %1617 = vrot.lane.b32.xlu0 %v1608, 31
    %v1618 = vpop.permute.xlu0 %1617
    %v1620 = vsel %vm186, %v1615, %v1618
    %v1621 = vmul.f32 %v1620, %v171
    %v1623 = vrot.slane %v1621, 6
    %v1625 = vadd.f32 %v162, %v1623
    %1626 = vrot.lane.b32.xlu0 %v1608, 126
    %v1627 = vpop.permute.xlu0 %1626
    %1629 = vrot.lane.b32.xlu0 %v1608, 30
    %v1630 = vpop.permute.xlu0 %1629
    %v1632 = vsel %vm199, %v1627, %v1630
    %v1633 = vmul.f32 %v1632, %v174
    %v1635 = vrot.slane %v1633, 6
    %v1637 = vadd.f32 %v1625, %v1635
    %v1638 = vmul.f32 %v1637, 2.0
    %v1639 = vtanh.pop %v1638
    %1641 = vrot.lane.b32.xlu0 %v1639, 127
    %v1642 = vpop.permute.xlu0 %1641
    %1644 = vrot.lane.b32.xlu0 %v1639, 31
    %v1645 = vpop.permute.xlu0 %1644
    %v1647 = vsel %vm186, %v1642, %v1645
    %v1648 = vmul.f32 %v1647, %v171
    %v1650 = vrot.slane %v1648, 6
    %v1652 = vadd.f32 %v162, %v1650
    %1653 = vrot.lane.b32.xlu0 %v1639, 126
    %v1654 = vpop.permute.xlu0 %1653
    %1656 = vrot.lane.b32.xlu0 %v1639, 30
    %v1657 = vpop.permute.xlu0 %1656
    %v1659 = vsel %vm199, %v1654, %v1657
    %v1660 = vmul.f32 %v1659, %v174
    %v1662 = vrot.slane %v1660, 6
    %v1664 = vadd.f32 %v1652, %v1662
    %v1665 = vmul.f32 %v1664, 2.0
    %v1666 = vtanh.pop %v1665
    %1668 = vrot.lane.b32.xlu0 %v1666, 127
    %v1669 = vpop.permute.xlu0 %1668
    %1671 = vrot.lane.b32.xlu0 %v1666, 31
    %v1672 = vpop.permute.xlu0 %1671
    %v1674 = vsel %vm186, %v1669, %v1672
    %v1675 = vmul.f32 %v1674, %v171
    %v1677 = vrot.slane %v1675, 6
    %v1679 = vadd.f32 %v162, %v1677
    %1680 = vrot.lane.b32.xlu0 %v1666, 126
    %v1681 = vpop.permute.xlu0 %1680
    %1683 = vrot.lane.b32.xlu0 %v1666, 30
    %v1684 = vpop.permute.xlu0 %1683
    %v1686 = vsel %vm199, %v1681, %v1684
    %v1687 = vmul.f32 %v1686, %v174
    %v1689 = vrot.slane %v1687, 6
    %v1691 = vadd.f32 %v1679, %v1689
    %v1692 = vmul.f32 %v1691, 2.0
    %v1693 = vtanh.pop %v1692
    %1695 = vrot.lane.b32.xlu0 %v1693, 127
    %v1696 = vpop.permute.xlu0 %1695
    %1698 = vrot.lane.b32.xlu0 %v1693, 31
    %v1699 = vpop.permute.xlu0 %1698
    %v1701 = vsel %vm186, %v1696, %v1699
    %v1702 = vmul.f32 %v1701, %v171
    %v1704 = vrot.slane %v1702, 6
    %v1706 = vadd.f32 %v162, %v1704
    %1707 = vrot.lane.b32.xlu0 %v1693, 126
    %v1708 = vpop.permute.xlu0 %1707
    %1710 = vrot.lane.b32.xlu0 %v1693, 30
    %v1711 = vpop.permute.xlu0 %1710
    %v1713 = vsel %vm199, %v1708, %v1711
    %v1714 = vmul.f32 %v1713, %v174
    %v1716 = vrot.slane %v1714, 6
    %v1718 = vadd.f32 %v1706, %v1716
    %v1719 = vmul.f32 %v1718, 2.0
    %v1720 = vtanh.pop %v1719
    %v1721 = vsel %vm262, %v1639, %v1666
    %v1722 = vsel %vm264, %v1721, %v1693
    %v1723 = vsel %vm266, %v1722, %v1720
    %1724 = vst.msk [vmem:[#allocation2 + $0x68] sm:$0xff] %vm56, %v1723
    %1726 = vrot.lane.b32.xlu0 %v1720, 127
    %v1727 = vpop.permute.xlu0 %1726
    %1729 = vrot.lane.b32.xlu0 %v1720, 31
    %v1730 = vpop.permute.xlu0 %1729
    %v1732 = vsel %vm186, %v1727, %v1730
    %v1733 = vmul.f32 %v1732, %v171
    %v1735 = vrot.slane %v1733, 6
    %v1737 = vadd.f32 %v165, %v1735
    %1738 = vrot.lane.b32.xlu0 %v1720, 126
    %v1739 = vpop.permute.xlu0 %1738
    %1741 = vrot.lane.b32.xlu0 %v1720, 30
    %v1742 = vpop.permute.xlu0 %1741
    %v1744 = vsel %vm199, %v1739, %v1742
    %v1745 = vmul.f32 %v1744, %v174
    %v1747 = vrot.slane %v1745, 6
    %v1749 = vadd.f32 %v1737, %v1747
    %v1750 = vmul.f32 %v1749, 2.0
    %v1751 = vtanh.pop %v1750
    %1753 = vrot.lane.b32.xlu0 %v1751, 127
    %v1754 = vpop.permute.xlu0 %1753
    %1756 = vrot.lane.b32.xlu0 %v1751, 31
    %v1757 = vpop.permute.xlu0 %1756
    %v1759 = vsel %vm186, %v1754, %v1757
    %v1760 = vmul.f32 %v1759, %v171
    %v1762 = vrot.slane %v1760, 6
    %v1764 = vadd.f32 %v165, %v1762
    %1765 = vrot.lane.b32.xlu0 %v1751, 126
    %v1766 = vpop.permute.xlu0 %1765
    %1768 = vrot.lane.b32.xlu0 %v1751, 30
    %v1769 = vpop.permute.xlu0 %1768
    %v1771 = vsel %vm199, %v1766, %v1769
    %v1772 = vmul.f32 %v1771, %v174
    %v1774 = vrot.slane %v1772, 6
    %v1776 = vadd.f32 %v1764, %v1774
    %v1777 = vmul.f32 %v1776, 2.0
    %v1778 = vtanh.pop %v1777
    %1780 = vrot.lane.b32.xlu0 %v1778, 127
    %v1781 = vpop.permute.xlu0 %1780
    %1783 = vrot.lane.b32.xlu0 %v1778, 31
    %v1784 = vpop.permute.xlu0 %1783
    %v1786 = vsel %vm186, %v1781, %v1784
    %v1787 = vmul.f32 %v1786, %v171
    %v1789 = vrot.slane %v1787, 6
    %v1791 = vadd.f32 %v165, %v1789
    %1792 = vrot.lane.b32.xlu0 %v1778, 126
    %v1793 = vpop.permute.xlu0 %1792
    %1795 = vrot.lane.b32.xlu0 %v1778, 30
    %v1796 = vpop.permute.xlu0 %1795
    %v1798 = vsel %vm199, %v1793, %v1796
    %v1799 = vmul.f32 %v1798, %v174
    %v1801 = vrot.slane %v1799, 6
    %v1803 = vadd.f32 %v1791, %v1801
    %v1804 = vmul.f32 %v1803, 2.0
    %v1805 = vtanh.pop %v1804
    %1807 = vrot.lane.b32.xlu0 %v1805, 127
    %v1808 = vpop.permute.xlu0 %1807
    %1810 = vrot.lane.b32.xlu0 %v1805, 31
    %v1811 = vpop.permute.xlu0 %1810
    %v1813 = vsel %vm186, %v1808, %v1811
    %v1814 = vmul.f32 %v1813, %v171
    %v1816 = vrot.slane %v1814, 6
    %v1818 = vadd.f32 %v165, %v1816
    %1819 = vrot.lane.b32.xlu0 %v1805, 126
    %v1820 = vpop.permute.xlu0 %1819
    %1822 = vrot.lane.b32.xlu0 %v1805, 30
    %v1823 = vpop.permute.xlu0 %1822
    %v1825 = vsel %vm199, %v1820, %v1823
    %v1826 = vmul.f32 %v1825, %v174
    %v1828 = vrot.slane %v1826, 6
    %v1830 = vadd.f32 %v1818, %v1828
    %v1831 = vmul.f32 %v1830, 2.0
    %v1832 = vtanh.pop %v1831
    %v1833 = vsel %vm262, %v1751, %v1778
    %v1834 = vsel %vm264, %v1833, %v1805
    %v1835 = vsel %vm266, %v1834, %v1832
    %1836 = vst.msk [vmem:[#allocation2 + $0x70] sm:$0xff] %vm56, %v1835
    %1838 = vrot.lane.b32.xlu0 %v1832, 127
    %v1839 = vpop.permute.xlu0 %1838
    %1841 = vrot.lane.b32.xlu0 %v1832, 31
    %v1842 = vpop.permute.xlu0 %1841
    %v1844 = vsel %vm186, %v1839, %v1842
    %v1845 = vmul.f32 %v1844, %v171
    %v1847 = vrot.slane %v1845, 6
    %v1849 = vadd.f32 %v168, %v1847
    %1850 = vrot.lane.b32.xlu0 %v1832, 126
    %v1851 = vpop.permute.xlu0 %1850
    %1853 = vrot.lane.b32.xlu0 %v1832, 30
    %v1854 = vpop.permute.xlu0 %1853
    %v1856 = vsel %vm199, %v1851, %v1854
    %v1857 = vmul.f32 %v1856, %v174
    %v1859 = vrot.slane %v1857, 6
    %v1861 = vadd.f32 %v1849, %v1859
    %v1862 = vmul.f32 %v1861, 2.0
    %v1863 = vtanh.pop %v1862
    %1865 = vrot.lane.b32.xlu0 %v1863, 127
    %v1866 = vpop.permute.xlu0 %1865
    %1868 = vrot.lane.b32.xlu0 %v1863, 31
    %v1869 = vpop.permute.xlu0 %1868
    %v1871 = vsel %vm186, %v1866, %v1869
    %v1872 = vmul.f32 %v1871, %v171
    %v1874 = vrot.slane %v1872, 6
    %v1876 = vadd.f32 %v168, %v1874
    %1877 = vrot.lane.b32.xlu0 %v1863, 126
    %v1878 = vpop.permute.xlu0 %1877
    %1880 = vrot.lane.b32.xlu0 %v1863, 30
    %v1881 = vpop.permute.xlu0 %1880
    %v1883 = vsel %vm199, %v1878, %v1881
    %v1884 = vmul.f32 %v1883, %v174
    %v1886 = vrot.slane %v1884, 6
    %v1888 = vadd.f32 %v1876, %v1886
    %v1889 = vmul.f32 %v1888, 2.0
    %v1890 = vtanh.pop %v1889
    %1892 = vrot.lane.b32.xlu0 %v1890, 127
    %v1893 = vpop.permute.xlu0 %1892
    %1895 = vrot.lane.b32.xlu0 %v1890, 31
    %v1896 = vpop.permute.xlu0 %1895
    %v1898 = vsel %vm186, %v1893, %v1896
    %v1899 = vmul.f32 %v1898, %v171
    %v1901 = vrot.slane %v1899, 6
    %v1903 = vadd.f32 %v168, %v1901
    %1904 = vrot.lane.b32.xlu0 %v1890, 126
    %v1905 = vpop.permute.xlu0 %1904
    %1907 = vrot.lane.b32.xlu0 %v1890, 30
    %v1908 = vpop.permute.xlu0 %1907
    %v1910 = vsel %vm199, %v1905, %v1908
    %v1911 = vmul.f32 %v1910, %v174
    %v1913 = vrot.slane %v1911, 6
    %v1915 = vadd.f32 %v1903, %v1913
    %v1916 = vmul.f32 %v1915, 2.0
    %v1917 = vtanh.pop %v1916
    %1919 = vrot.lane.b32.xlu0 %v1917, 127
    %v1920 = vpop.permute.xlu0 %1919
    %1922 = vrot.lane.b32.xlu0 %v1917, 31
    %v1923 = vpop.permute.xlu0 %1922
    %v1925 = vsel %vm186, %v1920, %v1923
    %v1926 = vmul.f32 %v1925, %v171
    %v1928 = vrot.slane %v1926, 6
    %v1930 = vadd.f32 %v168, %v1928
    %1931 = vrot.lane.b32.xlu0 %v1917, 126
    %v1932 = vpop.permute.xlu0 %1931
    %1934 = vrot.lane.b32.xlu0 %v1917, 30
    %v1935 = vpop.permute.xlu0 %1934
    %v1937 = vsel %vm199, %v1932, %v1935
    %v1938 = vmul.f32 %v1937, %v174
    %v1940 = vrot.slane %v1938, 6
    %v1942 = vadd.f32 %v1930, %v1940
    %v1943 = vmul.f32 %v1942, 2.0
    %v1944 = vtanh.pop %v1943
    %v1945 = vsel %vm262, %v1863, %v1890
    %v1946 = vsel %vm264, %v1945, %v1917
    %v1947 = vsel %vm266, %v1946, %v1944
    %1948 = vst.msk [vmem:[#allocation2 + $0x78] sm:$0xff] %vm56, %v1947
    %v1949 = vld [vmem:[#allocation2] sm:$0xff]
    %v1950 = vld [vmem:[#allocation2 + $0x8] sm:$0xff]
    %v1951 = vld [vmem:[#allocation2 + $0x10] sm:$0xff]
    %v1952 = vld [vmem:[#allocation2 + $0x18] sm:$0xff]
    %v1953 = vld [vmem:[#allocation2 + $0x20] sm:$0xff]
    %v1954 = vld [vmem:[#allocation2 + $0x28] sm:$0xff]
    %v1955 = vld [vmem:[#allocation2 + $0x30] sm:$0xff]
    %v1956 = vld [vmem:[#allocation2 + $0x38] sm:$0xff]
    %v1957 = vld [vmem:[#allocation2 + $0x40] sm:$0xff]
    %v1958 = vld [vmem:[#allocation2 + $0x48] sm:$0xff]
    %v1959 = vld [vmem:[#allocation2 + $0x50] sm:$0xff]
    %v1960 = vld [vmem:[#allocation2 + $0x58] sm:$0xff]
    %v1961 = vld [vmem:[#allocation2 + $0x60] sm:$0xff]
    %v1962 = vld [vmem:[#allocation2 + $0x68] sm:$0xff]
    %v1963 = vld [vmem:[#allocation2 + $0x70] sm:$0xff]
    %v1964 = vld [vmem:[#allocation2 + $0x78] sm:$0xff]
    %v1965 = vld [vmem:[%s3] sm:$0xff]
    %v1966 = vld [vmem:[%s3 + $0x8] sm:$0xff]
    %v1967 = vld [vmem:[%s3 + $0x10] sm:$0xff]
    %v1968 = vld [vmem:[%s3 + $0x18] sm:$0xff]
    %v1969 = vld [vmem:[%s4] sm:$0x1]
    %v1971 = vperm.slane %v1969, 0
    %v1974 = vsel %vm56, %v1949, 0
    %v1977 = vsel %vm56, %v1950, 0
    %v1980 = vsel %vm56, %v1951, 0
    %v1983 = vsel %vm56, %v1952, 0
    %v1986 = vsel %vm56, %v1953, 0
    %v1989 = vsel %vm56, %v1954, 0
    %v1992 = vsel %vm56, %v1955, 0
    %v1995 = vsel %vm56, %v1956, 0
    %v1998 = vsel %vm56, %v1957, 0
    %v2001 = vsel %vm56, %v1958, 0
    %v2004 = vsel %vm56, %v1959, 0
    %v2007 = vsel %vm56, %v1960, 0
    %v2010 = vsel %vm56, %v1961, 0
    %v2013 = vsel %vm56, %v1962, 0
    %v2016 = vsel %vm56, %v1963, 0
    %v2019 = vsel %vm56, %v1964, 0
    %2021 = vmatpush.msra.mxu0 0.0
    %2022 = vmatpush.msra.mxu0 0.0
    %2023 = vmatpush.msra.mxu0 0.0
    %2024 = vmatpush.msra.mxu0 0.0
    %2025 = vmatpush.msra.mxu0 0.0
    %2026 = vmatpush.msra.mxu0 0.0
    %2027 = vmatpush.msra.mxu0 0.0
    %2028 = vmatpush.msra.mxu0 0.0
    %2029 = vmatpush.msra.mxu0 0.0
    %2030 = vmatpush.msra.mxu0 0.0
    %2031 = vmatpush.msra.mxu0 0.0
    %2032 = vmatpush.msra.mxu0 0.0
    %2033 = vmatpush.msra.mxu0 %v1968
    %2034 = vmatpush.msra.mxu0 %v1967
    %2035 = vmatpush.msra.mxu0 %v1966
    %2036 = vmatpush.msra.mxu0 %v1965
    %2037 = vmatmul.f32.gmra.mxu0 %v1974
    %v2038 = vpop.f32.mrf.mxu0
    %v2039 = vadd.f32 %v1971, %v2038
    %2040 = vmatmul.f32.gmra.mxu0 %v1977
    %v2041 = vpop.f32.mrf.mxu0
    %v2042 = vadd.f32 %v1971, %v2041
    %2043 = vmatmul.f32.gmra.mxu0 %v1980
    %v2044 = vpop.f32.mrf.mxu0
    %v2045 = vadd.f32 %v1971, %v2044
    %2046 = vmatmul.f32.gmra.mxu0 %v1983
    %v2047 = vpop.f32.mrf.mxu0
    %v2048 = vadd.f32 %v1971, %v2047
    %2049 = vmatmul.f32.gmra.mxu0 %v1986
    %v2050 = vpop.f32.mrf.mxu0
    %v2051 = vadd.f32 %v1971, %v2050
    %2052 = vmatmul.f32.gmra.mxu0 %v1989
    %v2053 = vpop.f32.mrf.mxu0
    %v2054 = vadd.f32 %v1971, %v2053
    %2055 = vmatmul.f32.gmra.mxu0 %v1992
    %v2056 = vpop.f32.mrf.mxu0
    %v2057 = vadd.f32 %v1971, %v2056
    %2058 = vmatmul.f32.gmra.mxu0 %v1995
    %v2059 = vpop.f32.mrf.mxu0
    %v2060 = vadd.f32 %v1971, %v2059
    %2061 = vmatmul.f32.gmra.mxu0 %v1998
    %v2062 = vpop.f32.mrf.mxu0
    %v2063 = vadd.f32 %v1971, %v2062
    %2064 = vmatmul.f32.gmra.mxu0 %v2001
    %v2065 = vpop.f32.mrf.mxu0
    %v2066 = vadd.f32 %v1971, %v2065
    %2067 = vmatmul.f32.gmra.mxu0 %v2004
    %v2068 = vpop.f32.mrf.mxu0
    %v2069 = vadd.f32 %v1971, %v2068
    %2070 = vmatmul.f32.gmra.mxu0 %v2007
    %v2071 = vpop.f32.mrf.mxu0
    %v2072 = vadd.f32 %v1971, %v2071
    %2073 = vmatmul.f32.gmra.mxu0 %v2010
    %v2074 = vpop.f32.mrf.mxu0
    %v2075 = vadd.f32 %v1971, %v2074
    %2076 = vmatmul.f32.gmra.mxu0 %v2013
    %v2077 = vpop.f32.mrf.mxu0
    %v2078 = vadd.f32 %v1971, %v2077
    %2079 = vmatmul.f32.gmra.mxu0 %v2016
    %v2080 = vpop.f32.mrf.mxu0
    %v2081 = vadd.f32 %v1971, %v2080
    %2082 = vmatmul.f32.gmra.mxu0 %v2019
    %v2083 = vpop.f32.mrf.mxu0
    %v2084 = vadd.f32 %v1971, %v2083
    %2085 = vdwg.mxu0
    %vm2086 = vcmp.ge.f32.partialorder %v2039, 0.0
    %vm2087 = vcmp.ge.f32.partialorder %v2042, 0.0
    %vm2088 = vcmp.ge.f32.partialorder %v2045, 0.0
    %vm2089 = vcmp.ge.f32.partialorder %v2048, 0.0
    %vm2090 = vcmp.ge.f32.partialorder %v2051, 0.0
    %vm2091 = vcmp.ge.f32.partialorder %v2054, 0.0
    %vm2092 = vcmp.ge.f32.partialorder %v2057, 0.0
    %vm2093 = vcmp.ge.f32.partialorder %v2060, 0.0
    %vm2094 = vcmp.ge.f32.partialorder %v2063, 0.0
    %vm2095 = vcmp.ge.f32.partialorder %v2066, 0.0
    %vm2096 = vcmp.ge.f32.partialorder %v2069, 0.0
    %vm2097 = vcmp.ge.f32.partialorder %v2072, 0.0
    %vm2098 = vcmp.ge.f32.partialorder %v2075, 0.0
    %vm2099 = vcmp.ge.f32.partialorder %v2078, 0.0
    %vm2100 = vcmp.ge.f32.partialorder %v2081, 0.0
    %vm2101 = vcmp.ge.f32.partialorder %v2084, 0.0
    %v2102 = vmul.f32 %v2039, 0.0625
    %v2103 = vmul.f32 %v2042, 0.0625
    %v2104 = vmul.f32 %v2045, 0.0625
    %v2105 = vmul.f32 %v2048, 0.0625
    %v2106 = vmul.f32 %v2051, 0.0625
    %v2107 = vmul.f32 %v2054, 0.0625
    %v2108 = vmul.f32 %v2057, 0.0625
    %v2109 = vmul.f32 %v2060, 0.0625
    %v2110 = vmul.f32 %v2063, 0.0625
    %v2111 = vmul.f32 %v2066, 0.0625
    %v2112 = vmul.f32 %v2069, 0.0625
    %v2113 = vmul.f32 %v2072, 0.0625
    %v2114 = vmul.f32 %v2075, 0.0625
    %v2115 = vmul.f32 %v2078, 0.0625
    %v2116 = vmul.f32 %v2081, 0.0625
    %v2117 = vmul.f32 %v2084, 0.0625
    %v2118 = vsel %vm2086, %v2039, %v2102
    %v2119 = vsel %vm2087, %v2042, %v2103
    %v2120 = vsel %vm2088, %v2045, %v2104
    %v2121 = vsel %vm2089, %v2048, %v2105
    %v2122 = vsel %vm2090, %v2051, %v2106
    %v2123 = vsel %vm2091, %v2054, %v2107
    %v2124 = vsel %vm2092, %v2057, %v2108
    %v2125 = vsel %vm2093, %v2060, %v2109
    %v2126 = vsel %vm2094, %v2063, %v2110
    %v2127 = vsel %vm2095, %v2066, %v2111
    %v2128 = vsel %vm2096, %v2069, %v2112
    %v2129 = vsel %vm2097, %v2072, %v2113
    %v2130 = vsel %vm2098, %v2075, %v2114
    %v2131 = vsel %vm2099, %v2078, %v2115
    %v2132 = vsel %vm2100, %v2081, %v2116
    %v2133 = vsel %vm2101, %v2084, %v2117
    %v2134 = vld [vmem:[%s5] sm:$0xff]
    %v2135 = vld [vmem:[%s5 + $0x8] sm:$0xff]
    %v2136 = vld [vmem:[%s5 + $0x10] sm:$0xff]
    %v2137 = vld [vmem:[%s5 + $0x18] sm:$0xff]
    %v2138 = vld [vmem:[%s6] sm:$0x1]
    %v2140 = vperm.slane %v2138, 0
    %v2143 = vsel %vm56, %v123, 0
    %v2146 = vsel %vm56, %v126, 0
    %v2149 = vsel %vm56, %v129, 0
    %v2152 = vsel %vm56, %v132, 0
    %v2155 = vsel %vm56, %v135, 0
    %v2158 = vsel %vm56, %v138, 0
    %v2161 = vsel %vm56, %v141, 0
    %v2164 = vsel %vm56, %v144, 0
    %v2167 = vsel %vm56, %v147, 0
    %v2170 = vsel %vm56, %v150, 0
    %v2173 = vsel %vm56, %v153, 0
    %v2176 = vsel %vm56, %v156, 0
    %v2179 = vsel %vm56, %v159, 0
    %v2182 = vsel %vm56, %v162, 0
    %v2185 = vsel %vm56, %v165, 0
    %v2188 = vsel %vm56, %v168, 0
    %2190 = vmatpush.msra.mxu0 0.0
    %2191 = vmatpush.msra.mxu0 0.0
    %2192 = vmatpush.msra.mxu0 0.0
    %2193 = vmatpush.msra.mxu0 0.0
    %2194 = vmatpush.msra.mxu0 0.0
    %2195 = vmatpush.msra.mxu0 0.0
    %2196 = vmatpush.msra.mxu0 0.0
    %2197 = vmatpush.msra.mxu0 0.0
    %2198 = vmatpush.msra.mxu0 0.0
    %2199 = vmatpush.msra.mxu0 0.0
    %2200 = vmatpush.msra.mxu0 0.0
    %2201 = vmatpush.msra.mxu0 0.0
    %2202 = vmatpush.msra.mxu0 %v2137
    %2203 = vmatpush.msra.mxu0 %v2136
    %2204 = vmatpush.msra.mxu0 %v2135
    %2205 = vmatpush.msra.mxu0 %v2134
    %2206 = vmatmul.f32.gmra.mxu0 %v2143
    %v2207 = vpop.f32.mrf.mxu0
    %v2208 = vadd.f32 %v2140, %v2207
    %2209 = vmatmul.f32.gmra.mxu0 %v2146
    %v2210 = vpop.f32.mrf.mxu0
    %v2211 = vadd.f32 %v2140, %v2210
    %2212 = vmatmul.f32.gmra.mxu0 %v2149
    %v2213 = vpop.f32.mrf.mxu0
    %v2214 = vadd.f32 %v2140, %v2213
    %2215 = vmatmul.f32.gmra.mxu0 %v2152
    %v2216 = vpop.f32.mrf.mxu0
    %v2217 = vadd.f32 %v2140, %v2216
    %2218 = vmatmul.f32.gmra.mxu0 %v2155
    %v2219 = vpop.f32.mrf.mxu0
    %v2220 = vadd.f32 %v2140, %v2219
    %2221 = vmatmul.f32.gmra.mxu0 %v2158
    %v2222 = vpop.f32.mrf.mxu0
    %v2223 = vadd.f32 %v2140, %v2222
    %2224 = vmatmul.f32.gmra.mxu0 %v2161
    %v2225 = vpop.f32.mrf.mxu0
    %v2226 = vadd.f32 %v2140, %v2225
    %2227 = vmatmul.f32.gmra.mxu0 %v2164
    %v2228 = vpop.f32.mrf.mxu0
    %v2229 = vadd.f32 %v2140, %v2228
    %2230 = vmatmul.f32.gmra.mxu0 %v2167
    %v2231 = vpop.f32.mrf.mxu0
    %v2232 = vadd.f32 %v2140, %v2231
    %2233 = vmatmul.f32.gmra.mxu0 %v2170
    %v2234 = vpop.f32.mrf.mxu0
    %v2235 = vadd.f32 %v2140, %v2234
    %2236 = vmatmul.f32.gmra.mxu0 %v2173
    %v2237 = vpop.f32.mrf.mxu0
    %v2238 = vadd.f32 %v2140, %v2237
    %2239 = vmatmul.f32.gmra.mxu0 %v2176
    %v2240 = vpop.f32.mrf.mxu0
    %v2241 = vadd.f32 %v2140, %v2240
    %2242 = vmatmul.f32.gmra.mxu0 %v2179
    %v2243 = vpop.f32.mrf.mxu0
    %v2244 = vadd.f32 %v2140, %v2243
    %2245 = vmatmul.f32.gmra.mxu0 %v2182
    %v2246 = vpop.f32.mrf.mxu0
    %v2247 = vadd.f32 %v2140, %v2246
    %2248 = vmatmul.f32.gmra.mxu0 %v2185
    %v2249 = vpop.f32.mrf.mxu0
    %v2250 = vadd.f32 %v2140, %v2249
    %2251 = vmatmul.f32.gmra.mxu0 %v2188
    %v2252 = vpop.f32.mrf.mxu0
    %v2253 = vadd.f32 %v2140, %v2252
    %2254 = vdwg.mxu0
    %vm2255 = vcmp.ge.f32.partialorder %v2208, 0.0
    %vm2256 = vcmp.ge.f32.partialorder %v2211, 0.0
    %vm2257 = vcmp.ge.f32.partialorder %v2214, 0.0
    %vm2258 = vcmp.ge.f32.partialorder %v2217, 0.0
    %vm2259 = vcmp.ge.f32.partialorder %v2220, 0.0
    %vm2260 = vcmp.ge.f32.partialorder %v2223, 0.0
    %vm2261 = vcmp.ge.f32.partialorder %v2226, 0.0
    %vm2262 = vcmp.ge.f32.partialorder %v2229, 0.0
    %vm2263 = vcmp.ge.f32.partialorder %v2232, 0.0
    %vm2264 = vcmp.ge.f32.partialorder %v2235, 0.0
    %vm2265 = vcmp.ge.f32.partialorder %v2238, 0.0
    %vm2266 = vcmp.ge.f32.partialorder %v2241, 0.0
    %vm2267 = vcmp.ge.f32.partialorder %v2244, 0.0
    %vm2268 = vcmp.ge.f32.partialorder %v2247, 0.0
    %vm2269 = vcmp.ge.f32.partialorder %v2250, 0.0
    %vm2270 = vcmp.ge.f32.partialorder %v2253, 0.0
    %v2271 = vmul.f32 %v2208, 0.0625
    %v2272 = vmul.f32 %v2211, 0.0625
    %v2273 = vmul.f32 %v2214, 0.0625
    %v2274 = vmul.f32 %v2217, 0.0625
    %v2275 = vmul.f32 %v2220, 0.0625
    %v2276 = vmul.f32 %v2223, 0.0625
    %v2277 = vmul.f32 %v2226, 0.0625
    %v2278 = vmul.f32 %v2229, 0.0625
    %v2279 = vmul.f32 %v2232, 0.0625
    %v2280 = vmul.f32 %v2235, 0.0625
    %v2281 = vmul.f32 %v2238, 0.0625
    %v2282 = vmul.f32 %v2241, 0.0625
    %v2283 = vmul.f32 %v2244, 0.0625
    %v2284 = vmul.f32 %v2247, 0.0625
    %v2285 = vmul.f32 %v2250, 0.0625
    %v2286 = vmul.f32 %v2253, 0.0625
    %v2287 = vsel %vm2255, %v2208, %v2271
    %v2288 = vsel %vm2256, %v2211, %v2272
    %v2289 = vsel %vm2257, %v2214, %v2273
    %v2290 = vsel %vm2258, %v2217, %v2274
    %v2291 = vsel %vm2259, %v2220, %v2275
    %v2292 = vsel %vm2260, %v2223, %v2276
    %v2293 = vsel %vm2261, %v2226, %v2277
    %v2294 = vsel %vm2262, %v2229, %v2278
    %v2295 = vsel %vm2263, %v2232, %v2279
    %v2296 = vsel %vm2264, %v2235, %v2280
    %v2297 = vsel %vm2265, %v2238, %v2281
    %v2298 = vsel %vm2266, %v2241, %v2282
    %v2299 = vsel %vm2267, %v2244, %v2283
    %v2300 = vsel %vm2268, %v2247, %v2284
    %v2301 = vsel %vm2269, %v2250, %v2285
    %v2302 = vsel %vm2270, %v2253, %v2286
    %v2303 = vld [vmem:[%s7] sm:$0xf]
    %v2304 = vld [vmem:[%s8] sm:$0x1]
    %v2306 = vperm.slane %v2304, 0
    %vm2308 = vcmask 31744
    %v2310 = vsel %vm2308, %v2287, 0
    %v2313 = vsel %vm2308, %v2288, 0
    %v2316 = vsel %vm2308, %v2289, 0
    %v2319 = vsel %vm2308, %v2290, 0
    %v2322 = vsel %vm2308, %v2291, 0
    %v2325 = vsel %vm2308, %v2292, 0
    %v2328 = vsel %vm2308, %v2293, 0
    %v2331 = vsel %vm2308, %v2294, 0
    %v2334 = vsel %vm2308, %v2295, 0
    %v2337 = vsel %vm2308, %v2296, 0
    %v2340 = vsel %vm2308, %v2297, 0
    %v2343 = vsel %vm2308, %v2298, 0
    %v2346 = vsel %vm2308, %v2299, 0
    %v2349 = vsel %vm2308, %v2300, 0
    %v2352 = vsel %vm2308, %v2301, 0
    %v2355 = vsel %vm2308, %v2302, 0
    %v2358 = vsel %vm264, %v2303, 0
    %2360 = vmatpush.msra.mxu0 0.0
    %2361 = vmatpush.msra.mxu0 0.0
    %2362 = vmatpush.msra.mxu0 0.0
    %2363 = vmatpush.msra.mxu0 0.0
    %2364 = vmatpush.msra.mxu0 0.0
    %2365 = vmatpush.msra.mxu0 0.0
    %2366 = vmatpush.msra.mxu0 0.0
    %2367 = vmatpush.msra.mxu0 0.0
    %2368 = vmatpush.msra.mxu0 0.0
    %2369 = vmatpush.msra.mxu0 0.0
    %2370 = vmatpush.msra.mxu0 0.0
    %2371 = vmatpush.msra.mxu0 0.0
    %2372 = vmatpush.msra.mxu0 0.0
    %2373 = vmatpush.msra.mxu0 0.0
    %2374 = vmatpush.msra.mxu0 0.0
    %2375 = vmatpush.msra.mxu0 %v2358
    %2376 = vmatmul.f32.gmra.mxu0 %v2310
    %v2377 = vpop.f32.mrf.mxu0
    %v2378 = vadd.f32 %v2306, %v2377
    %2379 = vmatmul.f32.gmra.mxu0 %v2313
    %v2380 = vpop.f32.mrf.mxu0
    %v2381 = vadd.f32 %v2306, %v2380
    %2382 = vmatmul.f32.gmra.mxu0 %v2316
    %v2383 = vpop.f32.mrf.mxu0
    %v2384 = vadd.f32 %v2306, %v2383
    %2385 = vmatmul.f32.gmra.mxu0 %v2319
    %v2386 = vpop.f32.mrf.mxu0
    %v2387 = vadd.f32 %v2306, %v2386
    %2388 = vmatmul.f32.gmra.mxu0 %v2322
    %v2389 = vpop.f32.mrf.mxu0
    %v2390 = vadd.f32 %v2306, %v2389
    %2391 = vmatmul.f32.gmra.mxu0 %v2325
    %v2392 = vpop.f32.mrf.mxu0
    %v2393 = vadd.f32 %v2306, %v2392
    %2394 = vmatmul.f32.gmra.mxu0 %v2328
    %v2395 = vpop.f32.mrf.mxu0
    %v2396 = vadd.f32 %v2306, %v2395
    %2397 = vmatmul.f32.gmra.mxu0 %v2331
    %v2398 = vpop.f32.mrf.mxu0
    %v2399 = vadd.f32 %v2306, %v2398
    %2400 = vmatmul.f32.gmra.mxu0 %v2334
    %v2401 = vpop.f32.mrf.mxu0
    %v2402 = vadd.f32 %v2306, %v2401
    %2403 = vmatmul.f32.gmra.mxu0 %v2337
    %v2404 = vpop.f32.mrf.mxu0
    %v2405 = vadd.f32 %v2306, %v2404
    %2406 = vmatmul.f32.gmra.mxu0 %v2340
    %v2407 = vpop.f32.mrf.mxu0
    %v2408 = vadd.f32 %v2306, %v2407
    %2409 = vmatmul.f32.gmra.mxu0 %v2343
    %v2410 = vpop.f32.mrf.mxu0
    %v2411 = vadd.f32 %v2306, %v2410
    %2412 = vmatmul.f32.gmra.mxu0 %v2346
    %v2413 = vpop.f32.mrf.mxu0
    %v2414 = vadd.f32 %v2306, %v2413
    %2415 = vmatmul.f32.gmra.mxu0 %v2349
    %v2416 = vpop.f32.mrf.mxu0
    %v2417 = vadd.f32 %v2306, %v2416
    %2418 = vmatmul.f32.gmra.mxu0 %v2352
    %v2419 = vpop.f32.mrf.mxu0
    %v2420 = vadd.f32 %v2306, %v2419
    %2421 = vmatmul.f32.gmra.mxu0 %v2355
    %v2422 = vpop.f32.mrf.mxu0
    %v2423 = vadd.f32 %v2306, %v2422
    %2424 = vdwg.mxu0
    %vm2425 = vcmp.ge.f32.partialorder %v2378, 0.0
    %vm2426 = vcmp.ge.f32.partialorder %v2381, 0.0
    %vm2427 = vcmp.ge.f32.partialorder %v2384, 0.0
    %vm2428 = vcmp.ge.f32.partialorder %v2387, 0.0
    %vm2429 = vcmp.ge.f32.partialorder %v2390, 0.0
    %vm2430 = vcmp.ge.f32.partialorder %v2393, 0.0
    %vm2431 = vcmp.ge.f32.partialorder %v2396, 0.0
    %vm2432 = vcmp.ge.f32.partialorder %v2399, 0.0
    %vm2433 = vcmp.ge.f32.partialorder %v2402, 0.0
    %vm2434 = vcmp.ge.f32.partialorder %v2405, 0.0
    %vm2435 = vcmp.ge.f32.partialorder %v2408, 0.0
    %vm2436 = vcmp.ge.f32.partialorder %v2411, 0.0
    %vm2437 = vcmp.ge.f32.partialorder %v2414, 0.0
    %vm2438 = vcmp.ge.f32.partialorder %v2417, 0.0
    %vm2439 = vcmp.ge.f32.partialorder %v2420, 0.0
    %vm2440 = vcmp.ge.f32.partialorder %v2423, 0.0
    %v2441 = vmul.f32 %v2378, 0.0625
    %v2442 = vmul.f32 %v2381, 0.0625
    %v2443 = vmul.f32 %v2384, 0.0625
    %v2444 = vmul.f32 %v2387, 0.0625
    %v2445 = vmul.f32 %v2390, 0.0625
    %v2446 = vmul.f32 %v2393, 0.0625
    %v2447 = vmul.f32 %v2396, 0.0625
    %v2448 = vmul.f32 %v2399, 0.0625
    %v2449 = vmul.f32 %v2402, 0.0625
    %v2450 = vmul.f32 %v2405, 0.0625
    %v2451 = vmul.f32 %v2408, 0.0625
    %v2452 = vmul.f32 %v2411, 0.0625
    %v2453 = vmul.f32 %v2414, 0.0625
    %v2454 = vmul.f32 %v2417, 0.0625
    %v2455 = vmul.f32 %v2420, 0.0625
    %v2456 = vmul.f32 %v2423, 0.0625
    %v2457 = vsel %vm2425, %v2378, %v2441
    %v2458 = vsel %vm2426, %v2381, %v2442
    %v2459 = vsel %vm2427, %v2384, %v2443
    %v2460 = vsel %vm2428, %v2387, %v2444
    %v2461 = vsel %vm2429, %v2390, %v2445
    %v2462 = vsel %vm2430, %v2393, %v2446
    %v2463 = vsel %vm2431, %v2396, %v2447
    %v2464 = vsel %vm2432, %v2399, %v2448
    %v2465 = vsel %vm2433, %v2402, %v2449
    %v2466 = vsel %vm2434, %v2405, %v2450
    %v2467 = vsel %vm2435, %v2408, %v2451
    %v2468 = vsel %vm2436, %v2411, %v2452
    %v2469 = vsel %vm2437, %v2414, %v2453
    %v2470 = vsel %vm2438, %v2417, %v2454
    %v2471 = vsel %vm2439, %v2420, %v2455
    %v2472 = vsel %vm2440, %v2423, %v2456
    %v2473 = vadd.f32 %v2118, %v2457
    %v2474 = vadd.f32 %v2119, %v2458
    %v2475 = vadd.f32 %v2120, %v2459
    %v2476 = vadd.f32 %v2121, %v2460
    %v2477 = vadd.f32 %v2122, %v2461
    %v2478 = vadd.f32 %v2123, %v2462
    %v2479 = vadd.f32 %v2124, %v2463
    %v2480 = vadd.f32 %v2125, %v2464
    %v2481 = vadd.f32 %v2126, %v2465
    %v2482 = vadd.f32 %v2127, %v2466
    %v2483 = vadd.f32 %v2128, %v2467
    %v2484 = vadd.f32 %v2129, %v2468
    %v2485 = vadd.f32 %v2130, %v2469
    %v2486 = vadd.f32 %v2131, %v2470
    %v2487 = vadd.f32 %v2132, %v2471
    %v2488 = vadd.f32 %v2133, %v2472
    %v2489 = vmax.f32 %v2473, 0.0
    %v2490 = vmax.f32 %v2474, 0.0
    %v2491 = vmax.f32 %v2475, 0.0
    %v2492 = vmax.f32 %v2476, 0.0
    %v2493 = vmax.f32 %v2477, 0.0
    %v2494 = vmax.f32 %v2478, 0.0
    %v2495 = vmax.f32 %v2479, 0.0
    %v2496 = vmax.f32 %v2480, 0.0
    %v2497 = vmax.f32 %v2481, 0.0
    %v2498 = vmax.f32 %v2482, 0.0
    %v2499 = vmax.f32 %v2483, 0.0
    %v2500 = vmax.f32 %v2484, 0.0
    %v2501 = vmax.f32 %v2485, 0.0
    %v2502 = vmax.f32 %v2486, 0.0
    %v2503 = vmax.f32 %v2487, 0.0
    %v2504 = vmax.f32 %v2488, 0.0
    %v2505 = vld [vmem:[%s9] sm:$0x3]
    %2506 = vmatpush.msra.mxu0 %v2504
    %2507 = vmatpush.msra.mxu0 %v2503
    %2508 = vmatpush.msra.mxu0 %v2502
    %2509 = vmatpush.msra.mxu0 %v2501
    %2510 = vmatpush.msra.mxu0 %v2500
    %2511 = vmatpush.msra.mxu0 %v2499
    %2512 = vmatpush.msra.mxu0 %v2498
    %2513 = vmatpush.msra.mxu0 %v2497
    %2514 = vmatpush.msra.mxu0 %v2496
    %2515 = vmatpush.msra.mxu0 %v2495
    %2516 = vmatpush.msra.mxu0 %v2494
    %2517 = vmatpush.msra.mxu0 %v2493
    %2518 = vmatpush.msra.mxu0 %v2492
    %2519 = vmatpush.msra.mxu0 %v2491
    %2520 = vmatpush.msra.mxu0 %v2490
    %2521 = vmatpush.msra.mxu0 %v2489
    %2522 = vmatmul.f32.gmra.mxu0 %v2505
    %v2523 = vpop.f32.mrf.mxu0
    %v2524 = vadd.f32 0.0, %v2523
    %2525 = vdwg.mxu0
    %vm2526 = vcmask 74752
    %2527 = vst.msk [vmem:[#allocation3] sm:$0x3] %vm2526, %v2524
    // Predicated region
    $region42: #{tpu_custom_call.1} parent=1 // pred_check
      _
    $region43: #{tpu_custom_call.1} parent=1 // pred_check_branch
      %2529 = sbr.rel (0) target = $region45
    $region44: #{tpu_custom_call.1} parent=1 // pred_region
      %2531 = vsyncadd [#allocation4], 0
      %s2533 = sshll.u32 [#allocation3], 4
      %s2534 = int_to_ptr.vmem [resolvable:$true] %s2533
      %s2535 = sshll.u32 %s10, 4
      %s2536 = int_to_ptr.hbm [resolvable:$true] %s2535
      %2538 = dma.vmem_to_hbm [thread:$0]  %s2534, 32, %s2536, [#allocation4]
    $region45: #{tpu_custom_call.1} parent=1 // pred_fallthru
      _
    // Predicated region
    $region46: #{tpu_custom_call.1} parent=1 // pred_check
      _
    $region47: #{tpu_custom_call.1} parent=1 // pred_check_branch
      %2540 = sbr.rel (0) target = $region49
    $region48: #{tpu_custom_call.1} parent=1 // pred_region
      %2542 = dma.done [#allocation4], 32
    $region49: #{tpu_custom_call.1} parent=1 // pred_fallthru
      _
    %2543 = vsyncpa [#allocation4], 1

</llo_original>
